<compile_context>
chip_gen: v7x
topology: tpu7x:2x2x1
jax: 0.10.0
libtpu: 0.0.40
codegen_flags: <defaults>
</compile_context>

<pallas_src>
import functools

import jax
import jax.numpy as jnp
from jax.experimental import pallas as pl
from jax.experimental.pallas import tpu as pltpu

EPS = 1e-5


# ---------------------------------------------------------------------------
# Fused kernel: dist -> top-k -> gather+clip -> conv1+bn1+relu+max(dims)
#               -> conv4+bn4+max(k).  One grid step per batch element.
# ---------------------------------------------------------------------------
def _dgcnn_fused_kernel(x_ref, w1_ref, b1_ref, w4_ref, b4_ref, o_ref, g_scr,
                        *, k_nbrs, d):
    _, n_feat, n_pts = x_ref.shape
    x = x_ref[0]                                           # (F, N) f32, points on lanes

    # ---- pairwise -||x_m - x_n||^2 with neighbor m on sublanes, center n on lanes.
    # Columns x[f, m] are derived from the row via an eye-mask + lane reduce, so no
    # host-side transpose / extra x_t input is needed.
    row_i = jax.lax.broadcasted_iota(jnp.int32, (n_pts, n_pts), 0)
    col_i = jax.lax.broadcasted_iota(jnp.int32, (n_pts, n_pts), 1)
    eye = row_i == col_i
    acc = jnp.zeros((n_pts, n_pts), jnp.float32)
    for f in range(n_feat):                                # tiny static loop (F = 3)
        xr = x[f:f + 1, :]                                 # (1, N) row: x[f, n]
        xc = jnp.sum(jnp.where(eye, xr, 0.0), axis=1, keepdims=True)   # (N, 1): x[f, m]
        diff = xc - xr
        acc = acc + diff * diff
    dist = -acc                                            # symmetric, self-distance 0

    # ---- top-k per column (center n): iterative argmax + mask.  Each round also
    # gathers all F features of the selected neighbor with ONE (F,N)@(N,N) matmul,
    # applies the clip-to-center, and writes the row into the VMEM scratch g_scr.
    row_f = row_i.astype(jnp.float32)
    big = jnp.float32(n_pts)
    for kk in range(k_nbrs):                               # static unroll (K = 20)
        col_max = jnp.max(dist, axis=0, keepdims=True)     # (1, N) sublane reduce
        is_max = dist == col_max
        cand = jnp.where(is_max, row_f, big)
        first = jnp.min(cand, axis=0, keepdims=True)       # lowest-index tie-break
        sel = row_f == first                               # (N, N) one-hot per column
        dist = jnp.where(sel, -jnp.inf, dist)              # mask selected neighbor
        # gather: feat[f, n] = x[f, argmax_m]   (all features in one contraction)
        feat = jnp.dot(x, sel.astype(jnp.float32),
                       preferred_element_type=jnp.float32)          # (F, N)
        g = jnp.where(jnp.abs(feat - x) <= d, feat, x)     # clip to center if far
        for f in range(n_feat):
            g_scr[f, kk, :] = g[f]                         # row kk of (K, N) plane f

    # ---- conv1 (+ folded bn1) + ReLU + max over the feature dims.
    # Lane-dense layout: (K, N) @ (N, 64) -> (K, 64); bias is a (1, 64) row.
    w1 = w1_ref[...]                                       # (N, 64)  BN-folded, transposed
    b1 = b1_ref[...]                                       # (1, 64)
    pointfeat = None
    for f in range(n_feat):
        z = jnp.dot(g_scr[f], w1, preferred_element_type=jnp.float32) + b1   # (K, 64)
        z = jnp.maximum(z, 0.0)
        pointfeat = z if pointfeat is None else jnp.maximum(pointfeat, z)    # max(dims)

    # ---- conv4 (+ folded bn4) + max over k (sublane reduce); bias added after the max.
    y = jnp.dot(pointfeat, w4_ref[...], preferred_element_type=jnp.float32)  # (K, 1024)
    o_ref[0] = jnp.max(y, axis=0, keepdims=True) + b4_ref[...]               # (1, 1024)


def dgcnn_forward(x, fparams, k=20, d=0.25):
    B, F, N = x.shape
    C1 = fparams["w1t"].shape[1]
    C4 = fparams["w4t"].shape[1]
    kernel = functools.partial(_dgcnn_fused_kernel, k_nbrs=k, d=float(d))
    out = pl.pallas_call(
        kernel,
        out_shape=jax.ShapeDtypeStruct((B, 1, C4), jnp.float32),
        grid=(B,),
        in_specs=[
            pl.BlockSpec((1, F, N), lambda b: (b, 0, 0)),
            pl.BlockSpec((N, C1), lambda b: (0, 0)),       # constant maps: fetched once
            pl.BlockSpec((1, C1), lambda b: (0, 0)),
            pl.BlockSpec((C1, C4), lambda b: (0, 0)),
            pl.BlockSpec((1, C4), lambda b: (0, 0)),
        ],
        out_specs=pl.BlockSpec((1, 1, C4), lambda b: (b, 0, 0)),
        scratch_shapes=[pltpu.VMEM((F, k, N), jnp.float32)],
        compiler_params=pltpu.CompilerParams(dimension_semantics=("parallel",)),
    )(x, fparams["w1t"], fparams["b1t"], fparams["w4t"], fparams["b4t"])
    return out[:, 0, :], None, None                        # (x, trans, trans_feat)


# ---------------------------------------------------------------------------
# Parameter folding (BatchNorm + conv bias -> conv weight / bias), done once outside
# the kernel.  Weights are pre-transposed so the kernel matmuls are lane-dense.
# ---------------------------------------------------------------------------
def fold_bn_params(p):
    s1 = p["bn1_g"] / jnp.sqrt(p["bn1_v"] + EPS)           # (64, 1)
    s4 = p["bn4_g"] / jnp.sqrt(p["bn4_v"] + EPS)           # (1024, 1)
    return {
        "w1t": jnp.transpose(s1 * p["w1"]),                                  # (N, 64)
        "b1t": (s1 * (p["b1"] - p["bn1_m"]) + p["bn1_b"]).reshape(1, -1),    # (1, 64)
        "w4t": jnp.transpose(s4 * p["w4"]),                                  # (64, 1024)
        "b4t": (s4 * (p["b4"] - p["bn4_m"]) + p["bn4_b"]).reshape(1, -1),    # (1, 1024)
    }


# ---------------------------------------------------------------------------
# Deterministic synthetic parameters (raw, un-folded)
# ---------------------------------------------------------------------------
def init_params(key, n_pts, c1=64, c4=1024):
    ks = jax.random.split(key, 12)
    f32 = jnp.float32
    return {
        "w1": 0.1 * jax.random.normal(ks[0], (c1, n_pts), f32),
        "b1": 0.05 * jax.random.normal(ks[1], (c1, 1), f32),
        "bn1_g": 1.0 + 0.1 * jax.random.normal(ks[2], (c1, 1), f32),
        "bn1_b": 0.1 * jax.random.normal(ks[3], (c1, 1), f32),
        "bn1_m": 0.1 * jax.random.normal(ks[4], (c1, 1), f32),
        "bn1_v": 0.5 + 0.5 * jnp.abs(jax.random.normal(ks[5], (c1, 1), f32)),
        "w4": 0.1 * jax.random.normal(ks[6], (c4, c1), f32),
        "b4": 0.05 * jax.random.normal(ks[7], (c4, 1), f32),
        "bn4_g": 1.0 + 0.1 * jax.random.normal(ks[8], (c4, 1), f32),
        "bn4_b": 0.1 * jax.random.normal(ks[9], (c4, 1), f32),
        "bn4_m": 0.1 * jax.random.normal(ks[10], (c4, 1), f32),
        "bn4_v": 0.5 + 0.5 * jnp.abs(jax.random.normal(ks[11], (c4, 1), f32)),
    }


# ---------------------------------------------------------------------------
# Pure-JAX reference (correctness check only; uses the raw, un-folded params)
# ---------------------------------------------------------------------------
def _bn_inf(y, gamma, beta, mean, var, axis):
    shape = [1] * y.ndim
    shape[axis] = -1
    return (y - mean.reshape(shape)) * gamma.reshape(shape) / jnp.sqrt(
        var.reshape(shape) + EPS) + beta.reshape(shape)


def reference_forward(x, p, k=20, d=0.25):
    B, CF, N = x.shape
    xx = jnp.sum(x * x, axis=1, keepdims=True)
    inner = -2.0 * jnp.einsum("bfi,bfj->bij", x, x)
    dist = -xx - inner - jnp.transpose(xx, (0, 2, 1))
    idx = jax.lax.top_k(dist, k)[1]
    x_t = jnp.transpose(x, (0, 2, 1))
    feat = x_t[jnp.arange(B)[:, None, None], idx]
    ctr = jnp.broadcast_to(x_t[:, :, None, :], feat.shape)
    g = jnp.where(jnp.abs(feat - ctr) <= d, feat, ctr)               # (B, N, k, CF)
    y = jnp.einsum("on,bnkf->bokf", p["w1"], g) + p["b1"][:, 0][None, :, None, None]
    y = _bn_inf(y, p["bn1_g"][:, 0], p["bn1_b"][:, 0], p["bn1_m"][:, 0], p["bn1_v"][:, 0], 1)
    y = jnp.maximum(y, 0.0)
    pf = jnp.max(y, axis=-1)                                         # (B, 64, k)
    z = jnp.einsum("oc,bck->bok", p["w4"], pf) + p["b4"][:, 0][None, :, None]
    z = _bn_inf(z, p["bn4_g"][:, 0], p["bn4_b"][:, 0], p["bn4_m"][:, 0], p["bn4_v"][:, 0], 1)
    return jnp.max(z, axis=-1)                                       # (B, 1024)


if __name__ == "__main__":
    B, CF, N = 2, 3, 24      # n_pts must be >= 20 for knn's topk(k=20)
    key = jax.random.PRNGKey(0)
    kx, kp = jax.random.split(key)
    x = jax.random.normal(kx, (B, CF, N), dtype=jnp.float32)
    params = init_params(kp, n_pts=N)
    fparams = fold_bn_params(params)     # BN folded into (pre-transposed) conv weights

    fwd = jax.jit(functools.partial(dgcnn_forward, k=20, d=0.25))
    out, trans, trans_feat = fwd(x, fparams)
    out = jax.block_until_ready(out)

    assert out.shape == (B, 1024), out.shape
    assert trans is None and trans_feat is None

    ref = reference_forward(x, params)
    err = float(jnp.max(jnp.abs(out - ref)))
    assert err < 1e-3, f"max abs err {err}"   # tightened: all-f32 path

    print("KERNEL_OK")
</pallas_src>

<mosaic_0001>
module attributes {stable_mosaic.version = 11 : i64} {
  func.func @_dgcnn_fused_kernel(%arg0: i32, %arg1: memref<1x3x24xf32, #tpu.memory_space<vmem>>, %arg2: memref<24x64xf32, #tpu.memory_space<vmem>>, %arg3: memref<1x64xf32, #tpu.memory_space<vmem>>, %arg4: memref<64x1024xf32, #tpu.memory_space<vmem>>, %arg5: memref<1x1024xf32, #tpu.memory_space<vmem>>, %arg6: memref<1x1x1024xf32, #tpu.memory_space<vmem>>, %arg7: memref<3x20x24xf32, #tpu.memory_space<vmem>>) attributes {dimension_semantics = [#tpu.dimension_semantics<parallel>], iteration_bounds = array<i64: 2>, scalar_prefetch = 0 : i64, scratch_operands = 1 : i64, tpu.core_type = #tpu.core_type<tc>, window_params = [{transform_indices = @transform_0, window_bounds = array<i64: 1, 3, 24>}, {pipeline_mode = #tpu.pipeline_mode<synchronous>, transform_indices = @transform_1, window_bounds = array<i64: 24, 64>}, {pipeline_mode = #tpu.pipeline_mode<synchronous>, transform_indices = @transform_2, window_bounds = array<i64: 1, 64>}, {pipeline_mode = #tpu.pipeline_mode<synchronous>, transform_indices = @transform_3, window_bounds = array<i64: 64, 1024>}, {pipeline_mode = #tpu.pipeline_mode<synchronous>, transform_indices = @transform_4, window_bounds = array<i64: 1, 1024>}, {transform_indices = @transform_5, window_bounds = array<i64: 1, 1, 1024>}]} {
    %c0 = arith.constant 0 : index
    %c0_0 = arith.constant 0 : index
    %c0_1 = arith.constant 0 : index
    %0 = vector.load %arg1[%c0, %c0_0, %c0_1] : memref<1x3x24xf32, #tpu.memory_space<vmem>>, vector<1x3x24xf32>
    %1 = vector.shape_cast %0 : vector<1x3x24xf32> to vector<3x24xf32>
    %2 = tpu.iota {dimensions = array<i32: 0>} : vector<24x24xi32>
    %3 = tpu.iota {dimensions = array<i32: 1>} : vector<24x24xi32>
    %4 = arith.cmpi eq, %2, %3 : vector<24x24xi32>
    %cst = arith.constant 0.000000e+00 : f32
    %5 = vector.broadcast %cst : f32 to vector<24x24xf32>
    %6 = vector.extract_strided_slice %1 {offsets = [0, 0], sizes = [1, 24], strides = [1, 1]} : vector<3x24xf32> to vector<1x24xf32>
    %cst_2 = arith.constant 0.000000e+00 : f32
    %7 = vector.shape_cast %6 : vector<1x24xf32> to vector<1x24xf32>
    %8 = vector.broadcast %7 : vector<1x24xf32> to vector<24x24xf32>
    %9 = vector.broadcast %cst_2 : f32 to vector<24x24xf32>
    %10 = arith.select %4, %8, %9 : vector<24x24xi1>, vector<24x24xf32>
    %cst_3 = arith.constant dense<0.000000e+00> : vector<24xf32>
    %11 = vector.multi_reduction <add>, %10, %cst_3 [1] : vector<24x24xf32> to vector<24xf32>
    %12 = vector.shape_cast %11 : vector<24xf32> to vector<24x1xf32>
    %13 = vector.broadcast %12 : vector<24x1xf32> to vector<24x24xf32>
    %14 = vector.broadcast %6 : vector<1x24xf32> to vector<24x24xf32>
    %15 = arith.subf %13, %14 : vector<24x24xf32>
    %16 = arith.mulf %15, %15 : vector<24x24xf32>
    %17 = arith.addf %5, %16 : vector<24x24xf32>
    %18 = vector.extract_strided_slice %1 {offsets = [1, 0], sizes = [1, 24], strides = [1, 1]} : vector<3x24xf32> to vector<1x24xf32>
    %cst_4 = arith.constant 0.000000e+00 : f32
    %19 = vector.shape_cast %18 : vector<1x24xf32> to vector<1x24xf32>
    %20 = vector.broadcast %19 : vector<1x24xf32> to vector<24x24xf32>
    %21 = vector.broadcast %cst_4 : f32 to vector<24x24xf32>
    %22 = arith.select %4, %20, %21 : vector<24x24xi1>, vector<24x24xf32>
    %cst_5 = arith.constant dense<0.000000e+00> : vector<24xf32>
    %23 = vector.multi_reduction <add>, %22, %cst_5 [1] : vector<24x24xf32> to vector<24xf32>
    %24 = vector.shape_cast %23 : vector<24xf32> to vector<24x1xf32>
    %25 = vector.broadcast %24 : vector<24x1xf32> to vector<24x24xf32>
    %26 = vector.broadcast %18 : vector<1x24xf32> to vector<24x24xf32>
    %27 = arith.subf %25, %26 : vector<24x24xf32>
    %28 = arith.mulf %27, %27 : vector<24x24xf32>
    %29 = arith.addf %17, %28 : vector<24x24xf32>
    %30 = vector.extract_strided_slice %1 {offsets = [2, 0], sizes = [1, 24], strides = [1, 1]} : vector<3x24xf32> to vector<1x24xf32>
    %cst_6 = arith.constant 0.000000e+00 : f32
    %31 = vector.shape_cast %30 : vector<1x24xf32> to vector<1x24xf32>
    %32 = vector.broadcast %31 : vector<1x24xf32> to vector<24x24xf32>
    %33 = vector.broadcast %cst_6 : f32 to vector<24x24xf32>
    %34 = arith.select %4, %32, %33 : vector<24x24xi1>, vector<24x24xf32>
    %cst_7 = arith.constant dense<0.000000e+00> : vector<24xf32>
    %35 = vector.multi_reduction <add>, %34, %cst_7 [1] : vector<24x24xf32> to vector<24xf32>
    %36 = vector.shape_cast %35 : vector<24xf32> to vector<24x1xf32>
    %37 = vector.broadcast %36 : vector<24x1xf32> to vector<24x24xf32>
    %38 = vector.broadcast %30 : vector<1x24xf32> to vector<24x24xf32>
    %39 = arith.subf %37, %38 : vector<24x24xf32>
    %40 = arith.mulf %39, %39 : vector<24x24xf32>
    %41 = arith.addf %29, %40 : vector<24x24xf32>
    %cst_8 = arith.constant 0.000000e+00 : f32
    %42 = vector.broadcast %cst_8 : f32 to vector<24x24xf32>
    %43 = arith.subf %42, %41 : vector<24x24xf32>
    %44 = arith.sitofp %2 : vector<24x24xi32> to vector<24x24xf32>
    %cst_9 = arith.constant dense<0xFF800000> : vector<24xf32>
    %45 = vector.multi_reduction <maximumf>, %43, %cst_9 [0] : vector<24x24xf32> to vector<24xf32>
    %46 = vector.shape_cast %45 : vector<24xf32> to vector<1x24xf32>
    %47 = vector.broadcast %46 : vector<1x24xf32> to vector<24x24xf32>
    %48 = arith.cmpf oeq, %43, %47 : vector<24x24xf32>
    %cst_10 = arith.constant 2.400000e+01 : f32
    %49 = vector.broadcast %cst_10 : f32 to vector<24x24xf32>
    %50 = arith.select %48, %44, %49 : vector<24x24xi1>, vector<24x24xf32>
    %cst_11 = arith.constant dense<0x7F800000> : vector<24xf32>
    %51 = vector.multi_reduction <minimumf>, %50, %cst_11 [0] : vector<24x24xf32> to vector<24xf32>
    %52 = vector.shape_cast %51 : vector<24xf32> to vector<1x24xf32>
    %53 = vector.broadcast %52 : vector<1x24xf32> to vector<24x24xf32>
    %54 = arith.cmpf oeq, %44, %53 : vector<24x24xf32>
    %cst_12 = arith.constant 0xFF800000 : f32
    %55 = vector.broadcast %cst_12 : f32 to vector<24x24xf32>
    %56 = arith.select %54, %55, %43 : vector<24x24xi1>, vector<24x24xf32>
    %57 = arith.extui %54 : vector<24x24xi1> to vector<24x24xi32>
    %58 = arith.sitofp %57 : vector<24x24xi32> to vector<24x24xf32>
    %cst_13 = arith.constant dense<0.000000e+00> : vector<3x24xf32>
    %59 = tpu.matmul %1, %58, %cst_13 {dimension_numbers = #tpu.dot_dimension_numbers<[1], [0], [0], [1], [0, 0, 1, 1], [], []>} : vector<3x24xf32>, vector<24x24xf32>, vector<3x24xf32> -> vector<3x24xf32>
    %60 = arith.subf %59, %1 : vector<3x24xf32>
    %61 = math.absf %60 : vector<3x24xf32>
    %cst_14 = arith.constant 2.500000e-01 : f32
    %62 = vector.broadcast %cst_14 : f32 to vector<3x24xf32>
    %63 = arith.cmpf ole, %61, %62 : vector<3x24xf32>
    %64 = arith.select %63, %59, %1 : vector<3x24xi1>, vector<3x24xf32>
    %65 = vector.extract_strided_slice %64 {offsets = [0, 0], sizes = [1, 24], strides = [1, 1]} : vector<3x24xf32> to vector<1x24xf32>
    %66 = vector.shape_cast %65 : vector<1x24xf32> to vector<24xf32>
    %c0_15 = arith.constant 0 : index
    %c0_16 = arith.constant 0 : index
    %c0_17 = arith.constant 0 : index
    %67 = vector.load %arg7[%c0_15, %c0_16, %c0_17] : memref<3x20x24xf32, #tpu.memory_space<vmem>>, vector<1x1x24xf32>
    %68 = vector.shape_cast %67 : vector<1x1x24xf32> to vector<24xf32>
    %69 = vector.shape_cast %66 : vector<24xf32> to vector<1x1x24xf32>
    tpu.vector_store %arg7[%c0_15, %c0_16, %c0_17], %69 {strides = array<i32>} : memref<3x20x24xf32, #tpu.memory_space<vmem>>, vector<1x1x24xf32>,
    %70 = vector.extract_strided_slice %64 {offsets = [1, 0], sizes = [1, 24], strides = [1, 1]} : vector<3x24xf32> to vector<1x24xf32>
    %71 = vector.shape_cast %70 : vector<1x24xf32> to vector<24xf32>
    %c1 = arith.constant 1 : index
    %c0_18 = arith.constant 0 : index
    %c0_19 = arith.constant 0 : index
    %72 = vector.load %arg7[%c1, %c0_18, %c0_19] : memref<3x20x24xf32, #tpu.memory_space<vmem>>, vector<1x1x24xf32>
    %73 = vector.shape_cast %72 : vector<1x1x24xf32> to vector<24xf32>
    %74 = vector.shape_cast %71 : vector<24xf32> to vector<1x1x24xf32>
    tpu.vector_store %arg7[%c1, %c0_18, %c0_19], %74 {strides = array<i32>} : memref<3x20x24xf32, #tpu.memory_space<vmem>>, vector<1x1x24xf32>,
    %75 = vector.extract_strided_slice %64 {offsets = [2, 0], sizes = [1, 24], strides = [1, 1]} : vector<3x24xf32> to vector<1x24xf32>
    %76 = vector.shape_cast %75 : vector<1x24xf32> to vector<24xf32>
    %c2 = arith.constant 2 : index
    %c0_20 = arith.constant 0 : index
    %c0_21 = arith.constant 0 : index
    %77 = vector.load %arg7[%c2, %c0_20, %c0_21] : memref<3x20x24xf32, #tpu.memory_space<vmem>>, vector<1x1x24xf32>
    %78 = vector.shape_cast %77 : vector<1x1x24xf32> to vector<24xf32>
    %79 = vector.shape_cast %76 : vector<24xf32> to vector<1x1x24xf32>
    tpu.vector_store %arg7[%c2, %c0_20, %c0_21], %79 {strides = array<i32>} : memref<3x20x24xf32, #tpu.memory_space<vmem>>, vector<1x1x24xf32>,
    %cst_22 = arith.constant dense<0xFF800000> : vector<24xf32>
    %80 = vector.multi_reduction <maximumf>, %56, %cst_22 [0] : vector<24x24xf32> to vector<24xf32>
    %81 = vector.shape_cast %80 : vector<24xf32> to vector<1x24xf32>
    %82 = vector.broadcast %81 : vector<1x24xf32> to vector<24x24xf32>
    %83 = arith.cmpf oeq, %56, %82 : vector<24x24xf32>
    %cst_23 = arith.constant 2.400000e+01 : f32
    %84 = vector.broadcast %cst_23 : f32 to vector<24x24xf32>
    %85 = arith.select %83, %44, %84 : vector<24x24xi1>, vector<24x24xf32>
    %cst_24 = arith.constant dense<0x7F800000> : vector<24xf32>
    %86 = vector.multi_reduction <minimumf>, %85, %cst_24 [0] : vector<24x24xf32> to vector<24xf32>
    %87 = vector.shape_cast %86 : vector<24xf32> to vector<1x24xf32>
    %88 = vector.broadcast %87 : vector<1x24xf32> to vector<24x24xf32>
    %89 = arith.cmpf oeq, %44, %88 : vector<24x24xf32>
    %cst_25 = arith.constant 0xFF800000 : f32
    %90 = vector.broadcast %cst_25 : f32 to vector<24x24xf32>
    %91 = arith.select %89, %90, %56 : vector<24x24xi1>, vector<24x24xf32>
    %92 = arith.extui %89 : vector<24x24xi1> to vector<24x24xi32>
    %93 = arith.sitofp %92 : vector<24x24xi32> to vector<24x24xf32>
    %cst_26 = arith.constant dense<0.000000e+00> : vector<3x24xf32>
    %94 = tpu.matmul %1, %93, %cst_26 {dimension_numbers = #tpu.dot_dimension_numbers<[1], [0], [0], [1], [0, 0, 1, 1], [], []>} : vector<3x24xf32>, vector<24x24xf32>, vector<3x24xf32> -> vector<3x24xf32>
    %95 = arith.subf %94, %1 : vector<3x24xf32>
    %96 = math.absf %95 : vector<3x24xf32>
    %cst_27 = arith.constant 2.500000e-01 : f32
    %97 = vector.broadcast %cst_27 : f32 to vector<3x24xf32>
    %98 = arith.cmpf ole, %96, %97 : vector<3x24xf32>
    %99 = arith.select %98, %94, %1 : vector<3x24xi1>, vector<3x24xf32>
    %100 = vector.extract_strided_slice %99 {offsets = [0, 0], sizes = [1, 24], strides = [1, 1]} : vector<3x24xf32> to vector<1x24xf32>
    %101 = vector.shape_cast %100 : vector<1x24xf32> to vector<24xf32>
    %c0_28 = arith.constant 0 : index
    %c1_29 = arith.constant 1 : index
    %c0_30 = arith.constant 0 : index
    %102 = vector.load %arg7[%c0_28, %c1_29, %c0_30] : memref<3x20x24xf32, #tpu.memory_space<vmem>>, vector<1x1x24xf32>
    %103 = vector.shape_cast %102 : vector<1x1x24xf32> to vector<24xf32>
    %104 = vector.shape_cast %101 : vector<24xf32> to vector<1x1x24xf32>
    tpu.vector_store %arg7[%c0_28, %c1_29, %c0_30], %104 {strides = array<i32>} : memref<3x20x24xf32, #tpu.memory_space<vmem>>, vector<1x1x24xf32>,
    %105 = vector.extract_strided_slice %99 {offsets = [1, 0], sizes = [1, 24], strides = [1, 1]} : vector<3x24xf32> to vector<1x24xf32>
    %106 = vector.shape_cast %105 : vector<1x24xf32> to vector<24xf32>
    %c1_31 = arith.constant 1 : index
    %c1_32 = arith.constant 1 : index
    %c0_33 = arith.constant 0 : index
    %107 = vector.load %arg7[%c1_31, %c1_32, %c0_33] : memref<3x20x24xf32, #tpu.memory_space<vmem>>, vector<1x1x24xf32>
    %108 = vector.shape_cast %107 : vector<1x1x24xf32> to vector<24xf32>
    %109 = vector.shape_cast %106 : vector<24xf32> to vector<1x1x24xf32>
    tpu.vector_store %arg7[%c1_31, %c1_32, %c0_33], %109 {strides = array<i32>} : memref<3x20x24xf32, #tpu.memory_space<vmem>>, vector<1x1x24xf32>,
    %110 = vector.extract_strided_slice %99 {offsets = [2, 0], sizes = [1, 24], strides = [1, 1]} : vector<3x24xf32> to vector<1x24xf32>
    %111 = vector.shape_cast %110 : vector<1x24xf32> to vector<24xf32>
    %c2_34 = arith.constant 2 : index
    %c1_35 = arith.constant 1 : index
    %c0_36 = arith.constant 0 : index
    %112 = vector.load %arg7[%c2_34, %c1_35, %c0_36] : memref<3x20x24xf32, #tpu.memory_space<vmem>>, vector<1x1x24xf32>
    %113 = vector.shape_cast %112 : vector<1x1x24xf32> to vector<24xf32>
    %114 = vector.shape_cast %111 : vector<24xf32> to vector<1x1x24xf32>
    tpu.vector_store %arg7[%c2_34, %c1_35, %c0_36], %114 {strides = array<i32>} : memref<3x20x24xf32, #tpu.memory_space<vmem>>, vector<1x1x24xf32>,
    %cst_37 = arith.constant dense<0xFF800000> : vector<24xf32>
    %115 = vector.multi_reduction <maximumf>, %91, %cst_37 [0] : vector<24x24xf32> to vector<24xf32>
    %116 = vector.shape_cast %115 : vector<24xf32> to vector<1x24xf32>
    %117 = vector.broadcast %116 : vector<1x24xf32> to vector<24x24xf32>
    %118 = arith.cmpf oeq, %91, %117 : vector<24x24xf32>
    %cst_38 = arith.constant 2.400000e+01 : f32
    %119 = vector.broadcast %cst_38 : f32 to vector<24x24xf32>
    %120 = arith.select %118, %44, %119 : vector<24x24xi1>, vector<24x24xf32>
    %cst_39 = arith.constant dense<0x7F800000> : vector<24xf32>
    %121 = vector.multi_reduction <minimumf>, %120, %cst_39 [0] : vector<24x24xf32> to vector<24xf32>
    %122 = vector.shape_cast %121 : vector<24xf32> to vector<1x24xf32>
    %123 = vector.broadcast %122 : vector<1x24xf32> to vector<24x24xf32>
    %124 = arith.cmpf oeq, %44, %123 : vector<24x24xf32>
    %cst_40 = arith.constant 0xFF800000 : f32
    %125 = vector.broadcast %cst_40 : f32 to vector<24x24xf32>
    %126 = arith.select %124, %125, %91 : vector<24x24xi1>, vector<24x24xf32>
    %127 = arith.extui %124 : vector<24x24xi1> to vector<24x24xi32>
    %128 = arith.sitofp %127 : vector<24x24xi32> to vector<24x24xf32>
    %cst_41 = arith.constant dense<0.000000e+00> : vector<3x24xf32>
    %129 = tpu.matmul %1, %128, %cst_41 {dimension_numbers = #tpu.dot_dimension_numbers<[1], [0], [0], [1], [0, 0, 1, 1], [], []>} : vector<3x24xf32>, vector<24x24xf32>, vector<3x24xf32> -> vector<3x24xf32>
    %130 = arith.subf %129, %1 : vector<3x24xf32>
    %131 = math.absf %130 : vector<3x24xf32>
    %cst_42 = arith.constant 2.500000e-01 : f32
    %132 = vector.broadcast %cst_42 : f32 to vector<3x24xf32>
    %133 = arith.cmpf ole, %131, %132 : vector<3x24xf32>
    %134 = arith.select %133, %129, %1 : vector<3x24xi1>, vector<3x24xf32>
    %135 = vector.extract_strided_slice %134 {offsets = [0, 0], sizes = [1, 24], strides = [1, 1]} : vector<3x24xf32> to vector<1x24xf32>
    %136 = vector.shape_cast %135 : vector<1x24xf32> to vector<24xf32>
    %c0_43 = arith.constant 0 : index
    %c2_44 = arith.constant 2 : index
    %c0_45 = arith.constant 0 : index
    %137 = vector.load %arg7[%c0_43, %c2_44, %c0_45] : memref<3x20x24xf32, #tpu.memory_space<vmem>>, vector<1x1x24xf32>
    %138 = vector.shape_cast %137 : vector<1x1x24xf32> to vector<24xf32>
    %139 = vector.shape_cast %136 : vector<24xf32> to vector<1x1x24xf32>
    tpu.vector_store %arg7[%c0_43, %c2_44, %c0_45], %139 {strides = array<i32>} : memref<3x20x24xf32, #tpu.memory_space<vmem>>, vector<1x1x24xf32>,
    %140 = vector.extract_strided_slice %134 {offsets = [1, 0], sizes = [1, 24], strides = [1, 1]} : vector<3x24xf32> to vector<1x24xf32>
    %141 = vector.shape_cast %140 : vector<1x24xf32> to vector<24xf32>
    %c1_46 = arith.constant 1 : index
    %c2_47 = arith.constant 2 : index
    %c0_48 = arith.constant 0 : index
    %142 = vector.load %arg7[%c1_46, %c2_47, %c0_48] : memref<3x20x24xf32, #tpu.memory_space<vmem>>, vector<1x1x24xf32>
    %143 = vector.shape_cast %142 : vector<1x1x24xf32> to vector<24xf32>
    %144 = vector.shape_cast %141 : vector<24xf32> to vector<1x1x24xf32>
    tpu.vector_store %arg7[%c1_46, %c2_47, %c0_48], %144 {strides = array<i32>} : memref<3x20x24xf32, #tpu.memory_space<vmem>>, vector<1x1x24xf32>,
    %145 = vector.extract_strided_slice %134 {offsets = [2, 0], sizes = [1, 24], strides = [1, 1]} : vector<3x24xf32> to vector<1x24xf32>
    %146 = vector.shape_cast %145 : vector<1x24xf32> to vector<24xf32>
    %c2_49 = arith.constant 2 : index
    %c2_50 = arith.constant 2 : index
    %c0_51 = arith.constant 0 : index
    %147 = vector.load %arg7[%c2_49, %c2_50, %c0_51] : memref<3x20x24xf32, #tpu.memory_space<vmem>>, vector<1x1x24xf32>
    %148 = vector.shape_cast %147 : vector<1x1x24xf32> to vector<24xf32>
    %149 = vector.shape_cast %146 : vector<24xf32> to vector<1x1x24xf32>
    tpu.vector_store %arg7[%c2_49, %c2_50, %c0_51], %149 {strides = array<i32>} : memref<3x20x24xf32, #tpu.memory_space<vmem>>, vector<1x1x24xf32>,
    %cst_52 = arith.constant dense<0xFF800000> : vector<24xf32>
    %150 = vector.multi_reduction <maximumf>, %126, %cst_52 [0] : vector<24x24xf32> to vector<24xf32>
    %151 = vector.shape_cast %150 : vector<24xf32> to vector<1x24xf32>
    %152 = vector.broadcast %151 : vector<1x24xf32> to vector<24x24xf32>
    %153 = arith.cmpf oeq, %126, %152 : vector<24x24xf32>
    %cst_53 = arith.constant 2.400000e+01 : f32
    %154 = vector.broadcast %cst_53 : f32 to vector<24x24xf32>
    %155 = arith.select %153, %44, %154 : vector<24x24xi1>, vector<24x24xf32>
    %cst_54 = arith.constant dense<0x7F800000> : vector<24xf32>
    %156 = vector.multi_reduction <minimumf>, %155, %cst_54 [0] : vector<24x24xf32> to vector<24xf32>
    %157 = vector.shape_cast %156 : vector<24xf32> to vector<1x24xf32>
    %158 = vector.broadcast %157 : vector<1x24xf32> to vector<24x24xf32>
    %159 = arith.cmpf oeq, %44, %158 : vector<24x24xf32>
    %cst_55 = arith.constant 0xFF800000 : f32
    %160 = vector.broadcast %cst_55 : f32 to vector<24x24xf32>
    %161 = arith.select %159, %160, %126 : vector<24x24xi1>, vector<24x24xf32>
    %162 = arith.extui %159 : vector<24x24xi1> to vector<24x24xi32>
    %163 = arith.sitofp %162 : vector<24x24xi32> to vector<24x24xf32>
    %cst_56 = arith.constant dense<0.000000e+00> : vector<3x24xf32>
    %164 = tpu.matmul %1, %163, %cst_56 {dimension_numbers = #tpu.dot_dimension_numbers<[1], [0], [0], [1], [0, 0, 1, 1], [], []>} : vector<3x24xf32>, vector<24x24xf32>, vector<3x24xf32> -> vector<3x24xf32>
    %165 = arith.subf %164, %1 : vector<3x24xf32>
    %166 = math.absf %165 : vector<3x24xf32>
    %cst_57 = arith.constant 2.500000e-01 : f32
    %167 = vector.broadcast %cst_57 : f32 to vector<3x24xf32>
    %168 = arith.cmpf ole, %166, %167 : vector<3x24xf32>
    %169 = arith.select %168, %164, %1 : vector<3x24xi1>, vector<3x24xf32>
    %170 = vector.extract_strided_slice %169 {offsets = [0, 0], sizes = [1, 24], strides = [1, 1]} : vector<3x24xf32> to vector<1x24xf32>
    %171 = vector.shape_cast %170 : vector<1x24xf32> to vector<24xf32>
    %c0_58 = arith.constant 0 : index
    %c3 = arith.constant 3 : index
    %c0_59 = arith.constant 0 : index
    %172 = vector.load %arg7[%c0_58, %c3, %c0_59] : memref<3x20x24xf32, #tpu.memory_space<vmem>>, vector<1x1x24xf32>
    %173 = vector.shape_cast %172 : vector<1x1x24xf32> to vector<24xf32>
    %174 = vector.shape_cast %171 : vector<24xf32> to vector<1x1x24xf32>
    tpu.vector_store %arg7[%c0_58, %c3, %c0_59], %174 {strides = array<i32>} : memref<3x20x24xf32, #tpu.memory_space<vmem>>, vector<1x1x24xf32>,
    %175 = vector.extract_strided_slice %169 {offsets = [1, 0], sizes = [1, 24], strides = [1, 1]} : vector<3x24xf32> to vector<1x24xf32>
    %176 = vector.shape_cast %175 : vector<1x24xf32> to vector<24xf32>
    %c1_60 = arith.constant 1 : index
    %c3_61 = arith.constant 3 : index
    %c0_62 = arith.constant 0 : index
    %177 = vector.load %arg7[%c1_60, %c3_61, %c0_62] : memref<3x20x24xf32, #tpu.memory_space<vmem>>, vector<1x1x24xf32>
    %178 = vector.shape_cast %177 : vector<1x1x24xf32> to vector<24xf32>
    %179 = vector.shape_cast %176 : vector<24xf32> to vector<1x1x24xf32>
    tpu.vector_store %arg7[%c1_60, %c3_61, %c0_62], %179 {strides = array<i32>} : memref<3x20x24xf32, #tpu.memory_space<vmem>>, vector<1x1x24xf32>,
    %180 = vector.extract_strided_slice %169 {offsets = [2, 0], sizes = [1, 24], strides = [1, 1]} : vector<3x24xf32> to vector<1x24xf32>
    %181 = vector.shape_cast %180 : vector<1x24xf32> to vector<24xf32>
    %c2_63 = arith.constant 2 : index
    %c3_64 = arith.constant 3 : index
    %c0_65 = arith.constant 0 : index
    %182 = vector.load %arg7[%c2_63, %c3_64, %c0_65] : memref<3x20x24xf32, #tpu.memory_space<vmem>>, vector<1x1x24xf32>
    %183 = vector.shape_cast %182 : vector<1x1x24xf32> to vector<24xf32>
    %184 = vector.shape_cast %181 : vector<24xf32> to vector<1x1x24xf32>
    tpu.vector_store %arg7[%c2_63, %c3_64, %c0_65], %184 {strides = array<i32>} : memref<3x20x24xf32, #tpu.memory_space<vmem>>, vector<1x1x24xf32>,
    %cst_66 = arith.constant dense<0xFF800000> : vector<24xf32>
    %185 = vector.multi_reduction <maximumf>, %161, %cst_66 [0] : vector<24x24xf32> to vector<24xf32>
    %186 = vector.shape_cast %185 : vector<24xf32> to vector<1x24xf32>
    %187 = vector.broadcast %186 : vector<1x24xf32> to vector<24x24xf32>
    %188 = arith.cmpf oeq, %161, %187 : vector<24x24xf32>
    %cst_67 = arith.constant 2.400000e+01 : f32
    %189 = vector.broadcast %cst_67 : f32 to vector<24x24xf32>
    %190 = arith.select %188, %44, %189 : vector<24x24xi1>, vector<24x24xf32>
    %cst_68 = arith.constant dense<0x7F800000> : vector<24xf32>
    %191 = vector.multi_reduction <minimumf>, %190, %cst_68 [0] : vector<24x24xf32> to vector<24xf32>
    %192 = vector.shape_cast %191 : vector<24xf32> to vector<1x24xf32>
    %193 = vector.broadcast %192 : vector<1x24xf32> to vector<24x24xf32>
    %194 = arith.cmpf oeq, %44, %193 : vector<24x24xf32>
    %cst_69 = arith.constant 0xFF800000 : f32
    %195 = vector.broadcast %cst_69 : f32 to vector<24x24xf32>
    %196 = arith.select %194, %195, %161 : vector<24x24xi1>, vector<24x24xf32>
    %197 = arith.extui %194 : vector<24x24xi1> to vector<24x24xi32>
    %198 = arith.sitofp %197 : vector<24x24xi32> to vector<24x24xf32>
    %cst_70 = arith.constant dense<0.000000e+00> : vector<3x24xf32>
    %199 = tpu.matmul %1, %198, %cst_70 {dimension_numbers = #tpu.dot_dimension_numbers<[1], [0], [0], [1], [0, 0, 1, 1], [], []>} : vector<3x24xf32>, vector<24x24xf32>, vector<3x24xf32> -> vector<3x24xf32>
    %200 = arith.subf %199, %1 : vector<3x24xf32>
    %201 = math.absf %200 : vector<3x24xf32>
    %cst_71 = arith.constant 2.500000e-01 : f32
    %202 = vector.broadcast %cst_71 : f32 to vector<3x24xf32>
    %203 = arith.cmpf ole, %201, %202 : vector<3x24xf32>
    %204 = arith.select %203, %199, %1 : vector<3x24xi1>, vector<3x24xf32>
    %205 = vector.extract_strided_slice %204 {offsets = [0, 0], sizes = [1, 24], strides = [1, 1]} : vector<3x24xf32> to vector<1x24xf32>
    %206 = vector.shape_cast %205 : vector<1x24xf32> to vector<24xf32>
    %c0_72 = arith.constant 0 : index
    %c4 = arith.constant 4 : index
    %c0_73 = arith.constant 0 : index
    %207 = vector.load %arg7[%c0_72, %c4, %c0_73] : memref<3x20x24xf32, #tpu.memory_space<vmem>>, vector<1x1x24xf32>
    %208 = vector.shape_cast %207 : vector<1x1x24xf32> to vector<24xf32>
    %209 = vector.shape_cast %206 : vector<24xf32> to vector<1x1x24xf32>
    tpu.vector_store %arg7[%c0_72, %c4, %c0_73], %209 {strides = array<i32>} : memref<3x20x24xf32, #tpu.memory_space<vmem>>, vector<1x1x24xf32>,
    %210 = vector.extract_strided_slice %204 {offsets = [1, 0], sizes = [1, 24], strides = [1, 1]} : vector<3x24xf32> to vector<1x24xf32>
    %211 = vector.shape_cast %210 : vector<1x24xf32> to vector<24xf32>
    %c1_74 = arith.constant 1 : index
    %c4_75 = arith.constant 4 : index
    %c0_76 = arith.constant 0 : index
    %212 = vector.load %arg7[%c1_74, %c4_75, %c0_76] : memref<3x20x24xf32, #tpu.memory_space<vmem>>, vector<1x1x24xf32>
    %213 = vector.shape_cast %212 : vector<1x1x24xf32> to vector<24xf32>
    %214 = vector.shape_cast %211 : vector<24xf32> to vector<1x1x24xf32>
    tpu.vector_store %arg7[%c1_74, %c4_75, %c0_76], %214 {strides = array<i32>} : memref<3x20x24xf32, #tpu.memory_space<vmem>>, vector<1x1x24xf32>,
    %215 = vector.extract_strided_slice %204 {offsets = [2, 0], sizes = [1, 24], strides = [1, 1]} : vector<3x24xf32> to vector<1x24xf32>
    %216 = vector.shape_cast %215 : vector<1x24xf32> to vector<24xf32>
    %c2_77 = arith.constant 2 : index
    %c4_78 = arith.constant 4 : index
    %c0_79 = arith.constant 0 : index
    %217 = vector.load %arg7[%c2_77, %c4_78, %c0_79] : memref<3x20x24xf32, #tpu.memory_space<vmem>>, vector<1x1x24xf32>
    %218 = vector.shape_cast %217 : vector<1x1x24xf32> to vector<24xf32>
    %219 = vector.shape_cast %216 : vector<24xf32> to vector<1x1x24xf32>
    tpu.vector_store %arg7[%c2_77, %c4_78, %c0_79], %219 {strides = array<i32>} : memref<3x20x24xf32, #tpu.memory_space<vmem>>, vector<1x1x24xf32>,
    %cst_80 = arith.constant dense<0xFF800000> : vector<24xf32>
    %220 = vector.multi_reduction <maximumf>, %196, %cst_80 [0] : vector<24x24xf32> to vector<24xf32>
    %221 = vector.shape_cast %220 : vector<24xf32> to vector<1x24xf32>
    %222 = vector.broadcast %221 : vector<1x24xf32> to vector<24x24xf32>
    %223 = arith.cmpf oeq, %196, %222 : vector<24x24xf32>
    %cst_81 = arith.constant 2.400000e+01 : f32
    %224 = vector.broadcast %cst_81 : f32 to vector<24x24xf32>
    %225 = arith.select %223, %44, %224 : vector<24x24xi1>, vector<24x24xf32>
    %cst_82 = arith.constant dense<0x7F800000> : vector<24xf32>
    %226 = vector.multi_reduction <minimumf>, %225, %cst_82 [0] : vector<24x24xf32> to vector<24xf32>
    %227 = vector.shape_cast %226 : vector<24xf32> to vector<1x24xf32>
    %228 = vector.broadcast %227 : vector<1x24xf32> to vector<24x24xf32>
    %229 = arith.cmpf oeq, %44, %228 : vector<24x24xf32>
    %cst_83 = arith.constant 0xFF800000 : f32
    %230 = vector.broadcast %cst_83 : f32 to vector<24x24xf32>
    %231 = arith.select %229, %230, %196 : vector<24x24xi1>, vector<24x24xf32>
    %232 = arith.extui %229 : vector<24x24xi1> to vector<24x24xi32>
    %233 = arith.sitofp %232 : vector<24x24xi32> to vector<24x24xf32>
    %cst_84 = arith.constant dense<0.000000e+00> : vector<3x24xf32>
    %234 = tpu.matmul %1, %233, %cst_84 {dimension_numbers = #tpu.dot_dimension_numbers<[1], [0], [0], [1], [0, 0, 1, 1], [], []>} : vector<3x24xf32>, vector<24x24xf32>, vector<3x24xf32> -> vector<3x24xf32>
    %235 = arith.subf %234, %1 : vector<3x24xf32>
    %236 = math.absf %235 : vector<3x24xf32>
    %cst_85 = arith.constant 2.500000e-01 : f32
    %237 = vector.broadcast %cst_85 : f32 to vector<3x24xf32>
    %238 = arith.cmpf ole, %236, %237 : vector<3x24xf32>
    %239 = arith.select %238, %234, %1 : vector<3x24xi1>, vector<3x24xf32>
    %240 = vector.extract_strided_slice %239 {offsets = [0, 0], sizes = [1, 24], strides = [1, 1]} : vector<3x24xf32> to vector<1x24xf32>
    %241 = vector.shape_cast %240 : vector<1x24xf32> to vector<24xf32>
    %c0_86 = arith.constant 0 : index
    %c5 = arith.constant 5 : index
    %c0_87 = arith.constant 0 : index
    %242 = vector.load %arg7[%c0_86, %c5, %c0_87] : memref<3x20x24xf32, #tpu.memory_space<vmem>>, vector<1x1x24xf32>
    %243 = vector.shape_cast %242 : vector<1x1x24xf32> to vector<24xf32>
    %244 = vector.shape_cast %241 : vector<24xf32> to vector<1x1x24xf32>
    tpu.vector_store %arg7[%c0_86, %c5, %c0_87], %244 {strides = array<i32>} : memref<3x20x24xf32, #tpu.memory_space<vmem>>, vector<1x1x24xf32>,
    %245 = vector.extract_strided_slice %239 {offsets = [1, 0], sizes = [1, 24], strides = [1, 1]} : vector<3x24xf32> to vector<1x24xf32>
    %246 = vector.shape_cast %245 : vector<1x24xf32> to vector<24xf32>
    %c1_88 = arith.constant 1 : index
    %c5_89 = arith.constant 5 : index
    %c0_90 = arith.constant 0 : index
    %247 = vector.load %arg7[%c1_88, %c5_89, %c0_90] : memref<3x20x24xf32, #tpu.memory_space<vmem>>, vector<1x1x24xf32>
    %248 = vector.shape_cast %247 : vector<1x1x24xf32> to vector<24xf32>
    %249 = vector.shape_cast %246 : vector<24xf32> to vector<1x1x24xf32>
    tpu.vector_store %arg7[%c1_88, %c5_89, %c0_90], %249 {strides = array<i32>} : memref<3x20x24xf32, #tpu.memory_space<vmem>>, vector<1x1x24xf32>,
    %250 = vector.extract_strided_slice %239 {offsets = [2, 0], sizes = [1, 24], strides = [1, 1]} : vector<3x24xf32> to vector<1x24xf32>
    %251 = vector.shape_cast %250 : vector<1x24xf32> to vector<24xf32>
    %c2_91 = arith.constant 2 : index
    %c5_92 = arith.constant 5 : index
    %c0_93 = arith.constant 0 : index
    %252 = vector.load %arg7[%c2_91, %c5_92, %c0_93] : memref<3x20x24xf32, #tpu.memory_space<vmem>>, vector<1x1x24xf32>
    %253 = vector.shape_cast %252 : vector<1x1x24xf32> to vector<24xf32>
    %254 = vector.shape_cast %251 : vector<24xf32> to vector<1x1x24xf32>
    tpu.vector_store %arg7[%c2_91, %c5_92, %c0_93], %254 {strides = array<i32>} : memref<3x20x24xf32, #tpu.memory_space<vmem>>, vector<1x1x24xf32>,
    %cst_94 = arith.constant dense<0xFF800000> : vector<24xf32>
    %255 = vector.multi_reduction <maximumf>, %231, %cst_94 [0] : vector<24x24xf32> to vector<24xf32>
    %256 = vector.shape_cast %255 : vector<24xf32> to vector<1x24xf32>
    %257 = vector.broadcast %256 : vector<1x24xf32> to vector<24x24xf32>
    %258 = arith.cmpf oeq, %231, %257 : vector<24x24xf32>
    %cst_95 = arith.constant 2.400000e+01 : f32
    %259 = vector.broadcast %cst_95 : f32 to vector<24x24xf32>
    %260 = arith.select %258, %44, %259 : vector<24x24xi1>, vector<24x24xf32>
    %cst_96 = arith.constant dense<0x7F800000> : vector<24xf32>
    %261 = vector.multi_reduction <minimumf>, %260, %cst_96 [0] : vector<24x24xf32> to vector<24xf32>
    %262 = vector.shape_cast %261 : vector<24xf32> to vector<1x24xf32>
    %263 = vector.broadcast %262 : vector<1x24xf32> to vector<24x24xf32>
    %264 = arith.cmpf oeq, %44, %263 : vector<24x24xf32>
    %cst_97 = arith.constant 0xFF800000 : f32
    %265 = vector.broadcast %cst_97 : f32 to vector<24x24xf32>
    %266 = arith.select %264, %265, %231 : vector<24x24xi1>, vector<24x24xf32>
    %267 = arith.extui %264 : vector<24x24xi1> to vector<24x24xi32>
    %268 = arith.sitofp %267 : vector<24x24xi32> to vector<24x24xf32>
    %cst_98 = arith.constant dense<0.000000e+00> : vector<3x24xf32>
    %269 = tpu.matmul %1, %268, %cst_98 {dimension_numbers = #tpu.dot_dimension_numbers<[1], [0], [0], [1], [0, 0, 1, 1], [], []>} : vector<3x24xf32>, vector<24x24xf32>, vector<3x24xf32> -> vector<3x24xf32>
    %270 = arith.subf %269, %1 : vector<3x24xf32>
    %271 = math.absf %270 : vector<3x24xf32>
    %cst_99 = arith.constant 2.500000e-01 : f32
    %272 = vector.broadcast %cst_99 : f32 to vector<3x24xf32>
    %273 = arith.cmpf ole, %271, %272 : vector<3x24xf32>
    %274 = arith.select %273, %269, %1 : vector<3x24xi1>, vector<3x24xf32>
    %275 = vector.extract_strided_slice %274 {offsets = [0, 0], sizes = [1, 24], strides = [1, 1]} : vector<3x24xf32> to vector<1x24xf32>
    %276 = vector.shape_cast %275 : vector<1x24xf32> to vector<24xf32>
    %c0_100 = arith.constant 0 : index
    %c6 = arith.constant 6 : index
    %c0_101 = arith.constant 0 : index
    %277 = vector.load %arg7[%c0_100, %c6, %c0_101] : memref<3x20x24xf32, #tpu.memory_space<vmem>>, vector<1x1x24xf32>
    %278 = vector.shape_cast %277 : vector<1x1x24xf32> to vector<24xf32>
    %279 = vector.shape_cast %276 : vector<24xf32> to vector<1x1x24xf32>
    tpu.vector_store %arg7[%c0_100, %c6, %c0_101], %279 {strides = array<i32>} : memref<3x20x24xf32, #tpu.memory_space<vmem>>, vector<1x1x24xf32>,
    %280 = vector.extract_strided_slice %274 {offsets = [1, 0], sizes = [1, 24], strides = [1, 1]} : vector<3x24xf32> to vector<1x24xf32>
    %281 = vector.shape_cast %280 : vector<1x24xf32> to vector<24xf32>
    %c1_102 = arith.constant 1 : index
    %c6_103 = arith.constant 6 : index
    %c0_104 = arith.constant 0 : index
    %282 = vector.load %arg7[%c1_102, %c6_103, %c0_104] : memref<3x20x24xf32, #tpu.memory_space<vmem>>, vector<1x1x24xf32>
    %283 = vector.shape_cast %282 : vector<1x1x24xf32> to vector<24xf32>
    %284 = vector.shape_cast %281 : vector<24xf32> to vector<1x1x24xf32>
    tpu.vector_store %arg7[%c1_102, %c6_103, %c0_104], %284 {strides = array<i32>} : memref<3x20x24xf32, #tpu.memory_space<vmem>>, vector<1x1x24xf32>,
    %285 = vector.extract_strided_slice %274 {offsets = [2, 0], sizes = [1, 24], strides = [1, 1]} : vector<3x24xf32> to vector<1x24xf32>
    %286 = vector.shape_cast %285 : vector<1x24xf32> to vector<24xf32>
    %c2_105 = arith.constant 2 : index
    %c6_106 = arith.constant 6 : index
    %c0_107 = arith.constant 0 : index
    %287 = vector.load %arg7[%c2_105, %c6_106, %c0_107] : memref<3x20x24xf32, #tpu.memory_space<vmem>>, vector<1x1x24xf32>
    %288 = vector.shape_cast %287 : vector<1x1x24xf32> to vector<24xf32>
    %289 = vector.shape_cast %286 : vector<24xf32> to vector<1x1x24xf32>
    tpu.vector_store %arg7[%c2_105, %c6_106, %c0_107], %289 {strides = array<i32>} : memref<3x20x24xf32, #tpu.memory_space<vmem>>, vector<1x1x24xf32>,
    %cst_108 = arith.constant dense<0xFF800000> : vector<24xf32>
    %290 = vector.multi_reduction <maximumf>, %266, %cst_108 [0] : vector<24x24xf32> to vector<24xf32>
    %291 = vector.shape_cast %290 : vector<24xf32> to vector<1x24xf32>
    %292 = vector.broadcast %291 : vector<1x24xf32> to vector<24x24xf32>
    %293 = arith.cmpf oeq, %266, %292 : vector<24x24xf32>
    %cst_109 = arith.constant 2.400000e+01 : f32
    %294 = vector.broadcast %cst_109 : f32 to vector<24x24xf32>
    %295 = arith.select %293, %44, %294 : vector<24x24xi1>, vector<24x24xf32>
    %cst_110 = arith.constant dense<0x7F800000> : vector<24xf32>
    %296 = vector.multi_reduction <minimumf>, %295, %cst_110 [0] : vector<24x24xf32> to vector<24xf32>
    %297 = vector.shape_cast %296 : vector<24xf32> to vector<1x24xf32>
    %298 = vector.broadcast %297 : vector<1x24xf32> to vector<24x24xf32>
    %299 = arith.cmpf oeq, %44, %298 : vector<24x24xf32>
    %cst_111 = arith.constant 0xFF800000 : f32
    %300 = vector.broadcast %cst_111 : f32 to vector<24x24xf32>
    %301 = arith.select %299, %300, %266 : vector<24x24xi1>, vector<24x24xf32>
    %302 = arith.extui %299 : vector<24x24xi1> to vector<24x24xi32>
    %303 = arith.sitofp %302 : vector<24x24xi32> to vector<24x24xf32>
    %cst_112 = arith.constant dense<0.000000e+00> : vector<3x24xf32>
    %304 = tpu.matmul %1, %303, %cst_112 {dimension_numbers = #tpu.dot_dimension_numbers<[1], [0], [0], [1], [0, 0, 1, 1], [], []>} : vector<3x24xf32>, vector<24x24xf32>, vector<3x24xf32> -> vector<3x24xf32>
    %305 = arith.subf %304, %1 : vector<3x24xf32>
    %306 = math.absf %305 : vector<3x24xf32>
    %cst_113 = arith.constant 2.500000e-01 : f32
    %307 = vector.broadcast %cst_113 : f32 to vector<3x24xf32>
    %308 = arith.cmpf ole, %306, %307 : vector<3x24xf32>
    %309 = arith.select %308, %304, %1 : vector<3x24xi1>, vector<3x24xf32>
    %310 = vector.extract_strided_slice %309 {offsets = [0, 0], sizes = [1, 24], strides = [1, 1]} : vector<3x24xf32> to vector<1x24xf32>
    %311 = vector.shape_cast %310 : vector<1x24xf32> to vector<24xf32>
    %c0_114 = arith.constant 0 : index
    %c7 = arith.constant 7 : index
    %c0_115 = arith.constant 0 : index
    %312 = vector.load %arg7[%c0_114, %c7, %c0_115] : memref<3x20x24xf32, #tpu.memory_space<vmem>>, vector<1x1x24xf32>
    %313 = vector.shape_cast %312 : vector<1x1x24xf32> to vector<24xf32>
    %314 = vector.shape_cast %311 : vector<24xf32> to vector<1x1x24xf32>
    tpu.vector_store %arg7[%c0_114, %c7, %c0_115], %314 {strides = array<i32>} : memref<3x20x24xf32, #tpu.memory_space<vmem>>, vector<1x1x24xf32>,
    %315 = vector.extract_strided_slice %309 {offsets = [1, 0], sizes = [1, 24], strides = [1, 1]} : vector<3x24xf32> to vector<1x24xf32>
    %316 = vector.shape_cast %315 : vector<1x24xf32> to vector<24xf32>
    %c1_116 = arith.constant 1 : index
    %c7_117 = arith.constant 7 : index
    %c0_118 = arith.constant 0 : index
    %317 = vector.load %arg7[%c1_116, %c7_117, %c0_118] : memref<3x20x24xf32, #tpu.memory_space<vmem>>, vector<1x1x24xf32>
    %318 = vector.shape_cast %317 : vector<1x1x24xf32> to vector<24xf32>
    %319 = vector.shape_cast %316 : vector<24xf32> to vector<1x1x24xf32>
    tpu.vector_store %arg7[%c1_116, %c7_117, %c0_118], %319 {strides = array<i32>} : memref<3x20x24xf32, #tpu.memory_space<vmem>>, vector<1x1x24xf32>,
    %320 = vector.extract_strided_slice %309 {offsets = [2, 0], sizes = [1, 24], strides = [1, 1]} : vector<3x24xf32> to vector<1x24xf32>
    %321 = vector.shape_cast %320 : vector<1x24xf32> to vector<24xf32>
    %c2_119 = arith.constant 2 : index
    %c7_120 = arith.constant 7 : index
    %c0_121 = arith.constant 0 : index
    %322 = vector.load %arg7[%c2_119, %c7_120, %c0_121] : memref<3x20x24xf32, #tpu.memory_space<vmem>>, vector<1x1x24xf32>
    %323 = vector.shape_cast %322 : vector<1x1x24xf32> to vector<24xf32>
    %324 = vector.shape_cast %321 : vector<24xf32> to vector<1x1x24xf32>
    tpu.vector_store %arg7[%c2_119, %c7_120, %c0_121], %324 {strides = array<i32>} : memref<3x20x24xf32, #tpu.memory_space<vmem>>, vector<1x1x24xf32>,
    %cst_122 = arith.constant dense<0xFF800000> : vector<24xf32>
    %325 = vector.multi_reduction <maximumf>, %301, %cst_122 [0] : vector<24x24xf32> to vector<24xf32>
    %326 = vector.shape_cast %325 : vector<24xf32> to vector<1x24xf32>
    %327 = vector.broadcast %326 : vector<1x24xf32> to vector<24x24xf32>
    %328 = arith.cmpf oeq, %301, %327 : vector<24x24xf32>
    %cst_123 = arith.constant 2.400000e+01 : f32
    %329 = vector.broadcast %cst_123 : f32 to vector<24x24xf32>
    %330 = arith.select %328, %44, %329 : vector<24x24xi1>, vector<24x24xf32>
    %cst_124 = arith.constant dense<0x7F800000> : vector<24xf32>
    %331 = vector.multi_reduction <minimumf>, %330, %cst_124 [0] : vector<24x24xf32> to vector<24xf32>
    %332 = vector.shape_cast %331 : vector<24xf32> to vector<1x24xf32>
    %333 = vector.broadcast %332 : vector<1x24xf32> to vector<24x24xf32>
    %334 = arith.cmpf oeq, %44, %333 : vector<24x24xf32>
    %cst_125 = arith.constant 0xFF800000 : f32
    %335 = vector.broadcast %cst_125 : f32 to vector<24x24xf32>
    %336 = arith.select %334, %335, %301 : vector<24x24xi1>, vector<24x24xf32>
    %337 = arith.extui %334 : vector<24x24xi1> to vector<24x24xi32>
    %338 = arith.sitofp %337 : vector<24x24xi32> to vector<24x24xf32>
    %cst_126 = arith.constant dense<0.000000e+00> : vector<3x24xf32>
    %339 = tpu.matmul %1, %338, %cst_126 {dimension_numbers = #tpu.dot_dimension_numbers<[1], [0], [0], [1], [0, 0, 1, 1], [], []>} : vector<3x24xf32>, vector<24x24xf32>, vector<3x24xf32> -> vector<3x24xf32>
    %340 = arith.subf %339, %1 : vector<3x24xf32>
    %341 = math.absf %340 : vector<3x24xf32>
    %cst_127 = arith.constant 2.500000e-01 : f32
    %342 = vector.broadcast %cst_127 : f32 to vector<3x24xf32>
    %343 = arith.cmpf ole, %341, %342 : vector<3x24xf32>
    %344 = arith.select %343, %339, %1 : vector<3x24xi1>, vector<3x24xf32>
    %345 = vector.extract_strided_slice %344 {offsets = [0, 0], sizes = [1, 24], strides = [1, 1]} : vector<3x24xf32> to vector<1x24xf32>
    %346 = vector.shape_cast %345 : vector<1x24xf32> to vector<24xf32>
    %c0_128 = arith.constant 0 : index
    %c8 = arith.constant 8 : index
    %c0_129 = arith.constant 0 : index
    %347 = vector.load %arg7[%c0_128, %c8, %c0_129] : memref<3x20x24xf32, #tpu.memory_space<vmem>>, vector<1x1x24xf32>
    %348 = vector.shape_cast %347 : vector<1x1x24xf32> to vector<24xf32>
    %349 = vector.shape_cast %346 : vector<24xf32> to vector<1x1x24xf32>
    tpu.vector_store %arg7[%c0_128, %c8, %c0_129], %349 {strides = array<i32>} : memref<3x20x24xf32, #tpu.memory_space<vmem>>, vector<1x1x24xf32>,
    %350 = vector.extract_strided_slice %344 {offsets = [1, 0], sizes = [1, 24], strides = [1, 1]} : vector<3x24xf32> to vector<1x24xf32>
    %351 = vector.shape_cast %350 : vector<1x24xf32> to vector<24xf32>
    %c1_130 = arith.constant 1 : index
    %c8_131 = arith.constant 8 : index
    %c0_132 = arith.constant 0 : index
    %352 = vector.load %arg7[%c1_130, %c8_131, %c0_132] : memref<3x20x24xf32, #tpu.memory_space<vmem>>, vector<1x1x24xf32>
    %353 = vector.shape_cast %352 : vector<1x1x24xf32> to vector<24xf32>
    %354 = vector.shape_cast %351 : vector<24xf32> to vector<1x1x24xf32>
    tpu.vector_store %arg7[%c1_130, %c8_131, %c0_132], %354 {strides = array<i32>} : memref<3x20x24xf32, #tpu.memory_space<vmem>>, vector<1x1x24xf32>,
    %355 = vector.extract_strided_slice %344 {offsets = [2, 0], sizes = [1, 24], strides = [1, 1]} : vector<3x24xf32> to vector<1x24xf32>
    %356 = vector.shape_cast %355 : vector<1x24xf32> to vector<24xf32>
    %c2_133 = arith.constant 2 : index
    %c8_134 = arith.constant 8 : index
    %c0_135 = arith.constant 0 : index
    %357 = vector.load %arg7[%c2_133, %c8_134, %c0_135] : memref<3x20x24xf32, #tpu.memory_space<vmem>>, vector<1x1x24xf32>
    %358 = vector.shape_cast %357 : vector<1x1x24xf32> to vector<24xf32>
    %359 = vector.shape_cast %356 : vector<24xf32> to vector<1x1x24xf32>
    tpu.vector_store %arg7[%c2_133, %c8_134, %c0_135], %359 {strides = array<i32>} : memref<3x20x24xf32, #tpu.memory_space<vmem>>, vector<1x1x24xf32>,
    %cst_136 = arith.constant dense<0xFF800000> : vector<24xf32>
    %360 = vector.multi_reduction <maximumf>, %336, %cst_136 [0] : vector<24x24xf32> to vector<24xf32>
    %361 = vector.shape_cast %360 : vector<24xf32> to vector<1x24xf32>
    %362 = vector.broadcast %361 : vector<1x24xf32> to vector<24x24xf32>
    %363 = arith.cmpf oeq, %336, %362 : vector<24x24xf32>
    %cst_137 = arith.constant 2.400000e+01 : f32
    %364 = vector.broadcast %cst_137 : f32 to vector<24x24xf32>
    %365 = arith.select %363, %44, %364 : vector<24x24xi1>, vector<24x24xf32>
    %cst_138 = arith.constant dense<0x7F800000> : vector<24xf32>
    %366 = vector.multi_reduction <minimumf>, %365, %cst_138 [0] : vector<24x24xf32> to vector<24xf32>
    %367 = vector.shape_cast %366 : vector<24xf32> to vector<1x24xf32>
    %368 = vector.broadcast %367 : vector<1x24xf32> to vector<24x24xf32>
    %369 = arith.cmpf oeq, %44, %368 : vector<24x24xf32>
    %cst_139 = arith.constant 0xFF800000 : f32
    %370 = vector.broadcast %cst_139 : f32 to vector<24x24xf32>
    %371 = arith.select %369, %370, %336 : vector<24x24xi1>, vector<24x24xf32>
    %372 = arith.extui %369 : vector<24x24xi1> to vector<24x24xi32>
    %373 = arith.sitofp %372 : vector<24x24xi32> to vector<24x24xf32>
    %cst_140 = arith.constant dense<0.000000e+00> : vector<3x24xf32>
    %374 = tpu.matmul %1, %373, %cst_140 {dimension_numbers = #tpu.dot_dimension_numbers<[1], [0], [0], [1], [0, 0, 1, 1], [], []>} : vector<3x24xf32>, vector<24x24xf32>, vector<3x24xf32> -> vector<3x24xf32>
    %375 = arith.subf %374, %1 : vector<3x24xf32>
    %376 = math.absf %375 : vector<3x24xf32>
    %cst_141 = arith.constant 2.500000e-01 : f32
    %377 = vector.broadcast %cst_141 : f32 to vector<3x24xf32>
    %378 = arith.cmpf ole, %376, %377 : vector<3x24xf32>
    %379 = arith.select %378, %374, %1 : vector<3x24xi1>, vector<3x24xf32>
    %380 = vector.extract_strided_slice %379 {offsets = [0, 0], sizes = [1, 24], strides = [1, 1]} : vector<3x24xf32> to vector<1x24xf32>
    %381 = vector.shape_cast %380 : vector<1x24xf32> to vector<24xf32>
    %c0_142 = arith.constant 0 : index
    %c9 = arith.constant 9 : index
    %c0_143 = arith.constant 0 : index
    %382 = vector.load %arg7[%c0_142, %c9, %c0_143] : memref<3x20x24xf32, #tpu.memory_space<vmem>>, vector<1x1x24xf32>
    %383 = vector.shape_cast %382 : vector<1x1x24xf32> to vector<24xf32>
    %384 = vector.shape_cast %381 : vector<24xf32> to vector<1x1x24xf32>
    tpu.vector_store %arg7[%c0_142, %c9, %c0_143], %384 {strides = array<i32>} : memref<3x20x24xf32, #tpu.memory_space<vmem>>, vector<1x1x24xf32>,
    %385 = vector.extract_strided_slice %379 {offsets = [1, 0], sizes = [1, 24], strides = [1, 1]} : vector<3x24xf32> to vector<1x24xf32>
    %386 = vector.shape_cast %385 : vector<1x24xf32> to vector<24xf32>
    %c1_144 = arith.constant 1 : index
    %c9_145 = arith.constant 9 : index
    %c0_146 = arith.constant 0 : index
    %387 = vector.load %arg7[%c1_144, %c9_145, %c0_146] : memref<3x20x24xf32, #tpu.memory_space<vmem>>, vector<1x1x24xf32>
    %388 = vector.shape_cast %387 : vector<1x1x24xf32> to vector<24xf32>
    %389 = vector.shape_cast %386 : vector<24xf32> to vector<1x1x24xf32>
    tpu.vector_store %arg7[%c1_144, %c9_145, %c0_146], %389 {strides = array<i32>} : memref<3x20x24xf32, #tpu.memory_space<vmem>>, vector<1x1x24xf32>,
    %390 = vector.extract_strided_slice %379 {offsets = [2, 0], sizes = [1, 24], strides = [1, 1]} : vector<3x24xf32> to vector<1x24xf32>
    %391 = vector.shape_cast %390 : vector<1x24xf32> to vector<24xf32>
    %c2_147 = arith.constant 2 : index
    %c9_148 = arith.constant 9 : index
    %c0_149 = arith.constant 0 : index
    %392 = vector.load %arg7[%c2_147, %c9_148, %c0_149] : memref<3x20x24xf32, #tpu.memory_space<vmem>>, vector<1x1x24xf32>
    %393 = vector.shape_cast %392 : vector<1x1x24xf32> to vector<24xf32>
    %394 = vector.shape_cast %391 : vector<24xf32> to vector<1x1x24xf32>
    tpu.vector_store %arg7[%c2_147, %c9_148, %c0_149], %394 {strides = array<i32>} : memref<3x20x24xf32, #tpu.memory_space<vmem>>, vector<1x1x24xf32>,
    %cst_150 = arith.constant dense<0xFF800000> : vector<24xf32>
    %395 = vector.multi_reduction <maximumf>, %371, %cst_150 [0] : vector<24x24xf32> to vector<24xf32>
    %396 = vector.shape_cast %395 : vector<24xf32> to vector<1x24xf32>
    %397 = vector.broadcast %396 : vector<1x24xf32> to vector<24x24xf32>
    %398 = arith.cmpf oeq, %371, %397 : vector<24x24xf32>
    %cst_151 = arith.constant 2.400000e+01 : f32
    %399 = vector.broadcast %cst_151 : f32 to vector<24x24xf32>
    %400 = arith.select %398, %44, %399 : vector<24x24xi1>, vector<24x24xf32>
    %cst_152 = arith.constant dense<0x7F800000> : vector<24xf32>
    %401 = vector.multi_reduction <minimumf>, %400, %cst_152 [0] : vector<24x24xf32> to vector<24xf32>
    %402 = vector.shape_cast %401 : vector<24xf32> to vector<1x24xf32>
    %403 = vector.broadcast %402 : vector<1x24xf32> to vector<24x24xf32>
    %404 = arith.cmpf oeq, %44, %403 : vector<24x24xf32>
    %cst_153 = arith.constant 0xFF800000 : f32
    %405 = vector.broadcast %cst_153 : f32 to vector<24x24xf32>
    %406 = arith.select %404, %405, %371 : vector<24x24xi1>, vector<24x24xf32>
    %407 = arith.extui %404 : vector<24x24xi1> to vector<24x24xi32>
    %408 = arith.sitofp %407 : vector<24x24xi32> to vector<24x24xf32>
    %cst_154 = arith.constant dense<0.000000e+00> : vector<3x24xf32>
    %409 = tpu.matmul %1, %408, %cst_154 {dimension_numbers = #tpu.dot_dimension_numbers<[1], [0], [0], [1], [0, 0, 1, 1], [], []>} : vector<3x24xf32>, vector<24x24xf32>, vector<3x24xf32> -> vector<3x24xf32>
    %410 = arith.subf %409, %1 : vector<3x24xf32>
    %411 = math.absf %410 : vector<3x24xf32>
    %cst_155 = arith.constant 2.500000e-01 : f32
    %412 = vector.broadcast %cst_155 : f32 to vector<3x24xf32>
    %413 = arith.cmpf ole, %411, %412 : vector<3x24xf32>
    %414 = arith.select %413, %409, %1 : vector<3x24xi1>, vector<3x24xf32>
    %415 = vector.extract_strided_slice %414 {offsets = [0, 0], sizes = [1, 24], strides = [1, 1]} : vector<3x24xf32> to vector<1x24xf32>
    %416 = vector.shape_cast %415 : vector<1x24xf32> to vector<24xf32>
    %c0_156 = arith.constant 0 : index
    %c10 = arith.constant 10 : index
    %c0_157 = arith.constant 0 : index
    %417 = vector.load %arg7[%c0_156, %c10, %c0_157] : memref<3x20x24xf32, #tpu.memory_space<vmem>>, vector<1x1x24xf32>
    %418 = vector.shape_cast %417 : vector<1x1x24xf32> to vector<24xf32>
    %419 = vector.shape_cast %416 : vector<24xf32> to vector<1x1x24xf32>
    tpu.vector_store %arg7[%c0_156, %c10, %c0_157], %419 {strides = array<i32>} : memref<3x20x24xf32, #tpu.memory_space<vmem>>, vector<1x1x24xf32>,
    %420 = vector.extract_strided_slice %414 {offsets = [1, 0], sizes = [1, 24], strides = [1, 1]} : vector<3x24xf32> to vector<1x24xf32>
    %421 = vector.shape_cast %420 : vector<1x24xf32> to vector<24xf32>
    %c1_158 = arith.constant 1 : index
    %c10_159 = arith.constant 10 : index
    %c0_160 = arith.constant 0 : index
    %422 = vector.load %arg7[%c1_158, %c10_159, %c0_160] : memref<3x20x24xf32, #tpu.memory_space<vmem>>, vector<1x1x24xf32>
    %423 = vector.shape_cast %422 : vector<1x1x24xf32> to vector<24xf32>
    %424 = vector.shape_cast %421 : vector<24xf32> to vector<1x1x24xf32>
    tpu.vector_store %arg7[%c1_158, %c10_159, %c0_160], %424 {strides = array<i32>} : memref<3x20x24xf32, #tpu.memory_space<vmem>>, vector<1x1x24xf32>,
    %425 = vector.extract_strided_slice %414 {offsets = [2, 0], sizes = [1, 24], strides = [1, 1]} : vector<3x24xf32> to vector<1x24xf32>
    %426 = vector.shape_cast %425 : vector<1x24xf32> to vector<24xf32>
    %c2_161 = arith.constant 2 : index
    %c10_162 = arith.constant 10 : index
    %c0_163 = arith.constant 0 : index
    %427 = vector.load %arg7[%c2_161, %c10_162, %c0_163] : memref<3x20x24xf32, #tpu.memory_space<vmem>>, vector<1x1x24xf32>
    %428 = vector.shape_cast %427 : vector<1x1x24xf32> to vector<24xf32>
    %429 = vector.shape_cast %426 : vector<24xf32> to vector<1x1x24xf32>
    tpu.vector_store %arg7[%c2_161, %c10_162, %c0_163], %429 {strides = array<i32>} : memref<3x20x24xf32, #tpu.memory_space<vmem>>, vector<1x1x24xf32>,
    %cst_164 = arith.constant dense<0xFF800000> : vector<24xf32>
    %430 = vector.multi_reduction <maximumf>, %406, %cst_164 [0] : vector<24x24xf32> to vector<24xf32>
    %431 = vector.shape_cast %430 : vector<24xf32> to vector<1x24xf32>
    %432 = vector.broadcast %431 : vector<1x24xf32> to vector<24x24xf32>
    %433 = arith.cmpf oeq, %406, %432 : vector<24x24xf32>
    %cst_165 = arith.constant 2.400000e+01 : f32
    %434 = vector.broadcast %cst_165 : f32 to vector<24x24xf32>
    %435 = arith.select %433, %44, %434 : vector<24x24xi1>, vector<24x24xf32>
    %cst_166 = arith.constant dense<0x7F800000> : vector<24xf32>
    %436 = vector.multi_reduction <minimumf>, %435, %cst_166 [0] : vector<24x24xf32> to vector<24xf32>
    %437 = vector.shape_cast %436 : vector<24xf32> to vector<1x24xf32>
    %438 = vector.broadcast %437 : vector<1x24xf32> to vector<24x24xf32>
    %439 = arith.cmpf oeq, %44, %438 : vector<24x24xf32>
    %cst_167 = arith.constant 0xFF800000 : f32
    %440 = vector.broadcast %cst_167 : f32 to vector<24x24xf32>
    %441 = arith.select %439, %440, %406 : vector<24x24xi1>, vector<24x24xf32>
    %442 = arith.extui %439 : vector<24x24xi1> to vector<24x24xi32>
    %443 = arith.sitofp %442 : vector<24x24xi32> to vector<24x24xf32>
    %cst_168 = arith.constant dense<0.000000e+00> : vector<3x24xf32>
    %444 = tpu.matmul %1, %443, %cst_168 {dimension_numbers = #tpu.dot_dimension_numbers<[1], [0], [0], [1], [0, 0, 1, 1], [], []>} : vector<3x24xf32>, vector<24x24xf32>, vector<3x24xf32> -> vector<3x24xf32>
    %445 = arith.subf %444, %1 : vector<3x24xf32>
    %446 = math.absf %445 : vector<3x24xf32>
    %cst_169 = arith.constant 2.500000e-01 : f32
    %447 = vector.broadcast %cst_169 : f32 to vector<3x24xf32>
    %448 = arith.cmpf ole, %446, %447 : vector<3x24xf32>
    %449 = arith.select %448, %444, %1 : vector<3x24xi1>, vector<3x24xf32>
    %450 = vector.extract_strided_slice %449 {offsets = [0, 0], sizes = [1, 24], strides = [1, 1]} : vector<3x24xf32> to vector<1x24xf32>
    %451 = vector.shape_cast %450 : vector<1x24xf32> to vector<24xf32>
    %c0_170 = arith.constant 0 : index
    %c11 = arith.constant 11 : index
    %c0_171 = arith.constant 0 : index
    %452 = vector.load %arg7[%c0_170, %c11, %c0_171] : memref<3x20x24xf32, #tpu.memory_space<vmem>>, vector<1x1x24xf32>
    %453 = vector.shape_cast %452 : vector<1x1x24xf32> to vector<24xf32>
    %454 = vector.shape_cast %451 : vector<24xf32> to vector<1x1x24xf32>
    tpu.vector_store %arg7[%c0_170, %c11, %c0_171], %454 {strides = array<i32>} : memref<3x20x24xf32, #tpu.memory_space<vmem>>, vector<1x1x24xf32>,
    %455 = vector.extract_strided_slice %449 {offsets = [1, 0], sizes = [1, 24], strides = [1, 1]} : vector<3x24xf32> to vector<1x24xf32>
    %456 = vector.shape_cast %455 : vector<1x24xf32> to vector<24xf32>
    %c1_172 = arith.constant 1 : index
    %c11_173 = arith.constant 11 : index
    %c0_174 = arith.constant 0 : index
    %457 = vector.load %arg7[%c1_172, %c11_173, %c0_174] : memref<3x20x24xf32, #tpu.memory_space<vmem>>, vector<1x1x24xf32>
    %458 = vector.shape_cast %457 : vector<1x1x24xf32> to vector<24xf32>
    %459 = vector.shape_cast %456 : vector<24xf32> to vector<1x1x24xf32>
    tpu.vector_store %arg7[%c1_172, %c11_173, %c0_174], %459 {strides = array<i32>} : memref<3x20x24xf32, #tpu.memory_space<vmem>>, vector<1x1x24xf32>,
    %460 = vector.extract_strided_slice %449 {offsets = [2, 0], sizes = [1, 24], strides = [1, 1]} : vector<3x24xf32> to vector<1x24xf32>
    %461 = vector.shape_cast %460 : vector<1x24xf32> to vector<24xf32>
    %c2_175 = arith.constant 2 : index
    %c11_176 = arith.constant 11 : index
    %c0_177 = arith.constant 0 : index
    %462 = vector.load %arg7[%c2_175, %c11_176, %c0_177] : memref<3x20x24xf32, #tpu.memory_space<vmem>>, vector<1x1x24xf32>
    %463 = vector.shape_cast %462 : vector<1x1x24xf32> to vector<24xf32>
    %464 = vector.shape_cast %461 : vector<24xf32> to vector<1x1x24xf32>
    tpu.vector_store %arg7[%c2_175, %c11_176, %c0_177], %464 {strides = array<i32>} : memref<3x20x24xf32, #tpu.memory_space<vmem>>, vector<1x1x24xf32>,
    %cst_178 = arith.constant dense<0xFF800000> : vector<24xf32>
    %465 = vector.multi_reduction <maximumf>, %441, %cst_178 [0] : vector<24x24xf32> to vector<24xf32>
    %466 = vector.shape_cast %465 : vector<24xf32> to vector<1x24xf32>
    %467 = vector.broadcast %466 : vector<1x24xf32> to vector<24x24xf32>
    %468 = arith.cmpf oeq, %441, %467 : vector<24x24xf32>
    %cst_179 = arith.constant 2.400000e+01 : f32
    %469 = vector.broadcast %cst_179 : f32 to vector<24x24xf32>
    %470 = arith.select %468, %44, %469 : vector<24x24xi1>, vector<24x24xf32>
    %cst_180 = arith.constant dense<0x7F800000> : vector<24xf32>
    %471 = vector.multi_reduction <minimumf>, %470, %cst_180 [0] : vector<24x24xf32> to vector<24xf32>
    %472 = vector.shape_cast %471 : vector<24xf32> to vector<1x24xf32>
    %473 = vector.broadcast %472 : vector<1x24xf32> to vector<24x24xf32>
    %474 = arith.cmpf oeq, %44, %473 : vector<24x24xf32>
    %cst_181 = arith.constant 0xFF800000 : f32
    %475 = vector.broadcast %cst_181 : f32 to vector<24x24xf32>
    %476 = arith.select %474, %475, %441 : vector<24x24xi1>, vector<24x24xf32>
    %477 = arith.extui %474 : vector<24x24xi1> to vector<24x24xi32>
    %478 = arith.sitofp %477 : vector<24x24xi32> to vector<24x24xf32>
    %cst_182 = arith.constant dense<0.000000e+00> : vector<3x24xf32>
    %479 = tpu.matmul %1, %478, %cst_182 {dimension_numbers = #tpu.dot_dimension_numbers<[1], [0], [0], [1], [0, 0, 1, 1], [], []>} : vector<3x24xf32>, vector<24x24xf32>, vector<3x24xf32> -> vector<3x24xf32>
    %480 = arith.subf %479, %1 : vector<3x24xf32>
    %481 = math.absf %480 : vector<3x24xf32>
    %cst_183 = arith.constant 2.500000e-01 : f32
    %482 = vector.broadcast %cst_183 : f32 to vector<3x24xf32>
    %483 = arith.cmpf ole, %481, %482 : vector<3x24xf32>
    %484 = arith.select %483, %479, %1 : vector<3x24xi1>, vector<3x24xf32>
    %485 = vector.extract_strided_slice %484 {offsets = [0, 0], sizes = [1, 24], strides = [1, 1]} : vector<3x24xf32> to vector<1x24xf32>
    %486 = vector.shape_cast %485 : vector<1x24xf32> to vector<24xf32>
    %c0_184 = arith.constant 0 : index
    %c12 = arith.constant 12 : index
    %c0_185 = arith.constant 0 : index
    %487 = vector.load %arg7[%c0_184, %c12, %c0_185] : memref<3x20x24xf32, #tpu.memory_space<vmem>>, vector<1x1x24xf32>
    %488 = vector.shape_cast %487 : vector<1x1x24xf32> to vector<24xf32>
    %489 = vector.shape_cast %486 : vector<24xf32> to vector<1x1x24xf32>
    tpu.vector_store %arg7[%c0_184, %c12, %c0_185], %489 {strides = array<i32>} : memref<3x20x24xf32, #tpu.memory_space<vmem>>, vector<1x1x24xf32>,
    %490 = vector.extract_strided_slice %484 {offsets = [1, 0], sizes = [1, 24], strides = [1, 1]} : vector<3x24xf32> to vector<1x24xf32>
    %491 = vector.shape_cast %490 : vector<1x24xf32> to vector<24xf32>
    %c1_186 = arith.constant 1 : index
    %c12_187 = arith.constant 12 : index
    %c0_188 = arith.constant 0 : index
    %492 = vector.load %arg7[%c1_186, %c12_187, %c0_188] : memref<3x20x24xf32, #tpu.memory_space<vmem>>, vector<1x1x24xf32>
    %493 = vector.shape_cast %492 : vector<1x1x24xf32> to vector<24xf32>
    %494 = vector.shape_cast %491 : vector<24xf32> to vector<1x1x24xf32>
    tpu.vector_store %arg7[%c1_186, %c12_187, %c0_188], %494 {strides = array<i32>} : memref<3x20x24xf32, #tpu.memory_space<vmem>>, vector<1x1x24xf32>,
    %495 = vector.extract_strided_slice %484 {offsets = [2, 0], sizes = [1, 24], strides = [1, 1]} : vector<3x24xf32> to vector<1x24xf32>
    %496 = vector.shape_cast %495 : vector<1x24xf32> to vector<24xf32>
    %c2_189 = arith.constant 2 : index
    %c12_190 = arith.constant 12 : index
    %c0_191 = arith.constant 0 : index
    %497 = vector.load %arg7[%c2_189, %c12_190, %c0_191] : memref<3x20x24xf32, #tpu.memory_space<vmem>>, vector<1x1x24xf32>
    %498 = vector.shape_cast %497 : vector<1x1x24xf32> to vector<24xf32>
    %499 = vector.shape_cast %496 : vector<24xf32> to vector<1x1x24xf32>
    tpu.vector_store %arg7[%c2_189, %c12_190, %c0_191], %499 {strides = array<i32>} : memref<3x20x24xf32, #tpu.memory_space<vmem>>, vector<1x1x24xf32>,
    %cst_192 = arith.constant dense<0xFF800000> : vector<24xf32>
    %500 = vector.multi_reduction <maximumf>, %476, %cst_192 [0] : vector<24x24xf32> to vector<24xf32>
    %501 = vector.shape_cast %500 : vector<24xf32> to vector<1x24xf32>
    %502 = vector.broadcast %501 : vector<1x24xf32> to vector<24x24xf32>
    %503 = arith.cmpf oeq, %476, %502 : vector<24x24xf32>
    %cst_193 = arith.constant 2.400000e+01 : f32
    %504 = vector.broadcast %cst_193 : f32 to vector<24x24xf32>
    %505 = arith.select %503, %44, %504 : vector<24x24xi1>, vector<24x24xf32>
    %cst_194 = arith.constant dense<0x7F800000> : vector<24xf32>
    %506 = vector.multi_reduction <minimumf>, %505, %cst_194 [0] : vector<24x24xf32> to vector<24xf32>
    %507 = vector.shape_cast %506 : vector<24xf32> to vector<1x24xf32>
    %508 = vector.broadcast %507 : vector<1x24xf32> to vector<24x24xf32>
    %509 = arith.cmpf oeq, %44, %508 : vector<24x24xf32>
    %cst_195 = arith.constant 0xFF800000 : f32
    %510 = vector.broadcast %cst_195 : f32 to vector<24x24xf32>
    %511 = arith.select %509, %510, %476 : vector<24x24xi1>, vector<24x24xf32>
    %512 = arith.extui %509 : vector<24x24xi1> to vector<24x24xi32>
    %513 = arith.sitofp %512 : vector<24x24xi32> to vector<24x24xf32>
    %cst_196 = arith.constant dense<0.000000e+00> : vector<3x24xf32>
    %514 = tpu.matmul %1, %513, %cst_196 {dimension_numbers = #tpu.dot_dimension_numbers<[1], [0], [0], [1], [0, 0, 1, 1], [], []>} : vector<3x24xf32>, vector<24x24xf32>, vector<3x24xf32> -> vector<3x24xf32>
    %515 = arith.subf %514, %1 : vector<3x24xf32>
    %516 = math.absf %515 : vector<3x24xf32>
    %cst_197 = arith.constant 2.500000e-01 : f32
    %517 = vector.broadcast %cst_197 : f32 to vector<3x24xf32>
    %518 = arith.cmpf ole, %516, %517 : vector<3x24xf32>
    %519 = arith.select %518, %514, %1 : vector<3x24xi1>, vector<3x24xf32>
    %520 = vector.extract_strided_slice %519 {offsets = [0, 0], sizes = [1, 24], strides = [1, 1]} : vector<3x24xf32> to vector<1x24xf32>
    %521 = vector.shape_cast %520 : vector<1x24xf32> to vector<24xf32>
    %c0_198 = arith.constant 0 : index
    %c13 = arith.constant 13 : index
    %c0_199 = arith.constant 0 : index
    %522 = vector.load %arg7[%c0_198, %c13, %c0_199] : memref<3x20x24xf32, #tpu.memory_space<vmem>>, vector<1x1x24xf32>
    %523 = vector.shape_cast %522 : vector<1x1x24xf32> to vector<24xf32>
    %524 = vector.shape_cast %521 : vector<24xf32> to vector<1x1x24xf32>
    tpu.vector_store %arg7[%c0_198, %c13, %c0_199], %524 {strides = array<i32>} : memref<3x20x24xf32, #tpu.memory_space<vmem>>, vector<1x1x24xf32>,
    %525 = vector.extract_strided_slice %519 {offsets = [1, 0], sizes = [1, 24], strides = [1, 1]} : vector<3x24xf32> to vector<1x24xf32>
    %526 = vector.shape_cast %525 : vector<1x24xf32> to vector<24xf32>
    %c1_200 = arith.constant 1 : index
    %c13_201 = arith.constant 13 : index
    %c0_202 = arith.constant 0 : index
    %527 = vector.load %arg7[%c1_200, %c13_201, %c0_202] : memref<3x20x24xf32, #tpu.memory_space<vmem>>, vector<1x1x24xf32>
    %528 = vector.shape_cast %527 : vector<1x1x24xf32> to vector<24xf32>
    %529 = vector.shape_cast %526 : vector<24xf32> to vector<1x1x24xf32>
    tpu.vector_store %arg7[%c1_200, %c13_201, %c0_202], %529 {strides = array<i32>} : memref<3x20x24xf32, #tpu.memory_space<vmem>>, vector<1x1x24xf32>,
    %530 = vector.extract_strided_slice %519 {offsets = [2, 0], sizes = [1, 24], strides = [1, 1]} : vector<3x24xf32> to vector<1x24xf32>
    %531 = vector.shape_cast %530 : vector<1x24xf32> to vector<24xf32>
    %c2_203 = arith.constant 2 : index
    %c13_204 = arith.constant 13 : index
    %c0_205 = arith.constant 0 : index
    %532 = vector.load %arg7[%c2_203, %c13_204, %c0_205] : memref<3x20x24xf32, #tpu.memory_space<vmem>>, vector<1x1x24xf32>
    %533 = vector.shape_cast %532 : vector<1x1x24xf32> to vector<24xf32>
    %534 = vector.shape_cast %531 : vector<24xf32> to vector<1x1x24xf32>
    tpu.vector_store %arg7[%c2_203, %c13_204, %c0_205], %534 {strides = array<i32>} : memref<3x20x24xf32, #tpu.memory_space<vmem>>, vector<1x1x24xf32>,
    %cst_206 = arith.constant dense<0xFF800000> : vector<24xf32>
    %535 = vector.multi_reduction <maximumf>, %511, %cst_206 [0] : vector<24x24xf32> to vector<24xf32>
    %536 = vector.shape_cast %535 : vector<24xf32> to vector<1x24xf32>
    %537 = vector.broadcast %536 : vector<1x24xf32> to vector<24x24xf32>
    %538 = arith.cmpf oeq, %511, %537 : vector<24x24xf32>
    %cst_207 = arith.constant 2.400000e+01 : f32
    %539 = vector.broadcast %cst_207 : f32 to vector<24x24xf32>
    %540 = arith.select %538, %44, %539 : vector<24x24xi1>, vector<24x24xf32>
    %cst_208 = arith.constant dense<0x7F800000> : vector<24xf32>
    %541 = vector.multi_reduction <minimumf>, %540, %cst_208 [0] : vector<24x24xf32> to vector<24xf32>
    %542 = vector.shape_cast %541 : vector<24xf32> to vector<1x24xf32>
    %543 = vector.broadcast %542 : vector<1x24xf32> to vector<24x24xf32>
    %544 = arith.cmpf oeq, %44, %543 : vector<24x24xf32>
    %cst_209 = arith.constant 0xFF800000 : f32
    %545 = vector.broadcast %cst_209 : f32 to vector<24x24xf32>
    %546 = arith.select %544, %545, %511 : vector<24x24xi1>, vector<24x24xf32>
    %547 = arith.extui %544 : vector<24x24xi1> to vector<24x24xi32>
    %548 = arith.sitofp %547 : vector<24x24xi32> to vector<24x24xf32>
    %cst_210 = arith.constant dense<0.000000e+00> : vector<3x24xf32>
    %549 = tpu.matmul %1, %548, %cst_210 {dimension_numbers = #tpu.dot_dimension_numbers<[1], [0], [0], [1], [0, 0, 1, 1], [], []>} : vector<3x24xf32>, vector<24x24xf32>, vector<3x24xf32> -> vector<3x24xf32>
    %550 = arith.subf %549, %1 : vector<3x24xf32>
    %551 = math.absf %550 : vector<3x24xf32>
    %cst_211 = arith.constant 2.500000e-01 : f32
    %552 = vector.broadcast %cst_211 : f32 to vector<3x24xf32>
    %553 = arith.cmpf ole, %551, %552 : vector<3x24xf32>
    %554 = arith.select %553, %549, %1 : vector<3x24xi1>, vector<3x24xf32>
    %555 = vector.extract_strided_slice %554 {offsets = [0, 0], sizes = [1, 24], strides = [1, 1]} : vector<3x24xf32> to vector<1x24xf32>
    %556 = vector.shape_cast %555 : vector<1x24xf32> to vector<24xf32>
    %c0_212 = arith.constant 0 : index
    %c14 = arith.constant 14 : index
    %c0_213 = arith.constant 0 : index
    %557 = vector.load %arg7[%c0_212, %c14, %c0_213] : memref<3x20x24xf32, #tpu.memory_space<vmem>>, vector<1x1x24xf32>
    %558 = vector.shape_cast %557 : vector<1x1x24xf32> to vector<24xf32>
    %559 = vector.shape_cast %556 : vector<24xf32> to vector<1x1x24xf32>
    tpu.vector_store %arg7[%c0_212, %c14, %c0_213], %559 {strides = array<i32>} : memref<3x20x24xf32, #tpu.memory_space<vmem>>, vector<1x1x24xf32>,
    %560 = vector.extract_strided_slice %554 {offsets = [1, 0], sizes = [1, 24], strides = [1, 1]} : vector<3x24xf32> to vector<1x24xf32>
    %561 = vector.shape_cast %560 : vector<1x24xf32> to vector<24xf32>
    %c1_214 = arith.constant 1 : index
    %c14_215 = arith.constant 14 : index
    %c0_216 = arith.constant 0 : index
    %562 = vector.load %arg7[%c1_214, %c14_215, %c0_216] : memref<3x20x24xf32, #tpu.memory_space<vmem>>, vector<1x1x24xf32>
    %563 = vector.shape_cast %562 : vector<1x1x24xf32> to vector<24xf32>
    %564 = vector.shape_cast %561 : vector<24xf32> to vector<1x1x24xf32>
    tpu.vector_store %arg7[%c1_214, %c14_215, %c0_216], %564 {strides = array<i32>} : memref<3x20x24xf32, #tpu.memory_space<vmem>>, vector<1x1x24xf32>,
    %565 = vector.extract_strided_slice %554 {offsets = [2, 0], sizes = [1, 24], strides = [1, 1]} : vector<3x24xf32> to vector<1x24xf32>
    %566 = vector.shape_cast %565 : vector<1x24xf32> to vector<24xf32>
    %c2_217 = arith.constant 2 : index
    %c14_218 = arith.constant 14 : index
    %c0_219 = arith.constant 0 : index
    %567 = vector.load %arg7[%c2_217, %c14_218, %c0_219] : memref<3x20x24xf32, #tpu.memory_space<vmem>>, vector<1x1x24xf32>
    %568 = vector.shape_cast %567 : vector<1x1x24xf32> to vector<24xf32>
    %569 = vector.shape_cast %566 : vector<24xf32> to vector<1x1x24xf32>
    tpu.vector_store %arg7[%c2_217, %c14_218, %c0_219], %569 {strides = array<i32>} : memref<3x20x24xf32, #tpu.memory_space<vmem>>, vector<1x1x24xf32>,
    %cst_220 = arith.constant dense<0xFF800000> : vector<24xf32>
    %570 = vector.multi_reduction <maximumf>, %546, %cst_220 [0] : vector<24x24xf32> to vector<24xf32>
    %571 = vector.shape_cast %570 : vector<24xf32> to vector<1x24xf32>
    %572 = vector.broadcast %571 : vector<1x24xf32> to vector<24x24xf32>
    %573 = arith.cmpf oeq, %546, %572 : vector<24x24xf32>
    %cst_221 = arith.constant 2.400000e+01 : f32
    %574 = vector.broadcast %cst_221 : f32 to vector<24x24xf32>
    %575 = arith.select %573, %44, %574 : vector<24x24xi1>, vector<24x24xf32>
    %cst_222 = arith.constant dense<0x7F800000> : vector<24xf32>
    %576 = vector.multi_reduction <minimumf>, %575, %cst_222 [0] : vector<24x24xf32> to vector<24xf32>
    %577 = vector.shape_cast %576 : vector<24xf32> to vector<1x24xf32>
    %578 = vector.broadcast %577 : vector<1x24xf32> to vector<24x24xf32>
    %579 = arith.cmpf oeq, %44, %578 : vector<24x24xf32>
    %cst_223 = arith.constant 0xFF800000 : f32
    %580 = vector.broadcast %cst_223 : f32 to vector<24x24xf32>
    %581 = arith.select %579, %580, %546 : vector<24x24xi1>, vector<24x24xf32>
    %582 = arith.extui %579 : vector<24x24xi1> to vector<24x24xi32>
    %583 = arith.sitofp %582 : vector<24x24xi32> to vector<24x24xf32>
    %cst_224 = arith.constant dense<0.000000e+00> : vector<3x24xf32>
    %584 = tpu.matmul %1, %583, %cst_224 {dimension_numbers = #tpu.dot_dimension_numbers<[1], [0], [0], [1], [0, 0, 1, 1], [], []>} : vector<3x24xf32>, vector<24x24xf32>, vector<3x24xf32> -> vector<3x24xf32>
    %585 = arith.subf %584, %1 : vector<3x24xf32>
    %586 = math.absf %585 : vector<3x24xf32>
    %cst_225 = arith.constant 2.500000e-01 : f32
    %587 = vector.broadcast %cst_225 : f32 to vector<3x24xf32>
    %588 = arith.cmpf ole, %586, %587 : vector<3x24xf32>
    %589 = arith.select %588, %584, %1 : vector<3x24xi1>, vector<3x24xf32>
    %590 = vector.extract_strided_slice %589 {offsets = [0, 0], sizes = [1, 24], strides = [1, 1]} : vector<3x24xf32> to vector<1x24xf32>
    %591 = vector.shape_cast %590 : vector<1x24xf32> to vector<24xf32>
    %c0_226 = arith.constant 0 : index
    %c15 = arith.constant 15 : index
    %c0_227 = arith.constant 0 : index
    %592 = vector.load %arg7[%c0_226, %c15, %c0_227] : memref<3x20x24xf32, #tpu.memory_space<vmem>>, vector<1x1x24xf32>
    %593 = vector.shape_cast %592 : vector<1x1x24xf32> to vector<24xf32>
    %594 = vector.shape_cast %591 : vector<24xf32> to vector<1x1x24xf32>
    tpu.vector_store %arg7[%c0_226, %c15, %c0_227], %594 {strides = array<i32>} : memref<3x20x24xf32, #tpu.memory_space<vmem>>, vector<1x1x24xf32>,
    %595 = vector.extract_strided_slice %589 {offsets = [1, 0], sizes = [1, 24], strides = [1, 1]} : vector<3x24xf32> to vector<1x24xf32>
    %596 = vector.shape_cast %595 : vector<1x24xf32> to vector<24xf32>
    %c1_228 = arith.constant 1 : index
    %c15_229 = arith.constant 15 : index
    %c0_230 = arith.constant 0 : index
    %597 = vector.load %arg7[%c1_228, %c15_229, %c0_230] : memref<3x20x24xf32, #tpu.memory_space<vmem>>, vector<1x1x24xf32>
    %598 = vector.shape_cast %597 : vector<1x1x24xf32> to vector<24xf32>
    %599 = vector.shape_cast %596 : vector<24xf32> to vector<1x1x24xf32>
    tpu.vector_store %arg7[%c1_228, %c15_229, %c0_230], %599 {strides = array<i32>} : memref<3x20x24xf32, #tpu.memory_space<vmem>>, vector<1x1x24xf32>,
    %600 = vector.extract_strided_slice %589 {offsets = [2, 0], sizes = [1, 24], strides = [1, 1]} : vector<3x24xf32> to vector<1x24xf32>
    %601 = vector.shape_cast %600 : vector<1x24xf32> to vector<24xf32>
    %c2_231 = arith.constant 2 : index
    %c15_232 = arith.constant 15 : index
    %c0_233 = arith.constant 0 : index
    %602 = vector.load %arg7[%c2_231, %c15_232, %c0_233] : memref<3x20x24xf32, #tpu.memory_space<vmem>>, vector<1x1x24xf32>
    %603 = vector.shape_cast %602 : vector<1x1x24xf32> to vector<24xf32>
    %604 = vector.shape_cast %601 : vector<24xf32> to vector<1x1x24xf32>
    tpu.vector_store %arg7[%c2_231, %c15_232, %c0_233], %604 {strides = array<i32>} : memref<3x20x24xf32, #tpu.memory_space<vmem>>, vector<1x1x24xf32>,
    %cst_234 = arith.constant dense<0xFF800000> : vector<24xf32>
    %605 = vector.multi_reduction <maximumf>, %581, %cst_234 [0] : vector<24x24xf32> to vector<24xf32>
    %606 = vector.shape_cast %605 : vector<24xf32> to vector<1x24xf32>
    %607 = vector.broadcast %606 : vector<1x24xf32> to vector<24x24xf32>
    %608 = arith.cmpf oeq, %581, %607 : vector<24x24xf32>
    %cst_235 = arith.constant 2.400000e+01 : f32
    %609 = vector.broadcast %cst_235 : f32 to vector<24x24xf32>
    %610 = arith.select %608, %44, %609 : vector<24x24xi1>, vector<24x24xf32>
    %cst_236 = arith.constant dense<0x7F800000> : vector<24xf32>
    %611 = vector.multi_reduction <minimumf>, %610, %cst_236 [0] : vector<24x24xf32> to vector<24xf32>
    %612 = vector.shape_cast %611 : vector<24xf32> to vector<1x24xf32>
    %613 = vector.broadcast %612 : vector<1x24xf32> to vector<24x24xf32>
    %614 = arith.cmpf oeq, %44, %613 : vector<24x24xf32>
    %cst_237 = arith.constant 0xFF800000 : f32
    %615 = vector.broadcast %cst_237 : f32 to vector<24x24xf32>
    %616 = arith.select %614, %615, %581 : vector<24x24xi1>, vector<24x24xf32>
    %617 = arith.extui %614 : vector<24x24xi1> to vector<24x24xi32>
    %618 = arith.sitofp %617 : vector<24x24xi32> to vector<24x24xf32>
    %cst_238 = arith.constant dense<0.000000e+00> : vector<3x24xf32>
    %619 = tpu.matmul %1, %618, %cst_238 {dimension_numbers = #tpu.dot_dimension_numbers<[1], [0], [0], [1], [0, 0, 1, 1], [], []>} : vector<3x24xf32>, vector<24x24xf32>, vector<3x24xf32> -> vector<3x24xf32>
    %620 = arith.subf %619, %1 : vector<3x24xf32>
    %621 = math.absf %620 : vector<3x24xf32>
    %cst_239 = arith.constant 2.500000e-01 : f32
    %622 = vector.broadcast %cst_239 : f32 to vector<3x24xf32>
    %623 = arith.cmpf ole, %621, %622 : vector<3x24xf32>
    %624 = arith.select %623, %619, %1 : vector<3x24xi1>, vector<3x24xf32>
    %625 = vector.extract_strided_slice %624 {offsets = [0, 0], sizes = [1, 24], strides = [1, 1]} : vector<3x24xf32> to vector<1x24xf32>
    %626 = vector.shape_cast %625 : vector<1x24xf32> to vector<24xf32>
    %c0_240 = arith.constant 0 : index
    %c16 = arith.constant 16 : index
    %c0_241 = arith.constant 0 : index
    %627 = vector.load %arg7[%c0_240, %c16, %c0_241] : memref<3x20x24xf32, #tpu.memory_space<vmem>>, vector<1x1x24xf32>
    %628 = vector.shape_cast %627 : vector<1x1x24xf32> to vector<24xf32>
    %629 = vector.shape_cast %626 : vector<24xf32> to vector<1x1x24xf32>
    tpu.vector_store %arg7[%c0_240, %c16, %c0_241], %629 {strides = array<i32>} : memref<3x20x24xf32, #tpu.memory_space<vmem>>, vector<1x1x24xf32>,
    %630 = vector.extract_strided_slice %624 {offsets = [1, 0], sizes = [1, 24], strides = [1, 1]} : vector<3x24xf32> to vector<1x24xf32>
    %631 = vector.shape_cast %630 : vector<1x24xf32> to vector<24xf32>
    %c1_242 = arith.constant 1 : index
    %c16_243 = arith.constant 16 : index
    %c0_244 = arith.constant 0 : index
    %632 = vector.load %arg7[%c1_242, %c16_243, %c0_244] : memref<3x20x24xf32, #tpu.memory_space<vmem>>, vector<1x1x24xf32>
    %633 = vector.shape_cast %632 : vector<1x1x24xf32> to vector<24xf32>
    %634 = vector.shape_cast %631 : vector<24xf32> to vector<1x1x24xf32>
    tpu.vector_store %arg7[%c1_242, %c16_243, %c0_244], %634 {strides = array<i32>} : memref<3x20x24xf32, #tpu.memory_space<vmem>>, vector<1x1x24xf32>,
    %635 = vector.extract_strided_slice %624 {offsets = [2, 0], sizes = [1, 24], strides = [1, 1]} : vector<3x24xf32> to vector<1x24xf32>
    %636 = vector.shape_cast %635 : vector<1x24xf32> to vector<24xf32>
    %c2_245 = arith.constant 2 : index
    %c16_246 = arith.constant 16 : index
    %c0_247 = arith.constant 0 : index
    %637 = vector.load %arg7[%c2_245, %c16_246, %c0_247] : memref<3x20x24xf32, #tpu.memory_space<vmem>>, vector<1x1x24xf32>
    %638 = vector.shape_cast %637 : vector<1x1x24xf32> to vector<24xf32>
    %639 = vector.shape_cast %636 : vector<24xf32> to vector<1x1x24xf32>
    tpu.vector_store %arg7[%c2_245, %c16_246, %c0_247], %639 {strides = array<i32>} : memref<3x20x24xf32, #tpu.memory_space<vmem>>, vector<1x1x24xf32>,
    %cst_248 = arith.constant dense<0xFF800000> : vector<24xf32>
    %640 = vector.multi_reduction <maximumf>, %616, %cst_248 [0] : vector<24x24xf32> to vector<24xf32>
    %641 = vector.shape_cast %640 : vector<24xf32> to vector<1x24xf32>
    %642 = vector.broadcast %641 : vector<1x24xf32> to vector<24x24xf32>
    %643 = arith.cmpf oeq, %616, %642 : vector<24x24xf32>
    %cst_249 = arith.constant 2.400000e+01 : f32
    %644 = vector.broadcast %cst_249 : f32 to vector<24x24xf32>
    %645 = arith.select %643, %44, %644 : vector<24x24xi1>, vector<24x24xf32>
    %cst_250 = arith.constant dense<0x7F800000> : vector<24xf32>
    %646 = vector.multi_reduction <minimumf>, %645, %cst_250 [0] : vector<24x24xf32> to vector<24xf32>
    %647 = vector.shape_cast %646 : vector<24xf32> to vector<1x24xf32>
    %648 = vector.broadcast %647 : vector<1x24xf32> to vector<24x24xf32>
    %649 = arith.cmpf oeq, %44, %648 : vector<24x24xf32>
    %cst_251 = arith.constant 0xFF800000 : f32
    %650 = vector.broadcast %cst_251 : f32 to vector<24x24xf32>
    %651 = arith.select %649, %650, %616 : vector<24x24xi1>, vector<24x24xf32>
    %652 = arith.extui %649 : vector<24x24xi1> to vector<24x24xi32>
    %653 = arith.sitofp %652 : vector<24x24xi32> to vector<24x24xf32>
    %cst_252 = arith.constant dense<0.000000e+00> : vector<3x24xf32>
    %654 = tpu.matmul %1, %653, %cst_252 {dimension_numbers = #tpu.dot_dimension_numbers<[1], [0], [0], [1], [0, 0, 1, 1], [], []>} : vector<3x24xf32>, vector<24x24xf32>, vector<3x24xf32> -> vector<3x24xf32>
    %655 = arith.subf %654, %1 : vector<3x24xf32>
    %656 = math.absf %655 : vector<3x24xf32>
    %cst_253 = arith.constant 2.500000e-01 : f32
    %657 = vector.broadcast %cst_253 : f32 to vector<3x24xf32>
    %658 = arith.cmpf ole, %656, %657 : vector<3x24xf32>
    %659 = arith.select %658, %654, %1 : vector<3x24xi1>, vector<3x24xf32>
    %660 = vector.extract_strided_slice %659 {offsets = [0, 0], sizes = [1, 24], strides = [1, 1]} : vector<3x24xf32> to vector<1x24xf32>
    %661 = vector.shape_cast %660 : vector<1x24xf32> to vector<24xf32>
    %c0_254 = arith.constant 0 : index
    %c17 = arith.constant 17 : index
    %c0_255 = arith.constant 0 : index
    %662 = vector.load %arg7[%c0_254, %c17, %c0_255] : memref<3x20x24xf32, #tpu.memory_space<vmem>>, vector<1x1x24xf32>
    %663 = vector.shape_cast %662 : vector<1x1x24xf32> to vector<24xf32>
    %664 = vector.shape_cast %661 : vector<24xf32> to vector<1x1x24xf32>
    tpu.vector_store %arg7[%c0_254, %c17, %c0_255], %664 {strides = array<i32>} : memref<3x20x24xf32, #tpu.memory_space<vmem>>, vector<1x1x24xf32>,
    %665 = vector.extract_strided_slice %659 {offsets = [1, 0], sizes = [1, 24], strides = [1, 1]} : vector<3x24xf32> to vector<1x24xf32>
    %666 = vector.shape_cast %665 : vector<1x24xf32> to vector<24xf32>
    %c1_256 = arith.constant 1 : index
    %c17_257 = arith.constant 17 : index
    %c0_258 = arith.constant 0 : index
    %667 = vector.load %arg7[%c1_256, %c17_257, %c0_258] : memref<3x20x24xf32, #tpu.memory_space<vmem>>, vector<1x1x24xf32>
    %668 = vector.shape_cast %667 : vector<1x1x24xf32> to vector<24xf32>
    %669 = vector.shape_cast %666 : vector<24xf32> to vector<1x1x24xf32>
    tpu.vector_store %arg7[%c1_256, %c17_257, %c0_258], %669 {strides = array<i32>} : memref<3x20x24xf32, #tpu.memory_space<vmem>>, vector<1x1x24xf32>,
    %670 = vector.extract_strided_slice %659 {offsets = [2, 0], sizes = [1, 24], strides = [1, 1]} : vector<3x24xf32> to vector<1x24xf32>
    %671 = vector.shape_cast %670 : vector<1x24xf32> to vector<24xf32>
    %c2_259 = arith.constant 2 : index
    %c17_260 = arith.constant 17 : index
    %c0_261 = arith.constant 0 : index
    %672 = vector.load %arg7[%c2_259, %c17_260, %c0_261] : memref<3x20x24xf32, #tpu.memory_space<vmem>>, vector<1x1x24xf32>
    %673 = vector.shape_cast %672 : vector<1x1x24xf32> to vector<24xf32>
    %674 = vector.shape_cast %671 : vector<24xf32> to vector<1x1x24xf32>
    tpu.vector_store %arg7[%c2_259, %c17_260, %c0_261], %674 {strides = array<i32>} : memref<3x20x24xf32, #tpu.memory_space<vmem>>, vector<1x1x24xf32>,
    %cst_262 = arith.constant dense<0xFF800000> : vector<24xf32>
    %675 = vector.multi_reduction <maximumf>, %651, %cst_262 [0] : vector<24x24xf32> to vector<24xf32>
    %676 = vector.shape_cast %675 : vector<24xf32> to vector<1x24xf32>
    %677 = vector.broadcast %676 : vector<1x24xf32> to vector<24x24xf32>
    %678 = arith.cmpf oeq, %651, %677 : vector<24x24xf32>
    %cst_263 = arith.constant 2.400000e+01 : f32
    %679 = vector.broadcast %cst_263 : f32 to vector<24x24xf32>
    %680 = arith.select %678, %44, %679 : vector<24x24xi1>, vector<24x24xf32>
    %cst_264 = arith.constant dense<0x7F800000> : vector<24xf32>
    %681 = vector.multi_reduction <minimumf>, %680, %cst_264 [0] : vector<24x24xf32> to vector<24xf32>
    %682 = vector.shape_cast %681 : vector<24xf32> to vector<1x24xf32>
    %683 = vector.broadcast %682 : vector<1x24xf32> to vector<24x24xf32>
    %684 = arith.cmpf oeq, %44, %683 : vector<24x24xf32>
    %cst_265 = arith.constant 0xFF800000 : f32
    %685 = vector.broadcast %cst_265 : f32 to vector<24x24xf32>
    %686 = arith.select %684, %685, %651 : vector<24x24xi1>, vector<24x24xf32>
    %687 = arith.extui %684 : vector<24x24xi1> to vector<24x24xi32>
    %688 = arith.sitofp %687 : vector<24x24xi32> to vector<24x24xf32>
    %cst_266 = arith.constant dense<0.000000e+00> : vector<3x24xf32>
    %689 = tpu.matmul %1, %688, %cst_266 {dimension_numbers = #tpu.dot_dimension_numbers<[1], [0], [0], [1], [0, 0, 1, 1], [], []>} : vector<3x24xf32>, vector<24x24xf32>, vector<3x24xf32> -> vector<3x24xf32>
    %690 = arith.subf %689, %1 : vector<3x24xf32>
    %691 = math.absf %690 : vector<3x24xf32>
    %cst_267 = arith.constant 2.500000e-01 : f32
    %692 = vector.broadcast %cst_267 : f32 to vector<3x24xf32>
    %693 = arith.cmpf ole, %691, %692 : vector<3x24xf32>
    %694 = arith.select %693, %689, %1 : vector<3x24xi1>, vector<3x24xf32>
    %695 = vector.extract_strided_slice %694 {offsets = [0, 0], sizes = [1, 24], strides = [1, 1]} : vector<3x24xf32> to vector<1x24xf32>
    %696 = vector.shape_cast %695 : vector<1x24xf32> to vector<24xf32>
    %c0_268 = arith.constant 0 : index
    %c18 = arith.constant 18 : index
    %c0_269 = arith.constant 0 : index
    %697 = vector.load %arg7[%c0_268, %c18, %c0_269] : memref<3x20x24xf32, #tpu.memory_space<vmem>>, vector<1x1x24xf32>
    %698 = vector.shape_cast %697 : vector<1x1x24xf32> to vector<24xf32>
    %699 = vector.shape_cast %696 : vector<24xf32> to vector<1x1x24xf32>
    tpu.vector_store %arg7[%c0_268, %c18, %c0_269], %699 {strides = array<i32>} : memref<3x20x24xf32, #tpu.memory_space<vmem>>, vector<1x1x24xf32>,
    %700 = vector.extract_strided_slice %694 {offsets = [1, 0], sizes = [1, 24], strides = [1, 1]} : vector<3x24xf32> to vector<1x24xf32>
    %701 = vector.shape_cast %700 : vector<1x24xf32> to vector<24xf32>
    %c1_270 = arith.constant 1 : index
    %c18_271 = arith.constant 18 : index
    %c0_272 = arith.constant 0 : index
    %702 = vector.load %arg7[%c1_270, %c18_271, %c0_272] : memref<3x20x24xf32, #tpu.memory_space<vmem>>, vector<1x1x24xf32>
    %703 = vector.shape_cast %702 : vector<1x1x24xf32> to vector<24xf32>
    %704 = vector.shape_cast %701 : vector<24xf32> to vector<1x1x24xf32>
    tpu.vector_store %arg7[%c1_270, %c18_271, %c0_272], %704 {strides = array<i32>} : memref<3x20x24xf32, #tpu.memory_space<vmem>>, vector<1x1x24xf32>,
    %705 = vector.extract_strided_slice %694 {offsets = [2, 0], sizes = [1, 24], strides = [1, 1]} : vector<3x24xf32> to vector<1x24xf32>
    %706 = vector.shape_cast %705 : vector<1x24xf32> to vector<24xf32>
    %c2_273 = arith.constant 2 : index
    %c18_274 = arith.constant 18 : index
    %c0_275 = arith.constant 0 : index
    %707 = vector.load %arg7[%c2_273, %c18_274, %c0_275] : memref<3x20x24xf32, #tpu.memory_space<vmem>>, vector<1x1x24xf32>
    %708 = vector.shape_cast %707 : vector<1x1x24xf32> to vector<24xf32>
    %709 = vector.shape_cast %706 : vector<24xf32> to vector<1x1x24xf32>
    tpu.vector_store %arg7[%c2_273, %c18_274, %c0_275], %709 {strides = array<i32>} : memref<3x20x24xf32, #tpu.memory_space<vmem>>, vector<1x1x24xf32>,
    %cst_276 = arith.constant dense<0xFF800000> : vector<24xf32>
    %710 = vector.multi_reduction <maximumf>, %686, %cst_276 [0] : vector<24x24xf32> to vector<24xf32>
    %711 = vector.shape_cast %710 : vector<24xf32> to vector<1x24xf32>
    %712 = vector.broadcast %711 : vector<1x24xf32> to vector<24x24xf32>
    %713 = arith.cmpf oeq, %686, %712 : vector<24x24xf32>
    %cst_277 = arith.constant 2.400000e+01 : f32
    %714 = vector.broadcast %cst_277 : f32 to vector<24x24xf32>
    %715 = arith.select %713, %44, %714 : vector<24x24xi1>, vector<24x24xf32>
    %cst_278 = arith.constant dense<0x7F800000> : vector<24xf32>
    %716 = vector.multi_reduction <minimumf>, %715, %cst_278 [0] : vector<24x24xf32> to vector<24xf32>
    %717 = vector.shape_cast %716 : vector<24xf32> to vector<1x24xf32>
    %718 = vector.broadcast %717 : vector<1x24xf32> to vector<24x24xf32>
    %719 = arith.cmpf oeq, %44, %718 : vector<24x24xf32>
    %720 = arith.extui %719 : vector<24x24xi1> to vector<24x24xi32>
    %721 = arith.sitofp %720 : vector<24x24xi32> to vector<24x24xf32>
    %cst_279 = arith.constant dense<0.000000e+00> : vector<3x24xf32>
    %722 = tpu.matmul %1, %721, %cst_279 {dimension_numbers = #tpu.dot_dimension_numbers<[1], [0], [0], [1], [0, 0, 1, 1], [], []>} : vector<3x24xf32>, vector<24x24xf32>, vector<3x24xf32> -> vector<3x24xf32>
    %723 = arith.subf %722, %1 : vector<3x24xf32>
    %724 = math.absf %723 : vector<3x24xf32>
    %cst_280 = arith.constant 2.500000e-01 : f32
    %725 = vector.broadcast %cst_280 : f32 to vector<3x24xf32>
    %726 = arith.cmpf ole, %724, %725 : vector<3x24xf32>
    %727 = arith.select %726, %722, %1 : vector<3x24xi1>, vector<3x24xf32>
    %728 = vector.extract_strided_slice %727 {offsets = [0, 0], sizes = [1, 24], strides = [1, 1]} : vector<3x24xf32> to vector<1x24xf32>
    %729 = vector.shape_cast %728 : vector<1x24xf32> to vector<24xf32>
    %c0_281 = arith.constant 0 : index
    %c19 = arith.constant 19 : index
    %c0_282 = arith.constant 0 : index
    %730 = vector.load %arg7[%c0_281, %c19, %c0_282] : memref<3x20x24xf32, #tpu.memory_space<vmem>>, vector<1x1x24xf32>
    %731 = vector.shape_cast %730 : vector<1x1x24xf32> to vector<24xf32>
    %732 = vector.shape_cast %729 : vector<24xf32> to vector<1x1x24xf32>
    tpu.vector_store %arg7[%c0_281, %c19, %c0_282], %732 {strides = array<i32>} : memref<3x20x24xf32, #tpu.memory_space<vmem>>, vector<1x1x24xf32>,
    %733 = vector.extract_strided_slice %727 {offsets = [1, 0], sizes = [1, 24], strides = [1, 1]} : vector<3x24xf32> to vector<1x24xf32>
    %734 = vector.shape_cast %733 : vector<1x24xf32> to vector<24xf32>
    %c1_283 = arith.constant 1 : index
    %c19_284 = arith.constant 19 : index
    %c0_285 = arith.constant 0 : index
    %735 = vector.load %arg7[%c1_283, %c19_284, %c0_285] : memref<3x20x24xf32, #tpu.memory_space<vmem>>, vector<1x1x24xf32>
    %736 = vector.shape_cast %735 : vector<1x1x24xf32> to vector<24xf32>
    %737 = vector.shape_cast %734 : vector<24xf32> to vector<1x1x24xf32>
    tpu.vector_store %arg7[%c1_283, %c19_284, %c0_285], %737 {strides = array<i32>} : memref<3x20x24xf32, #tpu.memory_space<vmem>>, vector<1x1x24xf32>,
    %738 = vector.extract_strided_slice %727 {offsets = [2, 0], sizes = [1, 24], strides = [1, 1]} : vector<3x24xf32> to vector<1x24xf32>
    %739 = vector.shape_cast %738 : vector<1x24xf32> to vector<24xf32>
    %c2_286 = arith.constant 2 : index
    %c19_287 = arith.constant 19 : index
    %c0_288 = arith.constant 0 : index
    %740 = vector.load %arg7[%c2_286, %c19_287, %c0_288] : memref<3x20x24xf32, #tpu.memory_space<vmem>>, vector<1x1x24xf32>
    %741 = vector.shape_cast %740 : vector<1x1x24xf32> to vector<24xf32>
    %742 = vector.shape_cast %739 : vector<24xf32> to vector<1x1x24xf32>
    tpu.vector_store %arg7[%c2_286, %c19_287, %c0_288], %742 {strides = array<i32>} : memref<3x20x24xf32, #tpu.memory_space<vmem>>, vector<1x1x24xf32>,
    %c0_289 = arith.constant 0 : index
    %c0_290 = arith.constant 0 : index
    %743 = vector.load %arg2[%c0_289, %c0_290] : memref<24x64xf32, #tpu.memory_space<vmem>>, vector<24x64xf32>
    %c0_291 = arith.constant 0 : index
    %c0_292 = arith.constant 0 : index
    %744 = vector.load %arg3[%c0_291, %c0_292] : memref<1x64xf32, #tpu.memory_space<vmem>>, vector<1x64xf32>
    %c0_293 = arith.constant 0 : index
    %c0_294 = arith.constant 0 : index
    %c0_295 = arith.constant 0 : index
    %745 = vector.load %arg7[%c0_293, %c0_294, %c0_295] : memref<3x20x24xf32, #tpu.memory_space<vmem>>, vector<1x20x24xf32>
    %746 = vector.shape_cast %745 : vector<1x20x24xf32> to vector<20x24xf32>
    %cst_296 = arith.constant dense<0.000000e+00> : vector<20x64xf32>
    %747 = tpu.matmul %746, %743, %cst_296 {dimension_numbers = #tpu.dot_dimension_numbers<[1], [0], [0], [1], [0, 0, 1, 1], [], []>} : vector<20x24xf32>, vector<24x64xf32>, vector<20x64xf32> -> vector<20x64xf32>
    %748 = vector.broadcast %744 : vector<1x64xf32> to vector<20x64xf32>
    %749 = arith.addf %747, %748 : vector<20x64xf32>
    %cst_297 = arith.constant 0.000000e+00 : f32
    %750 = vector.broadcast %cst_297 : f32 to vector<20x64xf32>
    %751 = arith.maximumf %749, %750 : vector<20x64xf32>
    %c1_298 = arith.constant 1 : index
    %c0_299 = arith.constant 0 : index
    %c0_300 = arith.constant 0 : index
    %752 = vector.load %arg7[%c1_298, %c0_299, %c0_300] : memref<3x20x24xf32, #tpu.memory_space<vmem>>, vector<1x20x24xf32>
    %753 = vector.shape_cast %752 : vector<1x20x24xf32> to vector<20x24xf32>
    %cst_301 = arith.constant dense<0.000000e+00> : vector<20x64xf32>
    %754 = tpu.matmul %753, %743, %cst_301 {dimension_numbers = #tpu.dot_dimension_numbers<[1], [0], [0], [1], [0, 0, 1, 1], [], []>} : vector<20x24xf32>, vector<24x64xf32>, vector<20x64xf32> -> vector<20x64xf32>
    %755 = vector.broadcast %744 : vector<1x64xf32> to vector<20x64xf32>
    %756 = arith.addf %754, %755 : vector<20x64xf32>
    %cst_302 = arith.constant 0.000000e+00 : f32
    %757 = vector.broadcast %cst_302 : f32 to vector<20x64xf32>
    %758 = arith.maximumf %756, %757 : vector<20x64xf32>
    %759 = arith.maximumf %751, %758 : vector<20x64xf32>
    %c2_303 = arith.constant 2 : index
    %c0_304 = arith.constant 0 : index
    %c0_305 = arith.constant 0 : index
    %760 = vector.load %arg7[%c2_303, %c0_304, %c0_305] : memref<3x20x24xf32, #tpu.memory_space<vmem>>, vector<1x20x24xf32>
    %761 = vector.shape_cast %760 : vector<1x20x24xf32> to vector<20x24xf32>
    %cst_306 = arith.constant dense<0.000000e+00> : vector<20x64xf32>
    %762 = tpu.matmul %761, %743, %cst_306 {dimension_numbers = #tpu.dot_dimension_numbers<[1], [0], [0], [1], [0, 0, 1, 1], [], []>} : vector<20x24xf32>, vector<24x64xf32>, vector<20x64xf32> -> vector<20x64xf32>
    %763 = vector.broadcast %744 : vector<1x64xf32> to vector<20x64xf32>
    %764 = arith.addf %762, %763 : vector<20x64xf32>
    %cst_307 = arith.constant 0.000000e+00 : f32
    %765 = vector.broadcast %cst_307 : f32 to vector<20x64xf32>
    %766 = arith.maximumf %764, %765 : vector<20x64xf32>
    %767 = arith.maximumf %759, %766 : vector<20x64xf32>
    %c0_308 = arith.constant 0 : index
    %c0_309 = arith.constant 0 : index
    %768 = vector.load %arg4[%c0_308, %c0_309] : memref<64x1024xf32, #tpu.memory_space<vmem>>, vector<64x1024xf32>
    %cst_310 = arith.constant dense<0.000000e+00> : vector<20x1024xf32>
    %769 = tpu.matmul %767, %768, %cst_310 {dimension_numbers = #tpu.dot_dimension_numbers<[1], [0], [0], [1], [0, 0, 1, 1], [], []>} : vector<20x64xf32>, vector<64x1024xf32>, vector<20x1024xf32> -> vector<20x1024xf32>
    %cst_311 = arith.constant dense<0xFF800000> : vector<1024xf32>
    %770 = vector.multi_reduction <maximumf>, %769, %cst_311 [0] : vector<20x1024xf32> to vector<1024xf32>
    %771 = vector.shape_cast %770 : vector<1024xf32> to vector<1x1024xf32>
    %c0_312 = arith.constant 0 : index
    %c0_313 = arith.constant 0 : index
    %772 = vector.load %arg5[%c0_312, %c0_313] : memref<1x1024xf32, #tpu.memory_space<vmem>>, vector<1x1024xf32>
    %773 = arith.addf %771, %772 : vector<1x1024xf32>
    %c0_314 = arith.constant 0 : index
    %c0_315 = arith.constant 0 : index
    %c0_316 = arith.constant 0 : index
    %774 = vector.load %arg6[%c0_314, %c0_315, %c0_316] : memref<1x1x1024xf32, #tpu.memory_space<vmem>>, vector<1x1x1024xf32>
    %775 = vector.shape_cast %774 : vector<1x1x1024xf32> to vector<1x1024xf32>
    %776 = vector.shape_cast %773 : vector<1x1024xf32> to vector<1x1x1024xf32>
    tpu.vector_store %arg6[%c0_314, %c0_315, %c0_316], %776 {strides = array<i32>} : memref<1x1x1024xf32, #tpu.memory_space<vmem>>, vector<1x1x1024xf32>,
    return
  }
  func.func @transform_0(%arg0: i32) -> (i32, i32, i32) {
    %c0_i32 = arith.constant 0 : i32
    %c0_i32_0 = arith.constant 0 : i32
    %c0_i32_1 = arith.constant 0 : i32
    return %arg0, %c0_i32, %c0_i32_0 : i32, i32, i32
  }
  func.func @transform_1(%arg0: i32) -> (i32, i32) {
    %c0_i32 = arith.constant 0 : i32
    %c0_i32_0 = arith.constant 0 : i32
    %c0_i32_1 = arith.constant 0 : i32
    return %c0_i32, %c0_i32_0 : i32, i32
  }
  func.func @transform_2(%arg0: i32) -> (i32, i32) {
    %c0_i32 = arith.constant 0 : i32
    %c0_i32_0 = arith.constant 0 : i32
    %c0_i32_1 = arith.constant 0 : i32
    return %c0_i32, %c0_i32_0 : i32, i32
  }
  func.func @transform_3(%arg0: i32) -> (i32, i32) {
    %c0_i32 = arith.constant 0 : i32
    %c0_i32_0 = arith.constant 0 : i32
    %c0_i32_1 = arith.constant 0 : i32
    return %c0_i32, %c0_i32_0 : i32, i32
  }
  func.func @transform_4(%arg0: i32) -> (i32, i32) {
    %c0_i32 = arith.constant 0 : i32
    %c0_i32_0 = arith.constant 0 : i32
    %c0_i32_1 = arith.constant 0 : i32
    return %c0_i32, %c0_i32_0 : i32, i32
  }
  func.func @transform_5(%arg0: i32) -> (i32, i32, i32) {
    %c0_i32 = arith.constant 0 : i32
    %c0_i32_0 = arith.constant 0 : i32
    %c0_i32_1 = arith.constant 0 : i32
    return %arg0, %c0_i32, %c0_i32_0 : i32, i32, i32
  }
}

</mosaic_0001>

<llo_original>
// kernel: dgcnn_forward.1
$region0: #{dgcnn_forward.1}
  #allocation0 [shape = 'u32[]', space=smem, size = 0x4, offset = 0x4, fixed_abs, tag = 'smem constant byte address 0x4 - core index']
  #allocation1 [shape = 'u32[144,128]{1,0:T(1,128)}', space=vmem, size = 0x12000, scoped, tag = 'internal scratch']
  #allocation2 [shape = 'f32[3,20,24]{2,1,0:T(8,128)}', space=vmem, size = 0x9000, scoped, tag = 'scratch operand']
  %s0 = inlined_call_operand.vmem [shape: f32[2,3,24], index: 0, kind: input, shape index: {}]
  %s1 = inlined_call_operand.vmem [shape: f32[24,64], index: 1, kind: input, shape index: {}]
  %s2 = inlined_call_operand.vmem [shape: f32[1,64], index: 2, kind: input, shape index: {}]
  %s3 = inlined_call_operand.hbm [shape: f32[64,1024], index: 3, kind: input, shape index: {}]
  %s4 = inlined_call_operand.hbm [shape: f32[1,1024], index: 4, kind: input, shape index: {}]
  %s5 = inlined_call_operand.vmem [shape: f32[2,1,1024], index: 5, kind: output, shape index: {}]
  %s6 = sld [smem:[#allocation0]]
  $region61: #{dgcnn_forward.1} parent=0
    _
  %s8 = ssub.s32 1, %s6
  %s9 = scalar_select 0, %s8, %s6
  $region1: #{dgcnn_forward.1} parent=0
    #allocation3 [shape = 'u8[262144]{0}', space=vmem, size = 0x40000, scoped, tag = 'input window, operand 3, single buffered']
    #allocation4 [shape = 's32[2]{0}', space=sflag, size = 0x8, scoped, tag = 'scoped memory for dgcnn_forward.1']
    #allocation5 [shape = 'u8[4096]{0}', space=vmem, size = 0x1000, scoped, tag = 'input window, operand 4, single buffered']
    #allocation6 [shape = 's32[1]{0}', space=sflag, size = 0x4, scoped, tag = 'scoped memory for dgcnn_forward.1']
    %10 = vsyncpa [#allocation4], 0
    %11 = vsyncpa [#allocation6], 0
    loop: start=0, step=1, limit=4
    $region2: #{dgcnn_forward.1} parent=1 // loop_pre_header
      _
    $region3: #{dgcnn_forward.1} parent=1 // loop_header
      %s13 = sphi 0, %s17
      %p14 = scmp.ge.s32.totalorder %s13, 4
      %s23 = sphi 0, %s25
      %s26 = sphi 0, %s23
      %s27 = sphi 0, %s26
      %s43 = sphi 0, %s27
      %s47 = sphi 0, %s47
      %s49 = sphi 0, %s47
      %s50 = sphi 0, %s49
      %s64 = sphi 0, %s50
      %s68 = sphi 0, %s68
      %s70 = sphi 0, %s68
      %s71 = sphi 0, %s70
      %s85 = sphi 0, %s71
      %s89 = sphi 0, %s89
      %s91 = sphi 0, %s89
      %s92 = sphi 0, %s91
      %s106 = sphi 0, %s92
      %s110 = sphi 0, %s110
      %s112 = sphi 0, %s110
      %s113 = sphi 0, %s112
      %s127 = sphi 0, %s113
      %s133 = sphi 0, %s135
      %s136 = sphi 0, %s133
      %s137 = sphi 0, %s136
      %s153 = sphi 0, %s137
    $region4: #{dgcnn_forward.1} parent=1 // loop_header_branch
      %16 = sbr.rel (%p14) target = $region8
    $region5: #{dgcnn_forward.1} parent=1 // loop_body
      %s18 = ssub.s32 %s13, 1
      %s19 = ssub.s32 %s13, 2
      %s20 = sadd.s32 %s13, 1
      %s21 = ssub.s32 %s13, %s20
      %p22 = scmp.eq.s32.totalorder %s21, 0
      %s24 = sadd.s32 %s23, 1
      %s25 = scalar_select %p22, %s23, %s24
      %p28 = pneg %p22
      %p29 = scmp.eq.s32.totalorder %s13, 1
      %p30 = por %p28, %p29
      %p31 = scmp.ne.s32.totalorder %s23, %s26
      %p32 = scmp.eq.s32.totalorder %s13, 0
      %p33 = por %p31, %p32
      %p34 = scmp.ne.s32.totalorder %s23, %s26
      %p35 = scmp.eq.s32.totalorder %s18, 1
      %p36 = por %p34, %p35
      %p37 = scmp.ne.s32.totalorder %s26, %s27
      %p38 = scmp.eq.s32.totalorder %s18, 0
      %p39 = por %p37, %p38
      %p40 = scmp.ne.s32.totalorder %s26, %s27
      %p41 = scmp.eq.s32.totalorder %s19, 1
      %p42 = por %p40, %p41
      %p44 = scmp.ne.s32.totalorder %s27, %s43
      %p45 = scmp.eq.s32.totalorder %s19, 0
      %p46 = por %p44, %p45
      %s48 = sadd.s32 %s47, 1
      %p51 = scmp.eq.s32.totalorder %s13, 1
      %p52 = scmp.ne.s32.totalorder %s47, %s49
      %p53 = scmp.eq.s32.totalorder %s13, 0
      %p54 = por %p52, %p53
      %p55 = scmp.ne.s32.totalorder %s47, %s49
      %p56 = scmp.eq.s32.totalorder %s18, 1
      %p57 = por %p55, %p56
      %p58 = scmp.ne.s32.totalorder %s49, %s50
      %p59 = scmp.eq.s32.totalorder %s18, 0
      %p60 = por %p58, %p59
      %p61 = scmp.ne.s32.totalorder %s49, %s50
      %p62 = scmp.eq.s32.totalorder %s19, 1
      %p63 = por %p61, %p62
      %p65 = scmp.ne.s32.totalorder %s50, %s64
      %p66 = scmp.eq.s32.totalorder %s19, 0
      %p67 = por %p65, %p66
      %s69 = sadd.s32 %s68, 1
      %p72 = scmp.eq.s32.totalorder %s13, 1
      %p73 = scmp.ne.s32.totalorder %s68, %s70
      %p74 = scmp.eq.s32.totalorder %s13, 0
      %p75 = por %p73, %p74
      %p76 = scmp.ne.s32.totalorder %s68, %s70
      %p77 = scmp.eq.s32.totalorder %s18, 1
      %p78 = por %p76, %p77
      %p79 = scmp.ne.s32.totalorder %s70, %s71
      %p80 = scmp.eq.s32.totalorder %s18, 0
      %p81 = por %p79, %p80
      %p82 = scmp.ne.s32.totalorder %s70, %s71
      %p83 = scmp.eq.s32.totalorder %s19, 1
      %p84 = por %p82, %p83
      %p86 = scmp.ne.s32.totalorder %s71, %s85
      %p87 = scmp.eq.s32.totalorder %s19, 0
      %p88 = por %p86, %p87
      %s90 = sadd.s32 %s89, 1
      %p93 = scmp.eq.s32.totalorder %s13, 1
      %p94 = scmp.ne.s32.totalorder %s89, %s91
      %p95 = scmp.eq.s32.totalorder %s13, 0
      %p96 = por %p94, %p95
      %p97 = scmp.ne.s32.totalorder %s89, %s91
      %p98 = scmp.eq.s32.totalorder %s18, 1
      %p99 = por %p97, %p98
      %p100 = scmp.ne.s32.totalorder %s91, %s92
      %p101 = scmp.eq.s32.totalorder %s18, 0
      %p102 = por %p100, %p101
      %p103 = scmp.ne.s32.totalorder %s91, %s92
      %p104 = scmp.eq.s32.totalorder %s19, 1
      %p105 = por %p103, %p104
      %p107 = scmp.ne.s32.totalorder %s92, %s106
      %p108 = scmp.eq.s32.totalorder %s19, 0
      %p109 = por %p107, %p108
      %s111 = sadd.s32 %s110, 1
      %p114 = scmp.eq.s32.totalorder %s13, 1
      %p115 = scmp.ne.s32.totalorder %s110, %s112
      %p116 = scmp.eq.s32.totalorder %s13, 0
      %p117 = por %p115, %p116
      %p118 = scmp.ne.s32.totalorder %s110, %s112
      %p119 = scmp.eq.s32.totalorder %s18, 1
      %p120 = por %p118, %p119
      %p121 = scmp.ne.s32.totalorder %s112, %s113
      %p122 = scmp.eq.s32.totalorder %s18, 0
      %p123 = por %p121, %p122
      %p124 = scmp.ne.s32.totalorder %s112, %s113
      %p125 = scmp.eq.s32.totalorder %s19, 1
      %p126 = por %p124, %p125
      %p128 = scmp.ne.s32.totalorder %s113, %s127
      %p129 = scmp.eq.s32.totalorder %s19, 0
      %p130 = por %p128, %p129
      %s131 = ssub.s32 %s13, %s20
      %p132 = scmp.eq.s32.totalorder %s131, 0
      %s134 = sadd.s32 %s133, 1
      %s135 = scalar_select %p132, %s133, %s134
      %p138 = pneg %p132
      %p139 = scmp.eq.s32.totalorder %s13, 1
      %p140 = por %p138, %p139
      %p141 = scmp.ne.s32.totalorder %s133, %s136
      %p142 = scmp.eq.s32.totalorder %s13, 0
      %p143 = por %p141, %p142
      %p144 = scmp.ne.s32.totalorder %s133, %s136
      %p145 = scmp.eq.s32.totalorder %s18, 1
      %p146 = por %p144, %p145
      %p147 = scmp.ne.s32.totalorder %s136, %s137
      %p148 = scmp.eq.s32.totalorder %s18, 0
      %p149 = por %p147, %p148
      %p150 = scmp.ne.s32.totalorder %s136, %s137
      %p151 = scmp.eq.s32.totalorder %s19, 1
      %p152 = por %p150, %p151
      %p154 = scmp.ne.s32.totalorder %s137, %s153
      %p155 = scmp.eq.s32.totalorder %s19, 0
      %p156 = por %p154, %p155
      %p157 = scmp.le.s32.totalorder 1, %s13
      %p158 = scmp.lt.s32.totalorder %s13, 3
      %p159 = pnand %p157, %p158
      %p160 = pneg %p159
      // Predicated region
      $region9: #{dgcnn_forward.1} parent=5 // pred_check
        _
      $region10: #{dgcnn_forward.1} parent=5 // pred_check_branch
        %162 = sbr.rel (%p159) target = $region12
      $region11: #{dgcnn_forward.1} parent=5 // pred_region
        %s163 = ssub.s32 %s13, 1
        // Predicated region
        $region13: #{dgcnn_forward.1} parent=11 // pred_check
          %p164 = pneg %p60
        $region14: #{dgcnn_forward.1} parent=11 // pred_check_branch
          %166 = sbr.rel (%p164) target = $region16
        $region15: #{dgcnn_forward.1} parent=11 // pred_region
          _
        $region16: #{dgcnn_forward.1} parent=11 // pred_fallthru
          _
        // Predicated region
        $region17: #{dgcnn_forward.1} parent=11 // pred_check
          %p167 = pneg %p81
        $region18: #{dgcnn_forward.1} parent=11 // pred_check_branch
          %169 = sbr.rel (%p167) target = $region20
        $region19: #{dgcnn_forward.1} parent=11 // pred_region
          _
        $region20: #{dgcnn_forward.1} parent=11 // pred_fallthru
          _
        // Predicated region
        $region21: #{dgcnn_forward.1} parent=11 // pred_check
          %p170 = pneg %p102
        $region22: #{dgcnn_forward.1} parent=11 // pred_check_branch
          %172 = sbr.rel (%p170) target = $region24
        $region23: #{dgcnn_forward.1} parent=11 // pred_region
          %s174 = ssub.s32 8192, 8192
          %175 = vsyncadd [#allocation4], %s174
          %s176 = sshll.u32 [#allocation3], 4
          %s177 = int_to_ptr.vmem [resolvable:$true] %s176
          %182 = dma.hbm_to_vmem [thread:$0]  %s3, 8192, %s177, [#allocation4], 1024, 1024, 64
        $region24: #{dgcnn_forward.1} parent=11 // pred_fallthru
          _
        // Predicated region
        $region25: #{dgcnn_forward.1} parent=11 // pred_check
          %p183 = pneg %p123
        $region26: #{dgcnn_forward.1} parent=11 // pred_check_branch
          %185 = sbr.rel (%p183) target = $region28
        $region27: #{dgcnn_forward.1} parent=11 // pred_region
          %s187 = ssub.s32 128, 128
          %188 = vsyncadd [#allocation6], %s187
          %s190 = sshll.u32 [#allocation5], 4
          %s191 = int_to_ptr.vmem [resolvable:$true] %s190
          %193 = dma.hbm_to_vmem [thread:$0]  %s4, 128, %s191, [#allocation6]
        $region28: #{dgcnn_forward.1} parent=11 // pred_fallthru
          _
      $region12: #{dgcnn_forward.1} parent=5 // pred_fallthru
        _
      %p194 = scmp.lt.s32.totalorder %s13, 2
      // Predicated region
      $region29: #{dgcnn_forward.1} parent=5 // pred_check
        %p195 = pneg %p194
      $region30: #{dgcnn_forward.1} parent=5 // pred_check_branch
        %197 = sbr.rel (%p195) target = $region32
      $region31: #{dgcnn_forward.1} parent=5 // pred_region
        // Predicated region
        $region33: #{dgcnn_forward.1} parent=31 // pred_check
          %p198 = pneg %p33
        $region34: #{dgcnn_forward.1} parent=31 // pred_check_branch
          %200 = sbr.rel (%p198) target = $region36
        $region35: #{dgcnn_forward.1} parent=31 // pred_region
          %p201 = scmp.lt.s32.totalorder %s13, 1
          %s202 = scalar_select %p201, %s13, 1
          %s203 = smul.addr %s202, 4
          %s204 = scalar_lea.vmem %s0, %s203
        $region36: #{dgcnn_forward.1} parent=31 // pred_fallthru
          _
      $region32: #{dgcnn_forward.1} parent=5 // pred_fallthru
        _
      %p205 = scmp.le.s32.totalorder 1, %s13
      %p206 = scmp.lt.s32.totalorder %s13, 3
      %p207 = pnand %p205, %p206
      %p208 = pneg %p207
      // Predicated region
      $region37: #{dgcnn_forward.1} parent=5 // pred_check
        _
      $region38: #{dgcnn_forward.1} parent=5 // pred_check_branch
        %210 = sbr.rel (%p207) target = $region40
      $region39: #{dgcnn_forward.1} parent=5 // pred_region
        %s211 = ssub.s32 %s13, 1
        // Predicated region
        $region41: #{dgcnn_forward.1} parent=39 // pred_check
          %p212 = pneg %p102
        $region42: #{dgcnn_forward.1} parent=39 // pred_check_branch
          %214 = sbr.rel (%p212) target = $region44
        $region43: #{dgcnn_forward.1} parent=39 // pred_region
          %215 = dma.done [#allocation4], 8192
        $region44: #{dgcnn_forward.1} parent=39 // pred_fallthru
          _
        // Predicated region
        $region45: #{dgcnn_forward.1} parent=39 // pred_check
          %p216 = pneg %p123
        $region46: #{dgcnn_forward.1} parent=39 // pred_check_branch
          %218 = sbr.rel (%p216) target = $region48
        $region47: #{dgcnn_forward.1} parent=39 // pred_region
          %219 = dma.done [#allocation6], 128
        $region48: #{dgcnn_forward.1} parent=39 // pred_fallthru
          _
        %p220 = scmp.lt.s32.totalorder %s18, 1
        %s221 = scalar_select %p220, %s18, 1
        %s222 = smul.addr %s221, 4
        %s223 = scalar_lea.vmem %s0, %s222
        %p224 = pneg %p39
        %p225 = pneg %p36
        %p226 = pneg %p60
        %p227 = pneg %p57
        %p228 = pneg %p81
        %p229 = pneg %p78
        %p230 = pneg %p102
        %p231 = pneg %p99
        %p232 = pneg %p123
        %p233 = pneg %p120
        %p234 = pneg %p149
        %p235 = pneg %p146
        %p236 = scmp.lt.s32.totalorder %s18, 1
        %s237 = scalar_select %p236, %s18, 1
        %s238 = smul.addr %s237, 8
        %s239 = scalar_lea.vmem %s5, %s238
        %p240 = scmp.lt.s32.totalorder %s18, 1
        %s241 = scalar_select %p240, %s18, 1
        %s242 = smul.addr %s241, 4
        %s243 = scalar_lea.vmem %s0, %s242
        %p244 = scmp.lt.s32.totalorder %s18, 1
        %s245 = scalar_select %p244, %s18, 1
        %s246 = smul.addr %s245, 8
        %s247 = scalar_lea.vmem %s5, %s246
        %v248 = vld [vmem:[%s243] sm:$0x7]
        %v249 = vlaneseq
        %v250 = vshrl.u32 %v249, 7
        %v251 = vadd.s32 %v250, 8
        %v252 = vadd.s32 %v250, 16
        %v253 = vlaneseq
        %v254 = vand.u32 %v253, 127
        %vm255 = vcmp.eq.s32.totalorder %v250, %v254
        %vm256 = vcmp.eq.s32.totalorder %v251, %v254
        %vm257 = vcmp.eq.s32.totalorder %v252, %v254
        %v258 = vlaneseq
        %v259 = vshrl.u32 %v258, 7
        %v260 = vsub.s32 0, %v259
        %v261 = vrot.slane %v248, %v260
        %v262 = vsel %vm255, %v261, 0.0
        %v263 = vsel %vm256, %v261, 0.0
        %v264 = vsel %vm257, %v261, 0.0
        %vm265 = vcmask 195584
        %v266 = vsel %vm265, %v262, 0.0
        %267 = vadd.xlane.f32.xlu0 %v266
        %v268 = vpop.xlane.xlu0 %267
        %v269 = vsel %vm265, %v263, 0.0
        %270 = vadd.xlane.f32.xlu0 %v269
        %v271 = vpop.xlane.xlu0 %270
        %v272 = vsel %vm265, %v264, 0.0
        %273 = vadd.xlane.f32.xlu0 %v272
        %v274 = vpop.xlane.xlu0 %273
        %v275 = vsub.f32 %v268, %v261
        %v276 = vsub.f32 %v271, %v261
        %v277 = vsub.f32 %v274, %v261
        %v278 = vmul.f32 %v275, %v275
        %v279 = vmul.f32 %v276, %v276
        %v280 = vmul.f32 %v277, %v277
        %v281 = vadd.f32 %v278, 0.0
        %v282 = vadd.f32 %v279, 0.0
        %v283 = vadd.f32 %v280, 0.0
        %v284 = vlaneseq
        %v285 = vshrl.u32 %v284, 7
        %v286 = vsub.s32 1, %v285
        %v287 = vrot.slane %v248, %v286
        %v288 = vsel %vm255, %v287, 0.0
        %v289 = vsel %vm256, %v287, 0.0
        %v290 = vsel %vm257, %v287, 0.0
        %v291 = vsel %vm265, %v288, 0.0
        %292 = vadd.xlane.f32.xlu0 %v291
        %v293 = vpop.xlane.xlu0 %292
        %v294 = vsel %vm265, %v289, 0.0
        %295 = vadd.xlane.f32.xlu0 %v294
        %v296 = vpop.xlane.xlu0 %295
        %v297 = vsel %vm265, %v290, 0.0
        %298 = vadd.xlane.f32.xlu0 %v297
        %v299 = vpop.xlane.xlu0 %298
        %v300 = vsub.f32 %v293, %v287
        %v301 = vsub.f32 %v296, %v287
        %v302 = vsub.f32 %v299, %v287
        %v303 = vmul.f32 %v300, %v300
        %v304 = vmul.f32 %v301, %v301
        %v305 = vmul.f32 %v302, %v302
        %v306 = vadd.f32 %v281, %v303
        %v307 = vadd.f32 %v282, %v304
        %v308 = vadd.f32 %v283, %v305
        %v309 = vlaneseq
        %v310 = vshrl.u32 %v309, 7
        %v311 = vsub.s32 2, %v310
        %v312 = vrot.slane %v248, %v311
        %v313 = vsel %vm255, %v312, 0.0
        %v314 = vsel %vm256, %v312, 0.0
        %v315 = vsel %vm257, %v312, 0.0
        %v316 = vsel %vm265, %v313, 0.0
        %317 = vadd.xlane.f32.xlu0 %v316
        %v318 = vpop.xlane.xlu0 %317
        %v319 = vsel %vm265, %v314, 0.0
        %320 = vadd.xlane.f32.xlu0 %v319
        %v321 = vpop.xlane.xlu0 %320
        %v322 = vsel %vm265, %v315, 0.0
        %323 = vadd.xlane.f32.xlu0 %v322
        %v324 = vpop.xlane.xlu0 %323
        %v325 = vsub.f32 %v318, %v312
        %v326 = vsub.f32 %v321, %v312
        %v327 = vsub.f32 %v324, %v312
        %v328 = vmul.f32 %v325, %v325
        %v329 = vmul.f32 %v326, %v326
        %v330 = vmul.f32 %v327, %v327
        %v331 = vadd.f32 %v306, %v328
        %v332 = vadd.f32 %v307, %v329
        %v333 = vadd.f32 %v308, %v330
        %v334 = vsub.f32 0.0, %v331
        %v335 = vsub.f32 0.0, %v332
        %v336 = vsub.f32 0.0, %v333
        %v337 = vcvt.s32.f32 %v250
        %v338 = vcvt.s32.f32 %v251
        %v339 = vcvt.s32.f32 %v252
        %v340 = vsel %vm265, %v334, -inf
        %v341 = vsel %vm265, %v335, -inf
        %v342 = vsel %vm265, %v336, -inf
        %v343 = vmax.f32 %v340, %v341
        %v344 = vmax.f32 %v343, %v342
        %v345 = vrot.slane %v344, 4
        %v346 = vmax.f32 %v344, %v345
        %v347 = vrot.slane %v346, 2
        %v348 = vmax.f32 %v346, %v347
        %v349 = vrot.slane %v348, 1
        %v350 = vmax.f32 %v348, %v349
        %vm351 = vcmp.eq.f32.partialorder %v334, %v350
        %vm352 = vcmp.eq.f32.partialorder %v335, %v350
        %vm353 = vcmp.eq.f32.partialorder %v336, %v350
        %v354 = vsel %vm351, %v337, 24.0
        %v355 = vsel %vm352, %v338, 24.0
        %v356 = vsel %vm353, %v339, 24.0
        %v357 = vsel %vm265, %v354, inf
        %v358 = vsel %vm265, %v355, inf
        %v359 = vsel %vm265, %v356, inf
        %v360 = vmin.f32 %v357, %v358
        %v361 = vmin.f32 %v360, %v359
        %v362 = vrot.slane %v361, 4
        %v363 = vmin.f32 %v361, %v362
        %v364 = vrot.slane %v363, 2
        %v365 = vmin.f32 %v363, %v364
        %v366 = vrot.slane %v365, 1
        %v367 = vmin.f32 %v365, %v366
        %vm368 = vcmp.eq.f32.partialorder %v337, %v367
        %vm369 = vcmp.eq.f32.partialorder %v338, %v367
        %vm370 = vcmp.eq.f32.partialorder %v339, %v367
        %v371 = vsel %vm368, -inf, %v334
        %v372 = vsel %vm369, -inf, %v335
        %v373 = vsel %vm370, -inf, %v336
        %v374 = vsel %vm368, 1, 0
        %v375 = vsel %vm369, 1, 0
        %v376 = vsel %vm370, 1, 0
        %v377 = vcvt.s32.f32 %v374
        %v378 = vcvt.s32.f32 %v375
        %v379 = vcvt.s32.f32 %v376
        %v381 = vsel %vm265, %v248, 0
        %383 = vmatprep.subr.mxu0 0.0
        %384 = vmatpush1.msra.mxu0 %v377
        %385 = vmatprep.subr.mxu0 0.0
        %386 = vmatpush1.msra.mxu0 %v378
        %387 = vmatprep.subr.mxu0 0.0
        %388 = vmatpush1.msra.mxu0 %v379
        %389 = vmatprep.subr.mxu0 0.0
        %390 = vmatpush1.msra.mxu0 0.0
        %391 = vmatprep.subr.mxu0 0.0
        %392 = vmatpush1.msra.mxu0 0.0
        %393 = vmatprep.subr.mxu0 0.0
        %394 = vmatpush1.msra.mxu0 0.0
        %395 = vmatprep.subr.mxu0 0.0
        %396 = vmatpush1.msra.mxu0 0.0
        %397 = vmatprep.subr.mxu0 0.0
        %398 = vmatpush1.msra.mxu0 0.0
        %399 = vmatprep.subr.mxu0 0.0
        %400 = vmatpush1.msra.mxu0 0.0
        %401 = vmatprep.subr.mxu0 0.0
        %402 = vmatpush1.msra.mxu0 0.0
        %403 = vmatprep.subr.mxu0 0.0
        %404 = vmatpush1.msra.mxu0 0.0
        %405 = vmatprep.subr.mxu0 0.0
        %406 = vmatpush1.msra.mxu0 0.0
        %407 = vmatprep.subr.mxu0 0.0
        %408 = vmatpush1.msra.mxu0 0.0
        %409 = vmatprep.subr.mxu0 0.0
        %410 = vmatpush1.msra.mxu0 0.0
        %411 = vmatprep.subr.mxu0 0.0
        %412 = vmatpush1.msra.mxu0 0.0
        %413 = vmatprep.subr.mxu0 0.0
        %414 = vmatpush1.msra.mxu0 0.0
        %415 = vmatprep.subr.mxu0 0.0
        %416 = vmatpush1.msra.mxu0 0.0
        %417 = vmatprep.subr.mxu0 0.0
        %418 = vmatpush1.msra.mxu0 0.0
        %419 = vmatprep.subr.mxu0 0.0
        %420 = vmatpush1.msra.mxu0 0.0
        %421 = vmatprep.subr.mxu0 0.0
        %422 = vmatpush1.msra.mxu0 0.0
        %423 = vmatprep.subr.mxu0 0.0
        %424 = vmatpush1.msra.mxu0 0.0
        %425 = vmatprep.subr.mxu0 0.0
        %426 = vmatpush1.msra.mxu0 0.0
        %427 = vmatprep.subr.mxu0 0.0
        %428 = vmatpush1.msra.mxu0 0.0
        %429 = vmatprep.subr.mxu0 0.0
        %430 = vmatpush1.msra.mxu0 0.0
        %431 = vmatprep.subr.mxu0 0.0
        %432 = vmatpush1.msra.mxu0 0.0
        %433 = vmatprep.subr.mxu0 0.0
        %434 = vmatpush1.msra.mxu0 0.0
        %435 = vmatprep.subr.mxu0 0.0
        %436 = vmatpush1.msra.mxu0 0.0
        %437 = vmatprep.subr.mxu0 0.0
        %438 = vmatpush1.msra.mxu0 0.0
        %439 = vmatprep.subr.mxu0 0.0
        %440 = vmatpush1.msra.mxu0 0.0
        %441 = vmatprep.subr.mxu0 0.0
        %442 = vmatpush1.msra.mxu0 0.0
        %443 = vmatprep.subr.mxu0 0.0
        %444 = vmatpush1.msra.mxu0 0.0
        %445 = vmatprep.subr.mxu0 0.0
        %446 = vmatpush1.msra.mxu0 0.0
        %447 = vmatprep.mubr.f32.mxu0 0.0
        %448 = vmatmul.mubr.f32.gmra.mrb[0].mxu0 %v381
        %v449 = vpop.f32.mrb[0].mxu0
        %v450 = vadd.f32 0.0, %v449
        %v451 = vpop.f32.mrb[0].mxu0
        %452 = vdwg.mxu0
        %v453 = vsub.f32 %v450, %v248
        %v454 = vand.u32 2147483647, %v453
        %vm455 = vcmp.le.f32.partialorder %v454, 0.25
        %v456 = vsel %vm455, %v450, %v248
        %vm457 = vcmask 188416
        %458 = vst.msk [vmem:[#allocation2] sm:$0x1] %vm457, %v456
        %s459 = scalar_lea.vmem [#allocation2], 24
        %vm460 = vcmask 189441
        %461 = vst.msk [vmem:[%s459 - $0x1] sm:$0x2] %vm460, %v456
        %s462 = scalar_lea.vmem [#allocation2], 48
        %vm463 = vcmask 190466
        %464 = vst.msk [vmem:[%s462 - $0x2] sm:$0x4] %vm463, %v456
        %v465 = vsel %vm265, %v371, -inf
        %v466 = vsel %vm265, %v372, -inf
        %v467 = vsel %vm265, %v373, -inf
        %v468 = vmax.f32 %v465, %v466
        %v469 = vmax.f32 %v468, %v467
        %v470 = vrot.slane %v469, 4
        %v471 = vmax.f32 %v469, %v470
        %v472 = vrot.slane %v471, 2
        %v473 = vmax.f32 %v471, %v472
        %v474 = vrot.slane %v473, 1
        %v475 = vmax.f32 %v473, %v474
        %vm476 = vcmp.eq.f32.partialorder %v371, %v475
        %vm477 = vcmp.eq.f32.partialorder %v372, %v475
        %vm478 = vcmp.eq.f32.partialorder %v373, %v475
        %v479 = vsel %vm476, %v337, 24.0
        %v480 = vsel %vm477, %v338, 24.0
        %v481 = vsel %vm478, %v339, 24.0
        %v482 = vsel %vm265, %v479, inf
        %v483 = vsel %vm265, %v480, inf
        %v484 = vsel %vm265, %v481, inf
        %v485 = vmin.f32 %v482, %v483
        %v486 = vmin.f32 %v485, %v484
        %v487 = vrot.slane %v486, 4
        %v488 = vmin.f32 %v486, %v487
        %v489 = vrot.slane %v488, 2
        %v490 = vmin.f32 %v488, %v489
        %v491 = vrot.slane %v490, 1
        %v492 = vmin.f32 %v490, %v491
        %vm493 = vcmp.eq.f32.partialorder %v337, %v492
        %vm494 = vcmp.eq.f32.partialorder %v338, %v492
        %vm495 = vcmp.eq.f32.partialorder %v339, %v492
        %v496 = vsel %vm493, -inf, %v371
        %v497 = vsel %vm494, -inf, %v372
        %v498 = vsel %vm495, -inf, %v373
        %v499 = vsel %vm493, 1, 0
        %v500 = vsel %vm494, 1, 0
        %v501 = vsel %vm495, 1, 0
        %v502 = vcvt.s32.f32 %v499
        %v503 = vcvt.s32.f32 %v500
        %v504 = vcvt.s32.f32 %v501
        %505 = vmatprep.subr.mxu0 0.0
        %506 = vmatpush1.msra.mxu0 %v502
        %507 = vmatprep.subr.mxu0 0.0
        %508 = vmatpush1.msra.mxu0 %v503
        %509 = vmatprep.subr.mxu0 0.0
        %510 = vmatpush1.msra.mxu0 %v504
        %511 = vmatprep.subr.mxu0 0.0
        %512 = vmatpush1.msra.mxu0 0.0
        %513 = vmatprep.subr.mxu0 0.0
        %514 = vmatpush1.msra.mxu0 0.0
        %515 = vmatprep.subr.mxu0 0.0
        %516 = vmatpush1.msra.mxu0 0.0
        %517 = vmatprep.subr.mxu0 0.0
        %518 = vmatpush1.msra.mxu0 0.0
        %519 = vmatprep.subr.mxu0 0.0
        %520 = vmatpush1.msra.mxu0 0.0
        %521 = vmatprep.subr.mxu0 0.0
        %522 = vmatpush1.msra.mxu0 0.0
        %523 = vmatprep.subr.mxu0 0.0
        %524 = vmatpush1.msra.mxu0 0.0
        %525 = vmatprep.subr.mxu0 0.0
        %526 = vmatpush1.msra.mxu0 0.0
        %527 = vmatprep.subr.mxu0 0.0
        %528 = vmatpush1.msra.mxu0 0.0
        %529 = vmatprep.subr.mxu0 0.0
        %530 = vmatpush1.msra.mxu0 0.0
        %531 = vmatprep.subr.mxu0 0.0
        %532 = vmatpush1.msra.mxu0 0.0
        %533 = vmatprep.subr.mxu0 0.0
        %534 = vmatpush1.msra.mxu0 0.0
        %535 = vmatprep.subr.mxu0 0.0
        %536 = vmatpush1.msra.mxu0 0.0
        %537 = vmatprep.subr.mxu0 0.0
        %538 = vmatpush1.msra.mxu0 0.0
        %539 = vmatprep.subr.mxu0 0.0
        %540 = vmatpush1.msra.mxu0 0.0
        %541 = vmatprep.subr.mxu0 0.0
        %542 = vmatpush1.msra.mxu0 0.0
        %543 = vmatprep.subr.mxu0 0.0
        %544 = vmatpush1.msra.mxu0 0.0
        %545 = vmatprep.subr.mxu0 0.0
        %546 = vmatpush1.msra.mxu0 0.0
        %547 = vmatprep.subr.mxu0 0.0
        %548 = vmatpush1.msra.mxu0 0.0
        %549 = vmatprep.subr.mxu0 0.0
        %550 = vmatpush1.msra.mxu0 0.0
        %551 = vmatprep.subr.mxu0 0.0
        %552 = vmatpush1.msra.mxu0 0.0
        %553 = vmatprep.subr.mxu0 0.0
        %554 = vmatpush1.msra.mxu0 0.0
        %555 = vmatprep.subr.mxu0 0.0
        %556 = vmatpush1.msra.mxu0 0.0
        %557 = vmatprep.subr.mxu0 0.0
        %558 = vmatpush1.msra.mxu0 0.0
        %559 = vmatprep.subr.mxu0 0.0
        %560 = vmatpush1.msra.mxu0 0.0
        %561 = vmatprep.subr.mxu0 0.0
        %562 = vmatpush1.msra.mxu0 0.0
        %563 = vmatprep.subr.mxu0 0.0
        %564 = vmatpush1.msra.mxu0 0.0
        %565 = vmatprep.subr.mxu0 0.0
        %566 = vmatpush1.msra.mxu0 0.0
        %567 = vmatprep.subr.mxu0 0.0
        %568 = vmatpush1.msra.mxu0 0.0
        %569 = vmatprep.mubr.f32.mxu0 0.0
        %570 = vmatmul.mubr.f32.gmra.mrb[0].mxu0 %v381
        %v571 = vpop.f32.mrb[0].mxu0
        %v572 = vadd.f32 0.0, %v571
        %v573 = vpop.f32.mrb[0].mxu0
        %574 = vdwg.mxu0
        %v575 = vsub.f32 %v572, %v248
        %v576 = vand.u32 2147483647, %v575
        %vm577 = vcmp.le.f32.partialorder %v576, 0.25
        %v578 = vsel %vm577, %v572, %v248
        %579 = vst.msk [vmem:[#allocation2 + $0x1] sm:$0x1] %vm457, %v578
        %580 = vst.msk [vmem:[%s459] sm:$0x2] %vm460, %v578
        %581 = vst.msk [vmem:[%s462 - $0x1] sm:$0x4] %vm463, %v578
        %v582 = vsel %vm265, %v496, -inf
        %v583 = vsel %vm265, %v497, -inf
        %v584 = vsel %vm265, %v498, -inf
        %v585 = vmax.f32 %v582, %v583
        %v586 = vmax.f32 %v585, %v584
        %v587 = vrot.slane %v586, 4
        %v588 = vmax.f32 %v586, %v587
        %v589 = vrot.slane %v588, 2
        %v590 = vmax.f32 %v588, %v589
        %v591 = vrot.slane %v590, 1
        %v592 = vmax.f32 %v590, %v591
        %vm593 = vcmp.eq.f32.partialorder %v496, %v592
        %vm594 = vcmp.eq.f32.partialorder %v497, %v592
        %vm595 = vcmp.eq.f32.partialorder %v498, %v592
        %v596 = vsel %vm593, %v337, 24.0
        %v597 = vsel %vm594, %v338, 24.0
        %v598 = vsel %vm595, %v339, 24.0
        %v599 = vsel %vm265, %v596, inf
        %v600 = vsel %vm265, %v597, inf
        %v601 = vsel %vm265, %v598, inf
        %v602 = vmin.f32 %v599, %v600
        %v603 = vmin.f32 %v602, %v601
        %v604 = vrot.slane %v603, 4
        %v605 = vmin.f32 %v603, %v604
        %v606 = vrot.slane %v605, 2
        %v607 = vmin.f32 %v605, %v606
        %v608 = vrot.slane %v607, 1
        %v609 = vmin.f32 %v607, %v608
        %vm610 = vcmp.eq.f32.partialorder %v337, %v609
        %vm611 = vcmp.eq.f32.partialorder %v338, %v609
        %vm612 = vcmp.eq.f32.partialorder %v339, %v609
        %v613 = vsel %vm610, -inf, %v496
        %v614 = vsel %vm611, -inf, %v497
        %v615 = vsel %vm612, -inf, %v498
        %v616 = vsel %vm610, 1, 0
        %v617 = vsel %vm611, 1, 0
        %v618 = vsel %vm612, 1, 0
        %v619 = vcvt.s32.f32 %v616
        %v620 = vcvt.s32.f32 %v617
        %v621 = vcvt.s32.f32 %v618
        %622 = vmatprep.subr.mxu0 0.0
        %623 = vmatpush1.msra.mxu0 %v619
        %624 = vmatprep.subr.mxu0 0.0
        %625 = vmatpush1.msra.mxu0 %v620
        %626 = vmatprep.subr.mxu0 0.0
        %627 = vmatpush1.msra.mxu0 %v621
        %628 = vmatprep.subr.mxu0 0.0
        %629 = vmatpush1.msra.mxu0 0.0
        %630 = vmatprep.subr.mxu0 0.0
        %631 = vmatpush1.msra.mxu0 0.0
        %632 = vmatprep.subr.mxu0 0.0
        %633 = vmatpush1.msra.mxu0 0.0
        %634 = vmatprep.subr.mxu0 0.0
        %635 = vmatpush1.msra.mxu0 0.0
        %636 = vmatprep.subr.mxu0 0.0
        %637 = vmatpush1.msra.mxu0 0.0
        %638 = vmatprep.subr.mxu0 0.0
        %639 = vmatpush1.msra.mxu0 0.0
        %640 = vmatprep.subr.mxu0 0.0
        %641 = vmatpush1.msra.mxu0 0.0
        %642 = vmatprep.subr.mxu0 0.0
        %643 = vmatpush1.msra.mxu0 0.0
        %644 = vmatprep.subr.mxu0 0.0
        %645 = vmatpush1.msra.mxu0 0.0
        %646 = vmatprep.subr.mxu0 0.0
        %647 = vmatpush1.msra.mxu0 0.0
        %648 = vmatprep.subr.mxu0 0.0
        %649 = vmatpush1.msra.mxu0 0.0
        %650 = vmatprep.subr.mxu0 0.0
        %651 = vmatpush1.msra.mxu0 0.0
        %652 = vmatprep.subr.mxu0 0.0
        %653 = vmatpush1.msra.mxu0 0.0
        %654 = vmatprep.subr.mxu0 0.0
        %655 = vmatpush1.msra.mxu0 0.0
        %656 = vmatprep.subr.mxu0 0.0
        %657 = vmatpush1.msra.mxu0 0.0
        %658 = vmatprep.subr.mxu0 0.0
        %659 = vmatpush1.msra.mxu0 0.0
        %660 = vmatprep.subr.mxu0 0.0
        %661 = vmatpush1.msra.mxu0 0.0
        %662 = vmatprep.subr.mxu0 0.0
        %663 = vmatpush1.msra.mxu0 0.0
        %664 = vmatprep.subr.mxu0 0.0
        %665 = vmatpush1.msra.mxu0 0.0
        %666 = vmatprep.subr.mxu0 0.0
        %667 = vmatpush1.msra.mxu0 0.0
        %668 = vmatprep.subr.mxu0 0.0
        %669 = vmatpush1.msra.mxu0 0.0
        %670 = vmatprep.subr.mxu0 0.0
        %671 = vmatpush1.msra.mxu0 0.0
        %672 = vmatprep.subr.mxu0 0.0
        %673 = vmatpush1.msra.mxu0 0.0
        %674 = vmatprep.subr.mxu0 0.0
        %675 = vmatpush1.msra.mxu0 0.0
        %676 = vmatprep.subr.mxu0 0.0
        %677 = vmatpush1.msra.mxu0 0.0
        %678 = vmatprep.subr.mxu0 0.0
        %679 = vmatpush1.msra.mxu0 0.0
        %680 = vmatprep.subr.mxu0 0.0
        %681 = vmatpush1.msra.mxu0 0.0
        %682 = vmatprep.subr.mxu0 0.0
        %683 = vmatpush1.msra.mxu0 0.0
        %684 = vmatprep.subr.mxu0 0.0
        %685 = vmatpush1.msra.mxu0 0.0
        %686 = vmatprep.mubr.f32.mxu0 0.0
        %687 = vmatmul.mubr.f32.gmra.mrb[0].mxu0 %v381
        %v688 = vpop.f32.mrb[0].mxu0
        %v689 = vadd.f32 0.0, %v688
        %v690 = vpop.f32.mrb[0].mxu0
        %691 = vdwg.mxu0
        %v692 = vsub.f32 %v689, %v248
        %v693 = vand.u32 2147483647, %v692
        %vm694 = vcmp.le.f32.partialorder %v693, 0.25
        %v695 = vsel %vm694, %v689, %v248
        %696 = vst.msk [vmem:[#allocation2 + $0x2] sm:$0x1] %vm457, %v695
        %697 = vst.msk [vmem:[%s459 + $0x1] sm:$0x2] %vm460, %v695
        %698 = vst.msk [vmem:[%s462] sm:$0x4] %vm463, %v695
        %v699 = vsel %vm265, %v613, -inf
        %v700 = vsel %vm265, %v614, -inf
        %v701 = vsel %vm265, %v615, -inf
        %v702 = vmax.f32 %v699, %v700
        %v703 = vmax.f32 %v702, %v701
        %v704 = vrot.slane %v703, 4
        %v705 = vmax.f32 %v703, %v704
        %v706 = vrot.slane %v705, 2
        %v707 = vmax.f32 %v705, %v706
        %v708 = vrot.slane %v707, 1
        %v709 = vmax.f32 %v707, %v708
        %vm710 = vcmp.eq.f32.partialorder %v613, %v709
        %vm711 = vcmp.eq.f32.partialorder %v614, %v709
        %vm712 = vcmp.eq.f32.partialorder %v615, %v709
        %v713 = vsel %vm710, %v337, 24.0
        %v714 = vsel %vm711, %v338, 24.0
        %v715 = vsel %vm712, %v339, 24.0
        %v716 = vsel %vm265, %v713, inf
        %v717 = vsel %vm265, %v714, inf
        %v718 = vsel %vm265, %v715, inf
        %v719 = vmin.f32 %v716, %v717
        %v720 = vmin.f32 %v719, %v718
        %v721 = vrot.slane %v720, 4
        %v722 = vmin.f32 %v720, %v721
        %v723 = vrot.slane %v722, 2
        %v724 = vmin.f32 %v722, %v723
        %v725 = vrot.slane %v724, 1
        %v726 = vmin.f32 %v724, %v725
        %vm727 = vcmp.eq.f32.partialorder %v337, %v726
        %vm728 = vcmp.eq.f32.partialorder %v338, %v726
        %vm729 = vcmp.eq.f32.partialorder %v339, %v726
        %v730 = vsel %vm727, -inf, %v613
        %v731 = vsel %vm728, -inf, %v614
        %v732 = vsel %vm729, -inf, %v615
        %v733 = vsel %vm727, 1, 0
        %v734 = vsel %vm728, 1, 0
        %v735 = vsel %vm729, 1, 0
        %v736 = vcvt.s32.f32 %v733
        %v737 = vcvt.s32.f32 %v734
        %v738 = vcvt.s32.f32 %v735
        %739 = vmatprep.subr.mxu0 0.0
        %740 = vmatpush1.msra.mxu0 %v736
        %741 = vmatprep.subr.mxu0 0.0
        %742 = vmatpush1.msra.mxu0 %v737
        %743 = vmatprep.subr.mxu0 0.0
        %744 = vmatpush1.msra.mxu0 %v738
        %745 = vmatprep.subr.mxu0 0.0
        %746 = vmatpush1.msra.mxu0 0.0
        %747 = vmatprep.subr.mxu0 0.0
        %748 = vmatpush1.msra.mxu0 0.0
        %749 = vmatprep.subr.mxu0 0.0
        %750 = vmatpush1.msra.mxu0 0.0
        %751 = vmatprep.subr.mxu0 0.0
        %752 = vmatpush1.msra.mxu0 0.0
        %753 = vmatprep.subr.mxu0 0.0
        %754 = vmatpush1.msra.mxu0 0.0
        %755 = vmatprep.subr.mxu0 0.0
        %756 = vmatpush1.msra.mxu0 0.0
        %757 = vmatprep.subr.mxu0 0.0
        %758 = vmatpush1.msra.mxu0 0.0
        %759 = vmatprep.subr.mxu0 0.0
        %760 = vmatpush1.msra.mxu0 0.0
        %761 = vmatprep.subr.mxu0 0.0
        %762 = vmatpush1.msra.mxu0 0.0
        %763 = vmatprep.subr.mxu0 0.0
        %764 = vmatpush1.msra.mxu0 0.0
        %765 = vmatprep.subr.mxu0 0.0
        %766 = vmatpush1.msra.mxu0 0.0
        %767 = vmatprep.subr.mxu0 0.0
        %768 = vmatpush1.msra.mxu0 0.0
        %769 = vmatprep.subr.mxu0 0.0
        %770 = vmatpush1.msra.mxu0 0.0
        %771 = vmatprep.subr.mxu0 0.0
        %772 = vmatpush1.msra.mxu0 0.0
        %773 = vmatprep.subr.mxu0 0.0
        %774 = vmatpush1.msra.mxu0 0.0
        %775 = vmatprep.subr.mxu0 0.0
        %776 = vmatpush1.msra.mxu0 0.0
        %777 = vmatprep.subr.mxu0 0.0
        %778 = vmatpush1.msra.mxu0 0.0
        %779 = vmatprep.subr.mxu0 0.0
        %780 = vmatpush1.msra.mxu0 0.0
        %781 = vmatprep.subr.mxu0 0.0
        %782 = vmatpush1.msra.mxu0 0.0
        %783 = vmatprep.subr.mxu0 0.0
        %784 = vmatpush1.msra.mxu0 0.0
        %785 = vmatprep.subr.mxu0 0.0
        %786 = vmatpush1.msra.mxu0 0.0
        %787 = vmatprep.subr.mxu0 0.0
        %788 = vmatpush1.msra.mxu0 0.0
        %789 = vmatprep.subr.mxu0 0.0
        %790 = vmatpush1.msra.mxu0 0.0
        %791 = vmatprep.subr.mxu0 0.0
        %792 = vmatpush1.msra.mxu0 0.0
        %793 = vmatprep.subr.mxu0 0.0
        %794 = vmatpush1.msra.mxu0 0.0
        %795 = vmatprep.subr.mxu0 0.0
        %796 = vmatpush1.msra.mxu0 0.0
        %797 = vmatprep.subr.mxu0 0.0
        %798 = vmatpush1.msra.mxu0 0.0
        %799 = vmatprep.subr.mxu0 0.0
        %800 = vmatpush1.msra.mxu0 0.0
        %801 = vmatprep.subr.mxu0 0.0
        %802 = vmatpush1.msra.mxu0 0.0
        %803 = vmatprep.mubr.f32.mxu0 0.0
        %804 = vmatmul.mubr.f32.gmra.mrb[0].mxu0 %v381
        %v805 = vpop.f32.mrb[0].mxu0
        %v806 = vadd.f32 0.0, %v805
        %v807 = vpop.f32.mrb[0].mxu0
        %808 = vdwg.mxu0
        %v809 = vsub.f32 %v806, %v248
        %v810 = vand.u32 2147483647, %v809
        %vm811 = vcmp.le.f32.partialorder %v810, 0.25
        %v812 = vsel %vm811, %v806, %v248
        %813 = vst.msk [vmem:[#allocation2 + $0x3] sm:$0x1] %vm457, %v812
        %814 = vst.msk [vmem:[%s459 + $0x2] sm:$0x2] %vm460, %v812
        %815 = vst.msk [vmem:[%s462 + $0x1] sm:$0x4] %vm463, %v812
        %v816 = vsel %vm265, %v730, -inf
        %v817 = vsel %vm265, %v731, -inf
        %v818 = vsel %vm265, %v732, -inf
        %v819 = vmax.f32 %v816, %v817
        %v820 = vmax.f32 %v819, %v818
        %v821 = vrot.slane %v820, 4
        %v822 = vmax.f32 %v820, %v821
        %v823 = vrot.slane %v822, 2
        %v824 = vmax.f32 %v822, %v823
        %v825 = vrot.slane %v824, 1
        %v826 = vmax.f32 %v824, %v825
        %vm827 = vcmp.eq.f32.partialorder %v730, %v826
        %vm828 = vcmp.eq.f32.partialorder %v731, %v826
        %vm829 = vcmp.eq.f32.partialorder %v732, %v826
        %v830 = vsel %vm827, %v337, 24.0
        %v831 = vsel %vm828, %v338, 24.0
        %v832 = vsel %vm829, %v339, 24.0
        %v833 = vsel %vm265, %v830, inf
        %v834 = vsel %vm265, %v831, inf
        %v835 = vsel %vm265, %v832, inf
        %v836 = vmin.f32 %v833, %v834
        %v837 = vmin.f32 %v836, %v835
        %v838 = vrot.slane %v837, 4
        %v839 = vmin.f32 %v837, %v838
        %v840 = vrot.slane %v839, 2
        %v841 = vmin.f32 %v839, %v840
        %v842 = vrot.slane %v841, 1
        %v843 = vmin.f32 %v841, %v842
        %vm844 = vcmp.eq.f32.partialorder %v337, %v843
        %vm845 = vcmp.eq.f32.partialorder %v338, %v843
        %vm846 = vcmp.eq.f32.partialorder %v339, %v843
        %v847 = vsel %vm844, -inf, %v730
        %v848 = vsel %vm845, -inf, %v731
        %v849 = vsel %vm846, -inf, %v732
        %v850 = vsel %vm844, 1, 0
        %v851 = vsel %vm845, 1, 0
        %v852 = vsel %vm846, 1, 0
        %v853 = vcvt.s32.f32 %v850
        %v854 = vcvt.s32.f32 %v851
        %v855 = vcvt.s32.f32 %v852
        %856 = vmatprep.subr.mxu0 0.0
        %857 = vmatpush1.msra.mxu0 %v853
        %858 = vmatprep.subr.mxu0 0.0
        %859 = vmatpush1.msra.mxu0 %v854
        %860 = vmatprep.subr.mxu0 0.0
        %861 = vmatpush1.msra.mxu0 %v855
        %862 = vmatprep.subr.mxu0 0.0
        %863 = vmatpush1.msra.mxu0 0.0
        %864 = vmatprep.subr.mxu0 0.0
        %865 = vmatpush1.msra.mxu0 0.0
        %866 = vmatprep.subr.mxu0 0.0
        %867 = vmatpush1.msra.mxu0 0.0
        %868 = vmatprep.subr.mxu0 0.0
        %869 = vmatpush1.msra.mxu0 0.0
        %870 = vmatprep.subr.mxu0 0.0
        %871 = vmatpush1.msra.mxu0 0.0
        %872 = vmatprep.subr.mxu0 0.0
        %873 = vmatpush1.msra.mxu0 0.0
        %874 = vmatprep.subr.mxu0 0.0
        %875 = vmatpush1.msra.mxu0 0.0
        %876 = vmatprep.subr.mxu0 0.0
        %877 = vmatpush1.msra.mxu0 0.0
        %878 = vmatprep.subr.mxu0 0.0
        %879 = vmatpush1.msra.mxu0 0.0
        %880 = vmatprep.subr.mxu0 0.0
        %881 = vmatpush1.msra.mxu0 0.0
        %882 = vmatprep.subr.mxu0 0.0
        %883 = vmatpush1.msra.mxu0 0.0
        %884 = vmatprep.subr.mxu0 0.0
        %885 = vmatpush1.msra.mxu0 0.0
        %886 = vmatprep.subr.mxu0 0.0
        %887 = vmatpush1.msra.mxu0 0.0
        %888 = vmatprep.subr.mxu0 0.0
        %889 = vmatpush1.msra.mxu0 0.0
        %890 = vmatprep.subr.mxu0 0.0
        %891 = vmatpush1.msra.mxu0 0.0
        %892 = vmatprep.subr.mxu0 0.0
        %893 = vmatpush1.msra.mxu0 0.0
        %894 = vmatprep.subr.mxu0 0.0
        %895 = vmatpush1.msra.mxu0 0.0
        %896 = vmatprep.subr.mxu0 0.0
        %897 = vmatpush1.msra.mxu0 0.0
        %898 = vmatprep.subr.mxu0 0.0
        %899 = vmatpush1.msra.mxu0 0.0
        %900 = vmatprep.subr.mxu0 0.0
        %901 = vmatpush1.msra.mxu0 0.0
        %902 = vmatprep.subr.mxu0 0.0
        %903 = vmatpush1.msra.mxu0 0.0
        %904 = vmatprep.subr.mxu0 0.0
        %905 = vmatpush1.msra.mxu0 0.0
        %906 = vmatprep.subr.mxu0 0.0
        %907 = vmatpush1.msra.mxu0 0.0
        %908 = vmatprep.subr.mxu0 0.0
        %909 = vmatpush1.msra.mxu0 0.0
        %910 = vmatprep.subr.mxu0 0.0
        %911 = vmatpush1.msra.mxu0 0.0
        %912 = vmatprep.subr.mxu0 0.0
        %913 = vmatpush1.msra.mxu0 0.0
        %914 = vmatprep.subr.mxu0 0.0
        %915 = vmatpush1.msra.mxu0 0.0
        %916 = vmatprep.subr.mxu0 0.0
        %917 = vmatpush1.msra.mxu0 0.0
        %918 = vmatprep.subr.mxu0 0.0
        %919 = vmatpush1.msra.mxu0 0.0
        %920 = vmatprep.mubr.f32.mxu0 0.0
        %921 = vmatmul.mubr.f32.gmra.mrb[0].mxu0 %v381
        %v922 = vpop.f32.mrb[0].mxu0
        %v923 = vadd.f32 0.0, %v922
        %v924 = vpop.f32.mrb[0].mxu0
        %925 = vdwg.mxu0
        %v926 = vsub.f32 %v923, %v248
        %v927 = vand.u32 2147483647, %v926
        %vm928 = vcmp.le.f32.partialorder %v927, 0.25
        %v929 = vsel %vm928, %v923, %v248
        %930 = vst.msk [vmem:[#allocation2 + $0x4] sm:$0x1] %vm457, %v929
        %931 = vst.msk [vmem:[%s459 + $0x3] sm:$0x2] %vm460, %v929
        %932 = vst.msk [vmem:[%s462 + $0x2] sm:$0x4] %vm463, %v929
        %v933 = vsel %vm265, %v847, -inf
        %v934 = vsel %vm265, %v848, -inf
        %v935 = vsel %vm265, %v849, -inf
        %v936 = vmax.f32 %v933, %v934
        %v937 = vmax.f32 %v936, %v935
        %v938 = vrot.slane %v937, 4
        %v939 = vmax.f32 %v937, %v938
        %v940 = vrot.slane %v939, 2
        %v941 = vmax.f32 %v939, %v940
        %v942 = vrot.slane %v941, 1
        %v943 = vmax.f32 %v941, %v942
        %vm944 = vcmp.eq.f32.partialorder %v847, %v943
        %vm945 = vcmp.eq.f32.partialorder %v848, %v943
        %vm946 = vcmp.eq.f32.partialorder %v849, %v943
        %v947 = vsel %vm944, %v337, 24.0
        %v948 = vsel %vm945, %v338, 24.0
        %v949 = vsel %vm946, %v339, 24.0
        %v950 = vsel %vm265, %v947, inf
        %v951 = vsel %vm265, %v948, inf
        %v952 = vsel %vm265, %v949, inf
        %v953 = vmin.f32 %v950, %v951
        %v954 = vmin.f32 %v953, %v952
        %v955 = vrot.slane %v954, 4
        %v956 = vmin.f32 %v954, %v955
        %v957 = vrot.slane %v956, 2
        %v958 = vmin.f32 %v956, %v957
        %v959 = vrot.slane %v958, 1
        %v960 = vmin.f32 %v958, %v959
        %vm961 = vcmp.eq.f32.partialorder %v337, %v960
        %vm962 = vcmp.eq.f32.partialorder %v338, %v960
        %vm963 = vcmp.eq.f32.partialorder %v339, %v960
        %v964 = vsel %vm961, -inf, %v847
        %v965 = vsel %vm962, -inf, %v848
        %v966 = vsel %vm963, -inf, %v849
        %v967 = vsel %vm961, 1, 0
        %v968 = vsel %vm962, 1, 0
        %v969 = vsel %vm963, 1, 0
        %v970 = vcvt.s32.f32 %v967
        %v971 = vcvt.s32.f32 %v968
        %v972 = vcvt.s32.f32 %v969
        %973 = vmatprep.subr.mxu0 0.0
        %974 = vmatpush1.msra.mxu0 %v970
        %975 = vmatprep.subr.mxu0 0.0
        %976 = vmatpush1.msra.mxu0 %v971
        %977 = vmatprep.subr.mxu0 0.0
        %978 = vmatpush1.msra.mxu0 %v972
        %979 = vmatprep.subr.mxu0 0.0
        %980 = vmatpush1.msra.mxu0 0.0
        %981 = vmatprep.subr.mxu0 0.0
        %982 = vmatpush1.msra.mxu0 0.0
        %983 = vmatprep.subr.mxu0 0.0
        %984 = vmatpush1.msra.mxu0 0.0
        %985 = vmatprep.subr.mxu0 0.0
        %986 = vmatpush1.msra.mxu0 0.0
        %987 = vmatprep.subr.mxu0 0.0
        %988 = vmatpush1.msra.mxu0 0.0
        %989 = vmatprep.subr.mxu0 0.0
        %990 = vmatpush1.msra.mxu0 0.0
        %991 = vmatprep.subr.mxu0 0.0
        %992 = vmatpush1.msra.mxu0 0.0
        %993 = vmatprep.subr.mxu0 0.0
        %994 = vmatpush1.msra.mxu0 0.0
        %995 = vmatprep.subr.mxu0 0.0
        %996 = vmatpush1.msra.mxu0 0.0
        %997 = vmatprep.subr.mxu0 0.0
        %998 = vmatpush1.msra.mxu0 0.0
        %999 = vmatprep.subr.mxu0 0.0
        %1000 = vmatpush1.msra.mxu0 0.0
        %1001 = vmatprep.subr.mxu0 0.0
        %1002 = vmatpush1.msra.mxu0 0.0
        %1003 = vmatprep.subr.mxu0 0.0
        %1004 = vmatpush1.msra.mxu0 0.0
        %1005 = vmatprep.subr.mxu0 0.0
        %1006 = vmatpush1.msra.mxu0 0.0
        %1007 = vmatprep.subr.mxu0 0.0
        %1008 = vmatpush1.msra.mxu0 0.0
        %1009 = vmatprep.subr.mxu0 0.0
        %1010 = vmatpush1.msra.mxu0 0.0
        %1011 = vmatprep.subr.mxu0 0.0
        %1012 = vmatpush1.msra.mxu0 0.0
        %1013 = vmatprep.subr.mxu0 0.0
        %1014 = vmatpush1.msra.mxu0 0.0
        %1015 = vmatprep.subr.mxu0 0.0
        %1016 = vmatpush1.msra.mxu0 0.0
        %1017 = vmatprep.subr.mxu0 0.0
        %1018 = vmatpush1.msra.mxu0 0.0
        %1019 = vmatprep.subr.mxu0 0.0
        %1020 = vmatpush1.msra.mxu0 0.0
        %1021 = vmatprep.subr.mxu0 0.0
        %1022 = vmatpush1.msra.mxu0 0.0
        %1023 = vmatprep.subr.mxu0 0.0
        %1024 = vmatpush1.msra.mxu0 0.0
        %1025 = vmatprep.subr.mxu0 0.0
        %1026 = vmatpush1.msra.mxu0 0.0
        %1027 = vmatprep.subr.mxu0 0.0
        %1028 = vmatpush1.msra.mxu0 0.0
        %1029 = vmatprep.subr.mxu0 0.0
        %1030 = vmatpush1.msra.mxu0 0.0
        %1031 = vmatprep.subr.mxu0 0.0
        %1032 = vmatpush1.msra.mxu0 0.0
        %1033 = vmatprep.subr.mxu0 0.0
        %1034 = vmatpush1.msra.mxu0 0.0
        %1035 = vmatprep.subr.mxu0 0.0
        %1036 = vmatpush1.msra.mxu0 0.0
        %1037 = vmatprep.mubr.f32.mxu0 0.0
        %1038 = vmatmul.mubr.f32.gmra.mrb[0].mxu0 %v381
        %v1039 = vpop.f32.mrb[0].mxu0
        %v1040 = vadd.f32 0.0, %v1039
        %v1041 = vpop.f32.mrb[0].mxu0
        %1042 = vdwg.mxu0
        %v1043 = vsub.f32 %v1040, %v248
        %v1044 = vand.u32 2147483647, %v1043
        %vm1045 = vcmp.le.f32.partialorder %v1044, 0.25
        %v1046 = vsel %vm1045, %v1040, %v248
        %1047 = vst.msk [vmem:[#allocation2 + $0x5] sm:$0x1] %vm457, %v1046
        %1048 = vst.msk [vmem:[%s459 + $0x4] sm:$0x2] %vm460, %v1046
        %1049 = vst.msk [vmem:[%s462 + $0x3] sm:$0x4] %vm463, %v1046
        %v1050 = vsel %vm265, %v964, -inf
        %v1051 = vsel %vm265, %v965, -inf
        %v1052 = vsel %vm265, %v966, -inf
        %v1053 = vmax.f32 %v1050, %v1051
        %v1054 = vmax.f32 %v1053, %v1052
        %v1055 = vrot.slane %v1054, 4
        %v1056 = vmax.f32 %v1054, %v1055
        %v1057 = vrot.slane %v1056, 2
        %v1058 = vmax.f32 %v1056, %v1057
        %v1059 = vrot.slane %v1058, 1
        %v1060 = vmax.f32 %v1058, %v1059
        %vm1061 = vcmp.eq.f32.partialorder %v964, %v1060
        %vm1062 = vcmp.eq.f32.partialorder %v965, %v1060
        %vm1063 = vcmp.eq.f32.partialorder %v966, %v1060
        %v1064 = vsel %vm1061, %v337, 24.0
        %v1065 = vsel %vm1062, %v338, 24.0
        %v1066 = vsel %vm1063, %v339, 24.0
        %v1067 = vsel %vm265, %v1064, inf
        %v1068 = vsel %vm265, %v1065, inf
        %v1069 = vsel %vm265, %v1066, inf
        %v1070 = vmin.f32 %v1067, %v1068
        %v1071 = vmin.f32 %v1070, %v1069
        %v1072 = vrot.slane %v1071, 4
        %v1073 = vmin.f32 %v1071, %v1072
        %v1074 = vrot.slane %v1073, 2
        %v1075 = vmin.f32 %v1073, %v1074
        %v1076 = vrot.slane %v1075, 1
        %v1077 = vmin.f32 %v1075, %v1076
        %vm1078 = vcmp.eq.f32.partialorder %v337, %v1077
        %vm1079 = vcmp.eq.f32.partialorder %v338, %v1077
        %vm1080 = vcmp.eq.f32.partialorder %v339, %v1077
        %v1081 = vsel %vm1078, -inf, %v964
        %v1082 = vsel %vm1079, -inf, %v965
        %v1083 = vsel %vm1080, -inf, %v966
        %v1084 = vsel %vm1078, 1, 0
        %v1085 = vsel %vm1079, 1, 0
        %v1086 = vsel %vm1080, 1, 0
        %v1087 = vcvt.s32.f32 %v1084
        %v1088 = vcvt.s32.f32 %v1085
        %v1089 = vcvt.s32.f32 %v1086
        %1090 = vmatprep.subr.mxu0 0.0
        %1091 = vmatpush1.msra.mxu0 %v1087
        %1092 = vmatprep.subr.mxu0 0.0
        %1093 = vmatpush1.msra.mxu0 %v1088
        %1094 = vmatprep.subr.mxu0 0.0
        %1095 = vmatpush1.msra.mxu0 %v1089
        %1096 = vmatprep.subr.mxu0 0.0
        %1097 = vmatpush1.msra.mxu0 0.0
        %1098 = vmatprep.subr.mxu0 0.0
        %1099 = vmatpush1.msra.mxu0 0.0
        %1100 = vmatprep.subr.mxu0 0.0
        %1101 = vmatpush1.msra.mxu0 0.0
        %1102 = vmatprep.subr.mxu0 0.0
        %1103 = vmatpush1.msra.mxu0 0.0
        %1104 = vmatprep.subr.mxu0 0.0
        %1105 = vmatpush1.msra.mxu0 0.0
        %1106 = vmatprep.subr.mxu0 0.0
        %1107 = vmatpush1.msra.mxu0 0.0
        %1108 = vmatprep.subr.mxu0 0.0
        %1109 = vmatpush1.msra.mxu0 0.0
        %1110 = vmatprep.subr.mxu0 0.0
        %1111 = vmatpush1.msra.mxu0 0.0
        %1112 = vmatprep.subr.mxu0 0.0
        %1113 = vmatpush1.msra.mxu0 0.0
        %1114 = vmatprep.subr.mxu0 0.0
        %1115 = vmatpush1.msra.mxu0 0.0
        %1116 = vmatprep.subr.mxu0 0.0
        %1117 = vmatpush1.msra.mxu0 0.0
        %1118 = vmatprep.subr.mxu0 0.0
        %1119 = vmatpush1.msra.mxu0 0.0
        %1120 = vmatprep.subr.mxu0 0.0
        %1121 = vmatpush1.msra.mxu0 0.0
        %1122 = vmatprep.subr.mxu0 0.0
        %1123 = vmatpush1.msra.mxu0 0.0
        %1124 = vmatprep.subr.mxu0 0.0
        %1125 = vmatpush1.msra.mxu0 0.0
        %1126 = vmatprep.subr.mxu0 0.0
        %1127 = vmatpush1.msra.mxu0 0.0
        %1128 = vmatprep.subr.mxu0 0.0
        %1129 = vmatpush1.msra.mxu0 0.0
        %1130 = vmatprep.subr.mxu0 0.0
        %1131 = vmatpush1.msra.mxu0 0.0
        %1132 = vmatprep.subr.mxu0 0.0
        %1133 = vmatpush1.msra.mxu0 0.0
        %1134 = vmatprep.subr.mxu0 0.0
        %1135 = vmatpush1.msra.mxu0 0.0
        %1136 = vmatprep.subr.mxu0 0.0
        %1137 = vmatpush1.msra.mxu0 0.0
        %1138 = vmatprep.subr.mxu0 0.0
        %1139 = vmatpush1.msra.mxu0 0.0
        %1140 = vmatprep.subr.mxu0 0.0
        %1141 = vmatpush1.msra.mxu0 0.0
        %1142 = vmatprep.subr.mxu0 0.0
        %1143 = vmatpush1.msra.mxu0 0.0
        %1144 = vmatprep.subr.mxu0 0.0
        %1145 = vmatpush1.msra.mxu0 0.0
        %1146 = vmatprep.subr.mxu0 0.0
        %1147 = vmatpush1.msra.mxu0 0.0
        %1148 = vmatprep.subr.mxu0 0.0
        %1149 = vmatpush1.msra.mxu0 0.0
        %1150 = vmatprep.subr.mxu0 0.0
        %1151 = vmatpush1.msra.mxu0 0.0
        %1152 = vmatprep.subr.mxu0 0.0
        %1153 = vmatpush1.msra.mxu0 0.0
        %1154 = vmatprep.mubr.f32.mxu0 0.0
        %1155 = vmatmul.mubr.f32.gmra.mrb[0].mxu0 %v381
        %v1156 = vpop.f32.mrb[0].mxu0
        %v1157 = vadd.f32 0.0, %v1156
        %v1158 = vpop.f32.mrb[0].mxu0
        %1159 = vdwg.mxu0
        %v1160 = vsub.f32 %v1157, %v248
        %v1161 = vand.u32 2147483647, %v1160
        %vm1162 = vcmp.le.f32.partialorder %v1161, 0.25
        %v1163 = vsel %vm1162, %v1157, %v248
        %1164 = vst.msk [vmem:[#allocation2 + $0x6] sm:$0x1] %vm457, %v1163
        %1165 = vst.msk [vmem:[%s459 + $0x5] sm:$0x2] %vm460, %v1163
        %1166 = vst.msk [vmem:[%s462 + $0x4] sm:$0x4] %vm463, %v1163
        %v1167 = vsel %vm265, %v1081, -inf
        %v1168 = vsel %vm265, %v1082, -inf
        %v1169 = vsel %vm265, %v1083, -inf
        %v1170 = vmax.f32 %v1167, %v1168
        %v1171 = vmax.f32 %v1170, %v1169
        %v1172 = vrot.slane %v1171, 4
        %v1173 = vmax.f32 %v1171, %v1172
        %v1174 = vrot.slane %v1173, 2
        %v1175 = vmax.f32 %v1173, %v1174
        %v1176 = vrot.slane %v1175, 1
        %v1177 = vmax.f32 %v1175, %v1176
        %vm1178 = vcmp.eq.f32.partialorder %v1081, %v1177
        %vm1179 = vcmp.eq.f32.partialorder %v1082, %v1177
        %vm1180 = vcmp.eq.f32.partialorder %v1083, %v1177
        %v1181 = vsel %vm1178, %v337, 24.0
        %v1182 = vsel %vm1179, %v338, 24.0
        %v1183 = vsel %vm1180, %v339, 24.0
        %v1184 = vsel %vm265, %v1181, inf
        %v1185 = vsel %vm265, %v1182, inf
        %v1186 = vsel %vm265, %v1183, inf
        %v1187 = vmin.f32 %v1184, %v1185
        %v1188 = vmin.f32 %v1187, %v1186
        %v1189 = vrot.slane %v1188, 4
        %v1190 = vmin.f32 %v1188, %v1189
        %v1191 = vrot.slane %v1190, 2
        %v1192 = vmin.f32 %v1190, %v1191
        %v1193 = vrot.slane %v1192, 1
        %v1194 = vmin.f32 %v1192, %v1193
        %vm1195 = vcmp.eq.f32.partialorder %v337, %v1194
        %vm1196 = vcmp.eq.f32.partialorder %v338, %v1194
        %vm1197 = vcmp.eq.f32.partialorder %v339, %v1194
        %v1198 = vsel %vm1195, -inf, %v1081
        %v1199 = vsel %vm1196, -inf, %v1082
        %v1200 = vsel %vm1197, -inf, %v1083
        %v1201 = vsel %vm1195, 1, 0
        %v1202 = vsel %vm1196, 1, 0
        %v1203 = vsel %vm1197, 1, 0
        %v1204 = vcvt.s32.f32 %v1201
        %v1205 = vcvt.s32.f32 %v1202
        %v1206 = vcvt.s32.f32 %v1203
        %1207 = vmatprep.subr.mxu0 0.0
        %1208 = vmatpush1.msra.mxu0 %v1204
        %1209 = vmatprep.subr.mxu0 0.0
        %1210 = vmatpush1.msra.mxu0 %v1205
        %1211 = vmatprep.subr.mxu0 0.0
        %1212 = vmatpush1.msra.mxu0 %v1206
        %1213 = vmatprep.subr.mxu0 0.0
        %1214 = vmatpush1.msra.mxu0 0.0
        %1215 = vmatprep.subr.mxu0 0.0
        %1216 = vmatpush1.msra.mxu0 0.0
        %1217 = vmatprep.subr.mxu0 0.0
        %1218 = vmatpush1.msra.mxu0 0.0
        %1219 = vmatprep.subr.mxu0 0.0
        %1220 = vmatpush1.msra.mxu0 0.0
        %1221 = vmatprep.subr.mxu0 0.0
        %1222 = vmatpush1.msra.mxu0 0.0
        %1223 = vmatprep.subr.mxu0 0.0
        %1224 = vmatpush1.msra.mxu0 0.0
        %1225 = vmatprep.subr.mxu0 0.0
        %1226 = vmatpush1.msra.mxu0 0.0
        %1227 = vmatprep.subr.mxu0 0.0
        %1228 = vmatpush1.msra.mxu0 0.0
        %1229 = vmatprep.subr.mxu0 0.0
        %1230 = vmatpush1.msra.mxu0 0.0
        %1231 = vmatprep.subr.mxu0 0.0
        %1232 = vmatpush1.msra.mxu0 0.0
        %1233 = vmatprep.subr.mxu0 0.0
        %1234 = vmatpush1.msra.mxu0 0.0
        %1235 = vmatprep.subr.mxu0 0.0
        %1236 = vmatpush1.msra.mxu0 0.0
        %1237 = vmatprep.subr.mxu0 0.0
        %1238 = vmatpush1.msra.mxu0 0.0
        %1239 = vmatprep.subr.mxu0 0.0
        %1240 = vmatpush1.msra.mxu0 0.0
        %1241 = vmatprep.subr.mxu0 0.0
        %1242 = vmatpush1.msra.mxu0 0.0
        %1243 = vmatprep.subr.mxu0 0.0
        %1244 = vmatpush1.msra.mxu0 0.0
        %1245 = vmatprep.subr.mxu0 0.0
        %1246 = vmatpush1.msra.mxu0 0.0
        %1247 = vmatprep.subr.mxu0 0.0
        %1248 = vmatpush1.msra.mxu0 0.0
        %1249 = vmatprep.subr.mxu0 0.0
        %1250 = vmatpush1.msra.mxu0 0.0
        %1251 = vmatprep.subr.mxu0 0.0
        %1252 = vmatpush1.msra.mxu0 0.0
        %1253 = vmatprep.subr.mxu0 0.0
        %1254 = vmatpush1.msra.mxu0 0.0
        %1255 = vmatprep.subr.mxu0 0.0
        %1256 = vmatpush1.msra.mxu0 0.0
        %1257 = vmatprep.subr.mxu0 0.0
        %1258 = vmatpush1.msra.mxu0 0.0
        %1259 = vmatprep.subr.mxu0 0.0
        %1260 = vmatpush1.msra.mxu0 0.0
        %1261 = vmatprep.subr.mxu0 0.0
        %1262 = vmatpush1.msra.mxu0 0.0
        %1263 = vmatprep.subr.mxu0 0.0
        %1264 = vmatpush1.msra.mxu0 0.0
        %1265 = vmatprep.subr.mxu0 0.0
        %1266 = vmatpush1.msra.mxu0 0.0
        %1267 = vmatprep.subr.mxu0 0.0
        %1268 = vmatpush1.msra.mxu0 0.0
        %1269 = vmatprep.subr.mxu0 0.0
        %1270 = vmatpush1.msra.mxu0 0.0
        %1271 = vmatprep.mubr.f32.mxu0 0.0
        %1272 = vmatmul.mubr.f32.gmra.mrb[0].mxu0 %v381
        %v1273 = vpop.f32.mrb[0].mxu0
        %v1274 = vadd.f32 0.0, %v1273
        %v1275 = vpop.f32.mrb[0].mxu0
        %1276 = vdwg.mxu0
        %v1277 = vsub.f32 %v1274, %v248
        %v1278 = vand.u32 2147483647, %v1277
        %vm1279 = vcmp.le.f32.partialorder %v1278, 0.25
        %v1280 = vsel %vm1279, %v1274, %v248
        %1281 = vst.msk [vmem:[#allocation2 + $0x7] sm:$0x1] %vm457, %v1280
        %1282 = vst.msk [vmem:[%s459 + $0x6] sm:$0x2] %vm460, %v1280
        %1283 = vst.msk [vmem:[%s462 + $0x5] sm:$0x4] %vm463, %v1280
        %v1284 = vsel %vm265, %v1198, -inf
        %v1285 = vsel %vm265, %v1199, -inf
        %v1286 = vsel %vm265, %v1200, -inf
        %v1287 = vmax.f32 %v1284, %v1285
        %v1288 = vmax.f32 %v1287, %v1286
        %v1289 = vrot.slane %v1288, 4
        %v1290 = vmax.f32 %v1288, %v1289
        %v1291 = vrot.slane %v1290, 2
        %v1292 = vmax.f32 %v1290, %v1291
        %v1293 = vrot.slane %v1292, 1
        %v1294 = vmax.f32 %v1292, %v1293
        %vm1295 = vcmp.eq.f32.partialorder %v1198, %v1294
        %vm1296 = vcmp.eq.f32.partialorder %v1199, %v1294
        %vm1297 = vcmp.eq.f32.partialorder %v1200, %v1294
        %v1298 = vsel %vm1295, %v337, 24.0
        %v1299 = vsel %vm1296, %v338, 24.0
        %v1300 = vsel %vm1297, %v339, 24.0
        %v1301 = vsel %vm265, %v1298, inf
        %v1302 = vsel %vm265, %v1299, inf
        %v1303 = vsel %vm265, %v1300, inf
        %v1304 = vmin.f32 %v1301, %v1302
        %v1305 = vmin.f32 %v1304, %v1303
        %v1306 = vrot.slane %v1305, 4
        %v1307 = vmin.f32 %v1305, %v1306
        %v1308 = vrot.slane %v1307, 2
        %v1309 = vmin.f32 %v1307, %v1308
        %v1310 = vrot.slane %v1309, 1
        %v1311 = vmin.f32 %v1309, %v1310
        %vm1312 = vcmp.eq.f32.partialorder %v337, %v1311
        %vm1313 = vcmp.eq.f32.partialorder %v338, %v1311
        %vm1314 = vcmp.eq.f32.partialorder %v339, %v1311
        %v1315 = vsel %vm1312, -inf, %v1198
        %v1316 = vsel %vm1313, -inf, %v1199
        %v1317 = vsel %vm1314, -inf, %v1200
        %v1318 = vsel %vm1312, 1, 0
        %v1319 = vsel %vm1313, 1, 0
        %v1320 = vsel %vm1314, 1, 0
        %v1321 = vcvt.s32.f32 %v1318
        %v1322 = vcvt.s32.f32 %v1319
        %v1323 = vcvt.s32.f32 %v1320
        %1324 = vmatprep.subr.mxu0 0.0
        %1325 = vmatpush1.msra.mxu0 %v1321
        %1326 = vmatprep.subr.mxu0 0.0
        %1327 = vmatpush1.msra.mxu0 %v1322
        %1328 = vmatprep.subr.mxu0 0.0
        %1329 = vmatpush1.msra.mxu0 %v1323
        %1330 = vmatprep.subr.mxu0 0.0
        %1331 = vmatpush1.msra.mxu0 0.0
        %1332 = vmatprep.subr.mxu0 0.0
        %1333 = vmatpush1.msra.mxu0 0.0
        %1334 = vmatprep.subr.mxu0 0.0
        %1335 = vmatpush1.msra.mxu0 0.0
        %1336 = vmatprep.subr.mxu0 0.0
        %1337 = vmatpush1.msra.mxu0 0.0
        %1338 = vmatprep.subr.mxu0 0.0
        %1339 = vmatpush1.msra.mxu0 0.0
        %1340 = vmatprep.subr.mxu0 0.0
        %1341 = vmatpush1.msra.mxu0 0.0
        %1342 = vmatprep.subr.mxu0 0.0
        %1343 = vmatpush1.msra.mxu0 0.0
        %1344 = vmatprep.subr.mxu0 0.0
        %1345 = vmatpush1.msra.mxu0 0.0
        %1346 = vmatprep.subr.mxu0 0.0
        %1347 = vmatpush1.msra.mxu0 0.0
        %1348 = vmatprep.subr.mxu0 0.0
        %1349 = vmatpush1.msra.mxu0 0.0
        %1350 = vmatprep.subr.mxu0 0.0
        %1351 = vmatpush1.msra.mxu0 0.0
        %1352 = vmatprep.subr.mxu0 0.0
        %1353 = vmatpush1.msra.mxu0 0.0
        %1354 = vmatprep.subr.mxu0 0.0
        %1355 = vmatpush1.msra.mxu0 0.0
        %1356 = vmatprep.subr.mxu0 0.0
        %1357 = vmatpush1.msra.mxu0 0.0
        %1358 = vmatprep.subr.mxu0 0.0
        %1359 = vmatpush1.msra.mxu0 0.0
        %1360 = vmatprep.subr.mxu0 0.0
        %1361 = vmatpush1.msra.mxu0 0.0
        %1362 = vmatprep.subr.mxu0 0.0
        %1363 = vmatpush1.msra.mxu0 0.0
        %1364 = vmatprep.subr.mxu0 0.0
        %1365 = vmatpush1.msra.mxu0 0.0
        %1366 = vmatprep.subr.mxu0 0.0
        %1367 = vmatpush1.msra.mxu0 0.0
        %1368 = vmatprep.subr.mxu0 0.0
        %1369 = vmatpush1.msra.mxu0 0.0
        %1370 = vmatprep.subr.mxu0 0.0
        %1371 = vmatpush1.msra.mxu0 0.0
        %1372 = vmatprep.subr.mxu0 0.0
        %1373 = vmatpush1.msra.mxu0 0.0
        %1374 = vmatprep.subr.mxu0 0.0
        %1375 = vmatpush1.msra.mxu0 0.0
        %1376 = vmatprep.subr.mxu0 0.0
        %1377 = vmatpush1.msra.mxu0 0.0
        %1378 = vmatprep.subr.mxu0 0.0
        %1379 = vmatpush1.msra.mxu0 0.0
        %1380 = vmatprep.subr.mxu0 0.0
        %1381 = vmatpush1.msra.mxu0 0.0
        %1382 = vmatprep.subr.mxu0 0.0
        %1383 = vmatpush1.msra.mxu0 0.0
        %1384 = vmatprep.subr.mxu0 0.0
        %1385 = vmatpush1.msra.mxu0 0.0
        %1386 = vmatprep.subr.mxu0 0.0
        %1387 = vmatpush1.msra.mxu0 0.0
        %1388 = vmatprep.mubr.f32.mxu0 0.0
        %1389 = vmatmul.mubr.f32.gmra.mrb[0].mxu0 %v381
        %v1390 = vpop.f32.mrb[0].mxu0
        %v1391 = vadd.f32 0.0, %v1390
        %v1392 = vpop.f32.mrb[0].mxu0
        %1393 = vdwg.mxu0
        %v1394 = vsub.f32 %v1391, %v248
        %v1395 = vand.u32 2147483647, %v1394
        %vm1396 = vcmp.le.f32.partialorder %v1395, 0.25
        %v1397 = vsel %vm1396, %v1391, %v248
        %1398 = vst.msk [vmem:[#allocation2 + $0x8] sm:$0x1] %vm457, %v1397
        %1399 = vst.msk [vmem:[%s459 + $0x7] sm:$0x2] %vm460, %v1397
        %1400 = vst.msk [vmem:[%s462 + $0x6] sm:$0x4] %vm463, %v1397
        %v1401 = vsel %vm265, %v1315, -inf
        %v1402 = vsel %vm265, %v1316, -inf
        %v1403 = vsel %vm265, %v1317, -inf
        %v1404 = vmax.f32 %v1401, %v1402
        %v1405 = vmax.f32 %v1404, %v1403
        %v1406 = vrot.slane %v1405, 4
        %v1407 = vmax.f32 %v1405, %v1406
        %v1408 = vrot.slane %v1407, 2
        %v1409 = vmax.f32 %v1407, %v1408
        %v1410 = vrot.slane %v1409, 1
        %v1411 = vmax.f32 %v1409, %v1410
        %vm1412 = vcmp.eq.f32.partialorder %v1315, %v1411
        %vm1413 = vcmp.eq.f32.partialorder %v1316, %v1411
        %vm1414 = vcmp.eq.f32.partialorder %v1317, %v1411
        %v1415 = vsel %vm1412, %v337, 24.0
        %v1416 = vsel %vm1413, %v338, 24.0
        %v1417 = vsel %vm1414, %v339, 24.0
        %v1418 = vsel %vm265, %v1415, inf
        %v1419 = vsel %vm265, %v1416, inf
        %v1420 = vsel %vm265, %v1417, inf
        %v1421 = vmin.f32 %v1418, %v1419
        %v1422 = vmin.f32 %v1421, %v1420
        %v1423 = vrot.slane %v1422, 4
        %v1424 = vmin.f32 %v1422, %v1423
        %v1425 = vrot.slane %v1424, 2
        %v1426 = vmin.f32 %v1424, %v1425
        %v1427 = vrot.slane %v1426, 1
        %v1428 = vmin.f32 %v1426, %v1427
        %vm1429 = vcmp.eq.f32.partialorder %v337, %v1428
        %vm1430 = vcmp.eq.f32.partialorder %v338, %v1428
        %vm1431 = vcmp.eq.f32.partialorder %v339, %v1428
        %v1432 = vsel %vm1429, -inf, %v1315
        %v1433 = vsel %vm1430, -inf, %v1316
        %v1434 = vsel %vm1431, -inf, %v1317
        %v1435 = vsel %vm1429, 1, 0
        %v1436 = vsel %vm1430, 1, 0
        %v1437 = vsel %vm1431, 1, 0
        %v1438 = vcvt.s32.f32 %v1435
        %v1439 = vcvt.s32.f32 %v1436
        %v1440 = vcvt.s32.f32 %v1437
        %1441 = vmatprep.subr.mxu0 0.0
        %1442 = vmatpush1.msra.mxu0 %v1438
        %1443 = vmatprep.subr.mxu0 0.0
        %1444 = vmatpush1.msra.mxu0 %v1439
        %1445 = vmatprep.subr.mxu0 0.0
        %1446 = vmatpush1.msra.mxu0 %v1440
        %1447 = vmatprep.subr.mxu0 0.0
        %1448 = vmatpush1.msra.mxu0 0.0
        %1449 = vmatprep.subr.mxu0 0.0
        %1450 = vmatpush1.msra.mxu0 0.0
        %1451 = vmatprep.subr.mxu0 0.0
        %1452 = vmatpush1.msra.mxu0 0.0
        %1453 = vmatprep.subr.mxu0 0.0
        %1454 = vmatpush1.msra.mxu0 0.0
        %1455 = vmatprep.subr.mxu0 0.0
        %1456 = vmatpush1.msra.mxu0 0.0
        %1457 = vmatprep.subr.mxu0 0.0
        %1458 = vmatpush1.msra.mxu0 0.0
        %1459 = vmatprep.subr.mxu0 0.0
        %1460 = vmatpush1.msra.mxu0 0.0
        %1461 = vmatprep.subr.mxu0 0.0
        %1462 = vmatpush1.msra.mxu0 0.0
        %1463 = vmatprep.subr.mxu0 0.0
        %1464 = vmatpush1.msra.mxu0 0.0
        %1465 = vmatprep.subr.mxu0 0.0
        %1466 = vmatpush1.msra.mxu0 0.0
        %1467 = vmatprep.subr.mxu0 0.0
        %1468 = vmatpush1.msra.mxu0 0.0
        %1469 = vmatprep.subr.mxu0 0.0
        %1470 = vmatpush1.msra.mxu0 0.0
        %1471 = vmatprep.subr.mxu0 0.0
        %1472 = vmatpush1.msra.mxu0 0.0
        %1473 = vmatprep.subr.mxu0 0.0
        %1474 = vmatpush1.msra.mxu0 0.0
        %1475 = vmatprep.subr.mxu0 0.0
        %1476 = vmatpush1.msra.mxu0 0.0
        %1477 = vmatprep.subr.mxu0 0.0
        %1478 = vmatpush1.msra.mxu0 0.0
        %1479 = vmatprep.subr.mxu0 0.0
        %1480 = vmatpush1.msra.mxu0 0.0
        %1481 = vmatprep.subr.mxu0 0.0
        %1482 = vmatpush1.msra.mxu0 0.0
        %1483 = vmatprep.subr.mxu0 0.0
        %1484 = vmatpush1.msra.mxu0 0.0
        %1485 = vmatprep.subr.mxu0 0.0
        %1486 = vmatpush1.msra.mxu0 0.0
        %1487 = vmatprep.subr.mxu0 0.0
        %1488 = vmatpush1.msra.mxu0 0.0
        %1489 = vmatprep.subr.mxu0 0.0
        %1490 = vmatpush1.msra.mxu0 0.0
        %1491 = vmatprep.subr.mxu0 0.0
        %1492 = vmatpush1.msra.mxu0 0.0
        %1493 = vmatprep.subr.mxu0 0.0
        %1494 = vmatpush1.msra.mxu0 0.0
        %1495 = vmatprep.subr.mxu0 0.0
        %1496 = vmatpush1.msra.mxu0 0.0
        %1497 = vmatprep.subr.mxu0 0.0
        %1498 = vmatpush1.msra.mxu0 0.0
        %1499 = vmatprep.subr.mxu0 0.0
        %1500 = vmatpush1.msra.mxu0 0.0
        %1501 = vmatprep.subr.mxu0 0.0
        %1502 = vmatpush1.msra.mxu0 0.0
        %1503 = vmatprep.subr.mxu0 0.0
        %1504 = vmatpush1.msra.mxu0 0.0
        %1505 = vmatprep.mubr.f32.mxu0 0.0
        %1506 = vmatmul.mubr.f32.gmra.mrb[0].mxu0 %v381
        %v1507 = vpop.f32.mrb[0].mxu0
        %v1508 = vadd.f32 0.0, %v1507
        %v1509 = vpop.f32.mrb[0].mxu0
        %1510 = vdwg.mxu0
        %v1511 = vsub.f32 %v1508, %v248
        %v1512 = vand.u32 2147483647, %v1511
        %vm1513 = vcmp.le.f32.partialorder %v1512, 0.25
        %v1514 = vsel %vm1513, %v1508, %v248
        %1515 = vst.msk [vmem:[#allocation2 + $0x9] sm:$0x1] %vm457, %v1514
        %1516 = vst.msk [vmem:[%s459 + $0x8] sm:$0x2] %vm460, %v1514
        %1517 = vst.msk [vmem:[%s462 + $0x7] sm:$0x4] %vm463, %v1514
        %v1518 = vsel %vm265, %v1432, -inf
        %v1519 = vsel %vm265, %v1433, -inf
        %v1520 = vsel %vm265, %v1434, -inf
        %v1521 = vmax.f32 %v1518, %v1519
        %v1522 = vmax.f32 %v1521, %v1520
        %v1523 = vrot.slane %v1522, 4
        %v1524 = vmax.f32 %v1522, %v1523
        %v1525 = vrot.slane %v1524, 2
        %v1526 = vmax.f32 %v1524, %v1525
        %v1527 = vrot.slane %v1526, 1
        %v1528 = vmax.f32 %v1526, %v1527
        %vm1529 = vcmp.eq.f32.partialorder %v1432, %v1528
        %vm1530 = vcmp.eq.f32.partialorder %v1433, %v1528
        %vm1531 = vcmp.eq.f32.partialorder %v1434, %v1528
        %v1532 = vsel %vm1529, %v337, 24.0
        %v1533 = vsel %vm1530, %v338, 24.0
        %v1534 = vsel %vm1531, %v339, 24.0
        %v1535 = vsel %vm265, %v1532, inf
        %v1536 = vsel %vm265, %v1533, inf
        %v1537 = vsel %vm265, %v1534, inf
        %v1538 = vmin.f32 %v1535, %v1536
        %v1539 = vmin.f32 %v1538, %v1537
        %v1540 = vrot.slane %v1539, 4
        %v1541 = vmin.f32 %v1539, %v1540
        %v1542 = vrot.slane %v1541, 2
        %v1543 = vmin.f32 %v1541, %v1542
        %v1544 = vrot.slane %v1543, 1
        %v1545 = vmin.f32 %v1543, %v1544
        %vm1546 = vcmp.eq.f32.partialorder %v337, %v1545
        %vm1547 = vcmp.eq.f32.partialorder %v338, %v1545
        %vm1548 = vcmp.eq.f32.partialorder %v339, %v1545
        %v1549 = vsel %vm1546, -inf, %v1432
        %v1550 = vsel %vm1547, -inf, %v1433
        %v1551 = vsel %vm1548, -inf, %v1434
        %v1552 = vsel %vm1546, 1, 0
        %v1553 = vsel %vm1547, 1, 0
        %v1554 = vsel %vm1548, 1, 0
        %v1555 = vcvt.s32.f32 %v1552
        %v1556 = vcvt.s32.f32 %v1553
        %v1557 = vcvt.s32.f32 %v1554
        %1558 = vmatprep.subr.mxu0 0.0
        %1559 = vmatpush1.msra.mxu0 %v1555
        %1560 = vmatprep.subr.mxu0 0.0
        %1561 = vmatpush1.msra.mxu0 %v1556
        %1562 = vmatprep.subr.mxu0 0.0
        %1563 = vmatpush1.msra.mxu0 %v1557
        %1564 = vmatprep.subr.mxu0 0.0
        %1565 = vmatpush1.msra.mxu0 0.0
        %1566 = vmatprep.subr.mxu0 0.0
        %1567 = vmatpush1.msra.mxu0 0.0
        %1568 = vmatprep.subr.mxu0 0.0
        %1569 = vmatpush1.msra.mxu0 0.0
        %1570 = vmatprep.subr.mxu0 0.0
        %1571 = vmatpush1.msra.mxu0 0.0
        %1572 = vmatprep.subr.mxu0 0.0
        %1573 = vmatpush1.msra.mxu0 0.0
        %1574 = vmatprep.subr.mxu0 0.0
        %1575 = vmatpush1.msra.mxu0 0.0
        %1576 = vmatprep.subr.mxu0 0.0
        %1577 = vmatpush1.msra.mxu0 0.0
        %1578 = vmatprep.subr.mxu0 0.0
        %1579 = vmatpush1.msra.mxu0 0.0
        %1580 = vmatprep.subr.mxu0 0.0
        %1581 = vmatpush1.msra.mxu0 0.0
        %1582 = vmatprep.subr.mxu0 0.0
        %1583 = vmatpush1.msra.mxu0 0.0
        %1584 = vmatprep.subr.mxu0 0.0
        %1585 = vmatpush1.msra.mxu0 0.0
        %1586 = vmatprep.subr.mxu0 0.0
        %1587 = vmatpush1.msra.mxu0 0.0
        %1588 = vmatprep.subr.mxu0 0.0
        %1589 = vmatpush1.msra.mxu0 0.0
        %1590 = vmatprep.subr.mxu0 0.0
        %1591 = vmatpush1.msra.mxu0 0.0
        %1592 = vmatprep.subr.mxu0 0.0
        %1593 = vmatpush1.msra.mxu0 0.0
        %1594 = vmatprep.subr.mxu0 0.0
        %1595 = vmatpush1.msra.mxu0 0.0
        %1596 = vmatprep.subr.mxu0 0.0
        %1597 = vmatpush1.msra.mxu0 0.0
        %1598 = vmatprep.subr.mxu0 0.0
        %1599 = vmatpush1.msra.mxu0 0.0
        %1600 = vmatprep.subr.mxu0 0.0
        %1601 = vmatpush1.msra.mxu0 0.0
        %1602 = vmatprep.subr.mxu0 0.0
        %1603 = vmatpush1.msra.mxu0 0.0
        %1604 = vmatprep.subr.mxu0 0.0
        %1605 = vmatpush1.msra.mxu0 0.0
        %1606 = vmatprep.subr.mxu0 0.0
        %1607 = vmatpush1.msra.mxu0 0.0
        %1608 = vmatprep.subr.mxu0 0.0
        %1609 = vmatpush1.msra.mxu0 0.0
        %1610 = vmatprep.subr.mxu0 0.0
        %1611 = vmatpush1.msra.mxu0 0.0
        %1612 = vmatprep.subr.mxu0 0.0
        %1613 = vmatpush1.msra.mxu0 0.0
        %1614 = vmatprep.subr.mxu0 0.0
        %1615 = vmatpush1.msra.mxu0 0.0
        %1616 = vmatprep.subr.mxu0 0.0
        %1617 = vmatpush1.msra.mxu0 0.0
        %1618 = vmatprep.subr.mxu0 0.0
        %1619 = vmatpush1.msra.mxu0 0.0
        %1620 = vmatprep.subr.mxu0 0.0
        %1621 = vmatpush1.msra.mxu0 0.0
        %1622 = vmatprep.mubr.f32.mxu0 0.0
        %1623 = vmatmul.mubr.f32.gmra.mrb[0].mxu0 %v381
        %v1624 = vpop.f32.mrb[0].mxu0
        %v1625 = vadd.f32 0.0, %v1624
        %v1626 = vpop.f32.mrb[0].mxu0
        %1627 = vdwg.mxu0
        %v1628 = vsub.f32 %v1625, %v248
        %v1629 = vand.u32 2147483647, %v1628
        %vm1630 = vcmp.le.f32.partialorder %v1629, 0.25
        %v1631 = vsel %vm1630, %v1625, %v248
        %1632 = vst.msk [vmem:[#allocation2 + $0xa] sm:$0x1] %vm457, %v1631
        %1633 = vst.msk [vmem:[%s459 + $0x9] sm:$0x2] %vm460, %v1631
        %1634 = vst.msk [vmem:[%s462 + $0x8] sm:$0x4] %vm463, %v1631
        %v1635 = vsel %vm265, %v1549, -inf
        %v1636 = vsel %vm265, %v1550, -inf
        %v1637 = vsel %vm265, %v1551, -inf
        %v1638 = vmax.f32 %v1635, %v1636
        %v1639 = vmax.f32 %v1638, %v1637
        %v1640 = vrot.slane %v1639, 4
        %v1641 = vmax.f32 %v1639, %v1640
        %v1642 = vrot.slane %v1641, 2
        %v1643 = vmax.f32 %v1641, %v1642
        %v1644 = vrot.slane %v1643, 1
        %v1645 = vmax.f32 %v1643, %v1644
        %vm1646 = vcmp.eq.f32.partialorder %v1549, %v1645
        %vm1647 = vcmp.eq.f32.partialorder %v1550, %v1645
        %vm1648 = vcmp.eq.f32.partialorder %v1551, %v1645
        %v1649 = vsel %vm1646, %v337, 24.0
        %v1650 = vsel %vm1647, %v338, 24.0
        %v1651 = vsel %vm1648, %v339, 24.0
        %v1652 = vsel %vm265, %v1649, inf
        %v1653 = vsel %vm265, %v1650, inf
        %v1654 = vsel %vm265, %v1651, inf
        %v1655 = vmin.f32 %v1652, %v1653
        %v1656 = vmin.f32 %v1655, %v1654
        %v1657 = vrot.slane %v1656, 4
        %v1658 = vmin.f32 %v1656, %v1657
        %v1659 = vrot.slane %v1658, 2
        %v1660 = vmin.f32 %v1658, %v1659
        %v1661 = vrot.slane %v1660, 1
        %v1662 = vmin.f32 %v1660, %v1661
        %vm1663 = vcmp.eq.f32.partialorder %v337, %v1662
        %vm1664 = vcmp.eq.f32.partialorder %v338, %v1662
        %vm1665 = vcmp.eq.f32.partialorder %v339, %v1662
        %v1666 = vsel %vm1663, -inf, %v1549
        %v1667 = vsel %vm1664, -inf, %v1550
        %v1668 = vsel %vm1665, -inf, %v1551
        %v1669 = vsel %vm1663, 1, 0
        %v1670 = vsel %vm1664, 1, 0
        %v1671 = vsel %vm1665, 1, 0
        %v1672 = vcvt.s32.f32 %v1669
        %v1673 = vcvt.s32.f32 %v1670
        %v1674 = vcvt.s32.f32 %v1671
        %1675 = vmatprep.subr.mxu0 0.0
        %1676 = vmatpush1.msra.mxu0 %v1672
        %1677 = vmatprep.subr.mxu0 0.0
        %1678 = vmatpush1.msra.mxu0 %v1673
        %1679 = vmatprep.subr.mxu0 0.0
        %1680 = vmatpush1.msra.mxu0 %v1674
        %1681 = vmatprep.subr.mxu0 0.0
        %1682 = vmatpush1.msra.mxu0 0.0
        %1683 = vmatprep.subr.mxu0 0.0
        %1684 = vmatpush1.msra.mxu0 0.0
        %1685 = vmatprep.subr.mxu0 0.0
        %1686 = vmatpush1.msra.mxu0 0.0
        %1687 = vmatprep.subr.mxu0 0.0
        %1688 = vmatpush1.msra.mxu0 0.0
        %1689 = vmatprep.subr.mxu0 0.0
        %1690 = vmatpush1.msra.mxu0 0.0
        %1691 = vmatprep.subr.mxu0 0.0
        %1692 = vmatpush1.msra.mxu0 0.0
        %1693 = vmatprep.subr.mxu0 0.0
        %1694 = vmatpush1.msra.mxu0 0.0
        %1695 = vmatprep.subr.mxu0 0.0
        %1696 = vmatpush1.msra.mxu0 0.0
        %1697 = vmatprep.subr.mxu0 0.0
        %1698 = vmatpush1.msra.mxu0 0.0
        %1699 = vmatprep.subr.mxu0 0.0
        %1700 = vmatpush1.msra.mxu0 0.0
        %1701 = vmatprep.subr.mxu0 0.0
        %1702 = vmatpush1.msra.mxu0 0.0
        %1703 = vmatprep.subr.mxu0 0.0
        %1704 = vmatpush1.msra.mxu0 0.0
        %1705 = vmatprep.subr.mxu0 0.0
        %1706 = vmatpush1.msra.mxu0 0.0
        %1707 = vmatprep.subr.mxu0 0.0
        %1708 = vmatpush1.msra.mxu0 0.0
        %1709 = vmatprep.subr.mxu0 0.0
        %1710 = vmatpush1.msra.mxu0 0.0
        %1711 = vmatprep.subr.mxu0 0.0
        %1712 = vmatpush1.msra.mxu0 0.0
        %1713 = vmatprep.subr.mxu0 0.0
        %1714 = vmatpush1.msra.mxu0 0.0
        %1715 = vmatprep.subr.mxu0 0.0
        %1716 = vmatpush1.msra.mxu0 0.0
        %1717 = vmatprep.subr.mxu0 0.0
        %1718 = vmatpush1.msra.mxu0 0.0
        %1719 = vmatprep.subr.mxu0 0.0
        %1720 = vmatpush1.msra.mxu0 0.0
        %1721 = vmatprep.subr.mxu0 0.0
        %1722 = vmatpush1.msra.mxu0 0.0
        %1723 = vmatprep.subr.mxu0 0.0
        %1724 = vmatpush1.msra.mxu0 0.0
        %1725 = vmatprep.subr.mxu0 0.0
        %1726 = vmatpush1.msra.mxu0 0.0
        %1727 = vmatprep.subr.mxu0 0.0
        %1728 = vmatpush1.msra.mxu0 0.0
        %1729 = vmatprep.subr.mxu0 0.0
        %1730 = vmatpush1.msra.mxu0 0.0
        %1731 = vmatprep.subr.mxu0 0.0
        %1732 = vmatpush1.msra.mxu0 0.0
        %1733 = vmatprep.subr.mxu0 0.0
        %1734 = vmatpush1.msra.mxu0 0.0
        %1735 = vmatprep.subr.mxu0 0.0
        %1736 = vmatpush1.msra.mxu0 0.0
        %1737 = vmatprep.subr.mxu0 0.0
        %1738 = vmatpush1.msra.mxu0 0.0
        %1739 = vmatprep.mubr.f32.mxu0 0.0
        %1740 = vmatmul.mubr.f32.gmra.mrb[0].mxu0 %v381
        %v1741 = vpop.f32.mrb[0].mxu0
        %v1742 = vadd.f32 0.0, %v1741
        %v1743 = vpop.f32.mrb[0].mxu0
        %1744 = vdwg.mxu0
        %v1745 = vsub.f32 %v1742, %v248
        %v1746 = vand.u32 2147483647, %v1745
        %vm1747 = vcmp.le.f32.partialorder %v1746, 0.25
        %v1748 = vsel %vm1747, %v1742, %v248
        %1749 = vst.msk [vmem:[#allocation2 + $0xb] sm:$0x1] %vm457, %v1748
        %1750 = vst.msk [vmem:[%s459 + $0xa] sm:$0x2] %vm460, %v1748
        %1751 = vst.msk [vmem:[%s462 + $0x9] sm:$0x4] %vm463, %v1748
        %v1752 = vsel %vm265, %v1666, -inf
        %v1753 = vsel %vm265, %v1667, -inf
        %v1754 = vsel %vm265, %v1668, -inf
        %v1755 = vmax.f32 %v1752, %v1753
        %v1756 = vmax.f32 %v1755, %v1754
        %v1757 = vrot.slane %v1756, 4
        %v1758 = vmax.f32 %v1756, %v1757
        %v1759 = vrot.slane %v1758, 2
        %v1760 = vmax.f32 %v1758, %v1759
        %v1761 = vrot.slane %v1760, 1
        %v1762 = vmax.f32 %v1760, %v1761
        %vm1763 = vcmp.eq.f32.partialorder %v1666, %v1762
        %vm1764 = vcmp.eq.f32.partialorder %v1667, %v1762
        %vm1765 = vcmp.eq.f32.partialorder %v1668, %v1762
        %v1766 = vsel %vm1763, %v337, 24.0
        %v1767 = vsel %vm1764, %v338, 24.0
        %v1768 = vsel %vm1765, %v339, 24.0
        %v1769 = vsel %vm265, %v1766, inf
        %v1770 = vsel %vm265, %v1767, inf
        %v1771 = vsel %vm265, %v1768, inf
        %v1772 = vmin.f32 %v1769, %v1770
        %v1773 = vmin.f32 %v1772, %v1771
        %v1774 = vrot.slane %v1773, 4
        %v1775 = vmin.f32 %v1773, %v1774
        %v1776 = vrot.slane %v1775, 2
        %v1777 = vmin.f32 %v1775, %v1776
        %v1778 = vrot.slane %v1777, 1
        %v1779 = vmin.f32 %v1777, %v1778
        %vm1780 = vcmp.eq.f32.partialorder %v337, %v1779
        %vm1781 = vcmp.eq.f32.partialorder %v338, %v1779
        %vm1782 = vcmp.eq.f32.partialorder %v339, %v1779
        %v1783 = vsel %vm1780, -inf, %v1666
        %v1784 = vsel %vm1781, -inf, %v1667
        %v1785 = vsel %vm1782, -inf, %v1668
        %v1786 = vsel %vm1780, 1, 0
        %v1787 = vsel %vm1781, 1, 0
        %v1788 = vsel %vm1782, 1, 0
        %v1789 = vcvt.s32.f32 %v1786
        %v1790 = vcvt.s32.f32 %v1787
        %v1791 = vcvt.s32.f32 %v1788
        %1792 = vmatprep.subr.mxu0 0.0
        %1793 = vmatpush1.msra.mxu0 %v1789
        %1794 = vmatprep.subr.mxu0 0.0
        %1795 = vmatpush1.msra.mxu0 %v1790
        %1796 = vmatprep.subr.mxu0 0.0
        %1797 = vmatpush1.msra.mxu0 %v1791
        %1798 = vmatprep.subr.mxu0 0.0
        %1799 = vmatpush1.msra.mxu0 0.0
        %1800 = vmatprep.subr.mxu0 0.0
        %1801 = vmatpush1.msra.mxu0 0.0
        %1802 = vmatprep.subr.mxu0 0.0
        %1803 = vmatpush1.msra.mxu0 0.0
        %1804 = vmatprep.subr.mxu0 0.0
        %1805 = vmatpush1.msra.mxu0 0.0
        %1806 = vmatprep.subr.mxu0 0.0
        %1807 = vmatpush1.msra.mxu0 0.0
        %1808 = vmatprep.subr.mxu0 0.0
        %1809 = vmatpush1.msra.mxu0 0.0
        %1810 = vmatprep.subr.mxu0 0.0
        %1811 = vmatpush1.msra.mxu0 0.0
        %1812 = vmatprep.subr.mxu0 0.0
        %1813 = vmatpush1.msra.mxu0 0.0
        %1814 = vmatprep.subr.mxu0 0.0
        %1815 = vmatpush1.msra.mxu0 0.0
        %1816 = vmatprep.subr.mxu0 0.0
        %1817 = vmatpush1.msra.mxu0 0.0
        %1818 = vmatprep.subr.mxu0 0.0
        %1819 = vmatpush1.msra.mxu0 0.0
        %1820 = vmatprep.subr.mxu0 0.0
        %1821 = vmatpush1.msra.mxu0 0.0
        %1822 = vmatprep.subr.mxu0 0.0
        %1823 = vmatpush1.msra.mxu0 0.0
        %1824 = vmatprep.subr.mxu0 0.0
        %1825 = vmatpush1.msra.mxu0 0.0
        %1826 = vmatprep.subr.mxu0 0.0
        %1827 = vmatpush1.msra.mxu0 0.0
        %1828 = vmatprep.subr.mxu0 0.0
        %1829 = vmatpush1.msra.mxu0 0.0
        %1830 = vmatprep.subr.mxu0 0.0
        %1831 = vmatpush1.msra.mxu0 0.0
        %1832 = vmatprep.subr.mxu0 0.0
        %1833 = vmatpush1.msra.mxu0 0.0
        %1834 = vmatprep.subr.mxu0 0.0
        %1835 = vmatpush1.msra.mxu0 0.0
        %1836 = vmatprep.subr.mxu0 0.0
        %1837 = vmatpush1.msra.mxu0 0.0
        %1838 = vmatprep.subr.mxu0 0.0
        %1839 = vmatpush1.msra.mxu0 0.0
        %1840 = vmatprep.subr.mxu0 0.0
        %1841 = vmatpush1.msra.mxu0 0.0
        %1842 = vmatprep.subr.mxu0 0.0
        %1843 = vmatpush1.msra.mxu0 0.0
        %1844 = vmatprep.subr.mxu0 0.0
        %1845 = vmatpush1.msra.mxu0 0.0
        %1846 = vmatprep.subr.mxu0 0.0
        %1847 = vmatpush1.msra.mxu0 0.0
        %1848 = vmatprep.subr.mxu0 0.0
        %1849 = vmatpush1.msra.mxu0 0.0
        %1850 = vmatprep.subr.mxu0 0.0
        %1851 = vmatpush1.msra.mxu0 0.0
        %1852 = vmatprep.subr.mxu0 0.0
        %1853 = vmatpush1.msra.mxu0 0.0
        %1854 = vmatprep.subr.mxu0 0.0
        %1855 = vmatpush1.msra.mxu0 0.0
        %1856 = vmatprep.mubr.f32.mxu0 0.0
        %1857 = vmatmul.mubr.f32.gmra.mrb[0].mxu0 %v381
        %v1858 = vpop.f32.mrb[0].mxu0
        %v1859 = vadd.f32 0.0, %v1858
        %v1860 = vpop.f32.mrb[0].mxu0
        %1861 = vdwg.mxu0
        %v1862 = vsub.f32 %v1859, %v248
        %v1863 = vand.u32 2147483647, %v1862
        %vm1864 = vcmp.le.f32.partialorder %v1863, 0.25
        %v1865 = vsel %vm1864, %v1859, %v248
        %1866 = vst.msk [vmem:[#allocation2 + $0xc] sm:$0x1] %vm457, %v1865
        %1867 = vst.msk [vmem:[%s459 + $0xb] sm:$0x2] %vm460, %v1865
        %1868 = vst.msk [vmem:[%s462 + $0xa] sm:$0x4] %vm463, %v1865
        %v1869 = vsel %vm265, %v1783, -inf
        %v1870 = vsel %vm265, %v1784, -inf
        %v1871 = vsel %vm265, %v1785, -inf
        %v1872 = vmax.f32 %v1869, %v1870
        %v1873 = vmax.f32 %v1872, %v1871
        %v1874 = vrot.slane %v1873, 4
        %v1875 = vmax.f32 %v1873, %v1874
        %v1876 = vrot.slane %v1875, 2
        %v1877 = vmax.f32 %v1875, %v1876
        %v1878 = vrot.slane %v1877, 1
        %v1879 = vmax.f32 %v1877, %v1878
        %vm1880 = vcmp.eq.f32.partialorder %v1783, %v1879
        %vm1881 = vcmp.eq.f32.partialorder %v1784, %v1879
        %vm1882 = vcmp.eq.f32.partialorder %v1785, %v1879
        %v1883 = vsel %vm1880, %v337, 24.0
        %v1884 = vsel %vm1881, %v338, 24.0
        %v1885 = vsel %vm1882, %v339, 24.0
        %v1886 = vsel %vm265, %v1883, inf
        %v1887 = vsel %vm265, %v1884, inf
        %v1888 = vsel %vm265, %v1885, inf
        %v1889 = vmin.f32 %v1886, %v1887
        %v1890 = vmin.f32 %v1889, %v1888
        %v1891 = vrot.slane %v1890, 4
        %v1892 = vmin.f32 %v1890, %v1891
        %v1893 = vrot.slane %v1892, 2
        %v1894 = vmin.f32 %v1892, %v1893
        %v1895 = vrot.slane %v1894, 1
        %v1896 = vmin.f32 %v1894, %v1895
        %vm1897 = vcmp.eq.f32.partialorder %v337, %v1896
        %vm1898 = vcmp.eq.f32.partialorder %v338, %v1896
        %vm1899 = vcmp.eq.f32.partialorder %v339, %v1896
        %v1900 = vsel %vm1897, -inf, %v1783
        %v1901 = vsel %vm1898, -inf, %v1784
        %v1902 = vsel %vm1899, -inf, %v1785
        %v1903 = vsel %vm1897, 1, 0
        %v1904 = vsel %vm1898, 1, 0
        %v1905 = vsel %vm1899, 1, 0
        %v1906 = vcvt.s32.f32 %v1903
        %v1907 = vcvt.s32.f32 %v1904
        %v1908 = vcvt.s32.f32 %v1905
        %1909 = vmatprep.subr.mxu0 0.0
        %1910 = vmatpush1.msra.mxu0 %v1906
        %1911 = vmatprep.subr.mxu0 0.0
        %1912 = vmatpush1.msra.mxu0 %v1907
        %1913 = vmatprep.subr.mxu0 0.0
        %1914 = vmatpush1.msra.mxu0 %v1908
        %1915 = vmatprep.subr.mxu0 0.0
        %1916 = vmatpush1.msra.mxu0 0.0
        %1917 = vmatprep.subr.mxu0 0.0
        %1918 = vmatpush1.msra.mxu0 0.0
        %1919 = vmatprep.subr.mxu0 0.0
        %1920 = vmatpush1.msra.mxu0 0.0
        %1921 = vmatprep.subr.mxu0 0.0
        %1922 = vmatpush1.msra.mxu0 0.0
        %1923 = vmatprep.subr.mxu0 0.0
        %1924 = vmatpush1.msra.mxu0 0.0
        %1925 = vmatprep.subr.mxu0 0.0
        %1926 = vmatpush1.msra.mxu0 0.0
        %1927 = vmatprep.subr.mxu0 0.0
        %1928 = vmatpush1.msra.mxu0 0.0
        %1929 = vmatprep.subr.mxu0 0.0
        %1930 = vmatpush1.msra.mxu0 0.0
        %1931 = vmatprep.subr.mxu0 0.0
        %1932 = vmatpush1.msra.mxu0 0.0
        %1933 = vmatprep.subr.mxu0 0.0
        %1934 = vmatpush1.msra.mxu0 0.0
        %1935 = vmatprep.subr.mxu0 0.0
        %1936 = vmatpush1.msra.mxu0 0.0
        %1937 = vmatprep.subr.mxu0 0.0
        %1938 = vmatpush1.msra.mxu0 0.0
        %1939 = vmatprep.subr.mxu0 0.0
        %1940 = vmatpush1.msra.mxu0 0.0
        %1941 = vmatprep.subr.mxu0 0.0
        %1942 = vmatpush1.msra.mxu0 0.0
        %1943 = vmatprep.subr.mxu0 0.0
        %1944 = vmatpush1.msra.mxu0 0.0
        %1945 = vmatprep.subr.mxu0 0.0
        %1946 = vmatpush1.msra.mxu0 0.0
        %1947 = vmatprep.subr.mxu0 0.0
        %1948 = vmatpush1.msra.mxu0 0.0
        %1949 = vmatprep.subr.mxu0 0.0
        %1950 = vmatpush1.msra.mxu0 0.0
        %1951 = vmatprep.subr.mxu0 0.0
        %1952 = vmatpush1.msra.mxu0 0.0
        %1953 = vmatprep.subr.mxu0 0.0
        %1954 = vmatpush1.msra.mxu0 0.0
        %1955 = vmatprep.subr.mxu0 0.0
        %1956 = vmatpush1.msra.mxu0 0.0
        %1957 = vmatprep.subr.mxu0 0.0
        %1958 = vmatpush1.msra.mxu0 0.0
        %1959 = vmatprep.subr.mxu0 0.0
        %1960 = vmatpush1.msra.mxu0 0.0
        %1961 = vmatprep.subr.mxu0 0.0
        %1962 = vmatpush1.msra.mxu0 0.0
        %1963 = vmatprep.subr.mxu0 0.0
        %1964 = vmatpush1.msra.mxu0 0.0
        %1965 = vmatprep.subr.mxu0 0.0
        %1966 = vmatpush1.msra.mxu0 0.0
        %1967 = vmatprep.subr.mxu0 0.0
        %1968 = vmatpush1.msra.mxu0 0.0
        %1969 = vmatprep.subr.mxu0 0.0
        %1970 = vmatpush1.msra.mxu0 0.0
        %1971 = vmatprep.subr.mxu0 0.0
        %1972 = vmatpush1.msra.mxu0 0.0
        %1973 = vmatprep.mubr.f32.mxu0 0.0
        %1974 = vmatmul.mubr.f32.gmra.mrb[0].mxu0 %v381
        %v1975 = vpop.f32.mrb[0].mxu0
        %v1976 = vadd.f32 0.0, %v1975
        %v1977 = vpop.f32.mrb[0].mxu0
        %1978 = vdwg.mxu0
        %v1979 = vsub.f32 %v1976, %v248
        %v1980 = vand.u32 2147483647, %v1979
        %vm1981 = vcmp.le.f32.partialorder %v1980, 0.25
        %v1982 = vsel %vm1981, %v1976, %v248
        %1983 = vst.msk [vmem:[#allocation2 + $0xd] sm:$0x1] %vm457, %v1982
        %1984 = vst.msk [vmem:[%s459 + $0xc] sm:$0x2] %vm460, %v1982
        %1985 = vst.msk [vmem:[%s462 + $0xb] sm:$0x4] %vm463, %v1982
        %v1986 = vsel %vm265, %v1900, -inf
        %v1987 = vsel %vm265, %v1901, -inf
        %v1988 = vsel %vm265, %v1902, -inf
        %v1989 = vmax.f32 %v1986, %v1987
        %v1990 = vmax.f32 %v1989, %v1988
        %v1991 = vrot.slane %v1990, 4
        %v1992 = vmax.f32 %v1990, %v1991
        %v1993 = vrot.slane %v1992, 2
        %v1994 = vmax.f32 %v1992, %v1993
        %v1995 = vrot.slane %v1994, 1
        %v1996 = vmax.f32 %v1994, %v1995
        %vm1997 = vcmp.eq.f32.partialorder %v1900, %v1996
        %vm1998 = vcmp.eq.f32.partialorder %v1901, %v1996
        %vm1999 = vcmp.eq.f32.partialorder %v1902, %v1996
        %v2000 = vsel %vm1997, %v337, 24.0
        %v2001 = vsel %vm1998, %v338, 24.0
        %v2002 = vsel %vm1999, %v339, 24.0
        %v2003 = vsel %vm265, %v2000, inf
        %v2004 = vsel %vm265, %v2001, inf
        %v2005 = vsel %vm265, %v2002, inf
        %v2006 = vmin.f32 %v2003, %v2004
        %v2007 = vmin.f32 %v2006, %v2005
        %v2008 = vrot.slane %v2007, 4
        %v2009 = vmin.f32 %v2007, %v2008
        %v2010 = vrot.slane %v2009, 2
        %v2011 = vmin.f32 %v2009, %v2010
        %v2012 = vrot.slane %v2011, 1
        %v2013 = vmin.f32 %v2011, %v2012
        %vm2014 = vcmp.eq.f32.partialorder %v337, %v2013
        %vm2015 = vcmp.eq.f32.partialorder %v338, %v2013
        %vm2016 = vcmp.eq.f32.partialorder %v339, %v2013
        %v2017 = vsel %vm2014, -inf, %v1900
        %v2018 = vsel %vm2015, -inf, %v1901
        %v2019 = vsel %vm2016, -inf, %v1902
        %v2020 = vsel %vm2014, 1, 0
        %v2021 = vsel %vm2015, 1, 0
        %v2022 = vsel %vm2016, 1, 0
        %v2023 = vcvt.s32.f32 %v2020
        %v2024 = vcvt.s32.f32 %v2021
        %v2025 = vcvt.s32.f32 %v2022
        %2026 = vmatprep.subr.mxu0 0.0
        %2027 = vmatpush1.msra.mxu0 %v2023
        %2028 = vmatprep.subr.mxu0 0.0
        %2029 = vmatpush1.msra.mxu0 %v2024
        %2030 = vmatprep.subr.mxu0 0.0
        %2031 = vmatpush1.msra.mxu0 %v2025
        %2032 = vmatprep.subr.mxu0 0.0
        %2033 = vmatpush1.msra.mxu0 0.0
        %2034 = vmatprep.subr.mxu0 0.0
        %2035 = vmatpush1.msra.mxu0 0.0
        %2036 = vmatprep.subr.mxu0 0.0
        %2037 = vmatpush1.msra.mxu0 0.0
        %2038 = vmatprep.subr.mxu0 0.0
        %2039 = vmatpush1.msra.mxu0 0.0
        %2040 = vmatprep.subr.mxu0 0.0
        %2041 = vmatpush1.msra.mxu0 0.0
        %2042 = vmatprep.subr.mxu0 0.0
        %2043 = vmatpush1.msra.mxu0 0.0
        %2044 = vmatprep.subr.mxu0 0.0
        %2045 = vmatpush1.msra.mxu0 0.0
        %2046 = vmatprep.subr.mxu0 0.0
        %2047 = vmatpush1.msra.mxu0 0.0
        %2048 = vmatprep.subr.mxu0 0.0
        %2049 = vmatpush1.msra.mxu0 0.0
        %2050 = vmatprep.subr.mxu0 0.0
        %2051 = vmatpush1.msra.mxu0 0.0
        %2052 = vmatprep.subr.mxu0 0.0
        %2053 = vmatpush1.msra.mxu0 0.0
        %2054 = vmatprep.subr.mxu0 0.0
        %2055 = vmatpush1.msra.mxu0 0.0
        %2056 = vmatprep.subr.mxu0 0.0
        %2057 = vmatpush1.msra.mxu0 0.0
        %2058 = vmatprep.subr.mxu0 0.0
        %2059 = vmatpush1.msra.mxu0 0.0
        %2060 = vmatprep.subr.mxu0 0.0
        %2061 = vmatpush1.msra.mxu0 0.0
        %2062 = vmatprep.subr.mxu0 0.0
        %2063 = vmatpush1.msra.mxu0 0.0
        %2064 = vmatprep.subr.mxu0 0.0
        %2065 = vmatpush1.msra.mxu0 0.0
        %2066 = vmatprep.subr.mxu0 0.0
        %2067 = vmatpush1.msra.mxu0 0.0
        %2068 = vmatprep.subr.mxu0 0.0
        %2069 = vmatpush1.msra.mxu0 0.0
        %2070 = vmatprep.subr.mxu0 0.0
        %2071 = vmatpush1.msra.mxu0 0.0
        %2072 = vmatprep.subr.mxu0 0.0
        %2073 = vmatpush1.msra.mxu0 0.0
        %2074 = vmatprep.subr.mxu0 0.0
        %2075 = vmatpush1.msra.mxu0 0.0
        %2076 = vmatprep.subr.mxu0 0.0
        %2077 = vmatpush1.msra.mxu0 0.0
        %2078 = vmatprep.subr.mxu0 0.0
        %2079 = vmatpush1.msra.mxu0 0.0
        %2080 = vmatprep.subr.mxu0 0.0
        %2081 = vmatpush1.msra.mxu0 0.0
        %2082 = vmatprep.subr.mxu0 0.0
        %2083 = vmatpush1.msra.mxu0 0.0
        %2084 = vmatprep.subr.mxu0 0.0
        %2085 = vmatpush1.msra.mxu0 0.0
        %2086 = vmatprep.subr.mxu0 0.0
        %2087 = vmatpush1.msra.mxu0 0.0
        %2088 = vmatprep.subr.mxu0 0.0
        %2089 = vmatpush1.msra.mxu0 0.0
        %2090 = vmatprep.mubr.f32.mxu0 0.0
        %2091 = vmatmul.mubr.f32.gmra.mrb[0].mxu0 %v381
        %v2092 = vpop.f32.mrb[0].mxu0
        %v2093 = vadd.f32 0.0, %v2092
        %v2094 = vpop.f32.mrb[0].mxu0
        %2095 = vdwg.mxu0
        %v2096 = vsub.f32 %v2093, %v248
        %v2097 = vand.u32 2147483647, %v2096
        %vm2098 = vcmp.le.f32.partialorder %v2097, 0.25
        %v2099 = vsel %vm2098, %v2093, %v248
        %2100 = vst.msk [vmem:[#allocation2 + $0xe] sm:$0x1] %vm457, %v2099
        %2101 = vst.msk [vmem:[%s459 + $0xd] sm:$0x2] %vm460, %v2099
        %2102 = vst.msk [vmem:[%s462 + $0xc] sm:$0x4] %vm463, %v2099
        %v2103 = vsel %vm265, %v2017, -inf
        %v2104 = vsel %vm265, %v2018, -inf
        %v2105 = vsel %vm265, %v2019, -inf
        %v2106 = vmax.f32 %v2103, %v2104
        %v2107 = vmax.f32 %v2106, %v2105
        %v2108 = vrot.slane %v2107, 4
        %v2109 = vmax.f32 %v2107, %v2108
        %v2110 = vrot.slane %v2109, 2
        %v2111 = vmax.f32 %v2109, %v2110
        %v2112 = vrot.slane %v2111, 1
        %v2113 = vmax.f32 %v2111, %v2112
        %vm2114 = vcmp.eq.f32.partialorder %v2017, %v2113
        %vm2115 = vcmp.eq.f32.partialorder %v2018, %v2113
        %vm2116 = vcmp.eq.f32.partialorder %v2019, %v2113
        %v2117 = vsel %vm2114, %v337, 24.0
        %v2118 = vsel %vm2115, %v338, 24.0
        %v2119 = vsel %vm2116, %v339, 24.0
        %v2120 = vsel %vm265, %v2117, inf
        %v2121 = vsel %vm265, %v2118, inf
        %v2122 = vsel %vm265, %v2119, inf
        %v2123 = vmin.f32 %v2120, %v2121
        %v2124 = vmin.f32 %v2123, %v2122
        %v2125 = vrot.slane %v2124, 4
        %v2126 = vmin.f32 %v2124, %v2125
        %v2127 = vrot.slane %v2126, 2
        %v2128 = vmin.f32 %v2126, %v2127
        %v2129 = vrot.slane %v2128, 1
        %v2130 = vmin.f32 %v2128, %v2129
        %vm2131 = vcmp.eq.f32.partialorder %v337, %v2130
        %vm2132 = vcmp.eq.f32.partialorder %v338, %v2130
        %vm2133 = vcmp.eq.f32.partialorder %v339, %v2130
        %v2134 = vsel %vm2131, -inf, %v2017
        %v2135 = vsel %vm2132, -inf, %v2018
        %v2136 = vsel %vm2133, -inf, %v2019
        %v2137 = vsel %vm2131, 1, 0
        %v2138 = vsel %vm2132, 1, 0
        %v2139 = vsel %vm2133, 1, 0
        %v2140 = vcvt.s32.f32 %v2137
        %v2141 = vcvt.s32.f32 %v2138
        %v2142 = vcvt.s32.f32 %v2139
        %2143 = vmatprep.subr.mxu0 0.0
        %2144 = vmatpush1.msra.mxu0 %v2140
        %2145 = vmatprep.subr.mxu0 0.0
        %2146 = vmatpush1.msra.mxu0 %v2141
        %2147 = vmatprep.subr.mxu0 0.0
        %2148 = vmatpush1.msra.mxu0 %v2142
        %2149 = vmatprep.subr.mxu0 0.0
        %2150 = vmatpush1.msra.mxu0 0.0
        %2151 = vmatprep.subr.mxu0 0.0
        %2152 = vmatpush1.msra.mxu0 0.0
        %2153 = vmatprep.subr.mxu0 0.0
        %2154 = vmatpush1.msra.mxu0 0.0
        %2155 = vmatprep.subr.mxu0 0.0
        %2156 = vmatpush1.msra.mxu0 0.0
        %2157 = vmatprep.subr.mxu0 0.0
        %2158 = vmatpush1.msra.mxu0 0.0
        %2159 = vmatprep.subr.mxu0 0.0
        %2160 = vmatpush1.msra.mxu0 0.0
        %2161 = vmatprep.subr.mxu0 0.0
        %2162 = vmatpush1.msra.mxu0 0.0
        %2163 = vmatprep.subr.mxu0 0.0
        %2164 = vmatpush1.msra.mxu0 0.0
        %2165 = vmatprep.subr.mxu0 0.0
        %2166 = vmatpush1.msra.mxu0 0.0
        %2167 = vmatprep.subr.mxu0 0.0
        %2168 = vmatpush1.msra.mxu0 0.0
        %2169 = vmatprep.subr.mxu0 0.0
        %2170 = vmatpush1.msra.mxu0 0.0
        %2171 = vmatprep.subr.mxu0 0.0
        %2172 = vmatpush1.msra.mxu0 0.0
        %2173 = vmatprep.subr.mxu0 0.0
        %2174 = vmatpush1.msra.mxu0 0.0
        %2175 = vmatprep.subr.mxu0 0.0
        %2176 = vmatpush1.msra.mxu0 0.0
        %2177 = vmatprep.subr.mxu0 0.0
        %2178 = vmatpush1.msra.mxu0 0.0
        %2179 = vmatprep.subr.mxu0 0.0
        %2180 = vmatpush1.msra.mxu0 0.0
        %2181 = vmatprep.subr.mxu0 0.0
        %2182 = vmatpush1.msra.mxu0 0.0
        %2183 = vmatprep.subr.mxu0 0.0
        %2184 = vmatpush1.msra.mxu0 0.0
        %2185 = vmatprep.subr.mxu0 0.0
        %2186 = vmatpush1.msra.mxu0 0.0
        %2187 = vmatprep.subr.mxu0 0.0
        %2188 = vmatpush1.msra.mxu0 0.0
        %2189 = vmatprep.subr.mxu0 0.0
        %2190 = vmatpush1.msra.mxu0 0.0
        %2191 = vmatprep.subr.mxu0 0.0
        %2192 = vmatpush1.msra.mxu0 0.0
        %2193 = vmatprep.subr.mxu0 0.0
        %2194 = vmatpush1.msra.mxu0 0.0
        %2195 = vmatprep.subr.mxu0 0.0
        %2196 = vmatpush1.msra.mxu0 0.0
        %2197 = vmatprep.subr.mxu0 0.0
        %2198 = vmatpush1.msra.mxu0 0.0
        %2199 = vmatprep.subr.mxu0 0.0
        %2200 = vmatpush1.msra.mxu0 0.0
        %2201 = vmatprep.subr.mxu0 0.0
        %2202 = vmatpush1.msra.mxu0 0.0
        %2203 = vmatprep.subr.mxu0 0.0
        %2204 = vmatpush1.msra.mxu0 0.0
        %2205 = vmatprep.subr.mxu0 0.0
        %2206 = vmatpush1.msra.mxu0 0.0
        %2207 = vmatprep.mubr.f32.mxu0 0.0
        %2208 = vmatmul.mubr.f32.gmra.mrb[0].mxu0 %v381
        %v2209 = vpop.f32.mrb[0].mxu0
        %v2210 = vadd.f32 0.0, %v2209
        %v2211 = vpop.f32.mrb[0].mxu0
        %2212 = vdwg.mxu0
        %v2213 = vsub.f32 %v2210, %v248
        %v2214 = vand.u32 2147483647, %v2213
        %vm2215 = vcmp.le.f32.partialorder %v2214, 0.25
        %v2216 = vsel %vm2215, %v2210, %v248
        %2217 = vst.msk [vmem:[#allocation2 + $0xf] sm:$0x1] %vm457, %v2216
        %2218 = vst.msk [vmem:[%s459 + $0xe] sm:$0x2] %vm460, %v2216
        %2219 = vst.msk [vmem:[%s462 + $0xd] sm:$0x4] %vm463, %v2216
        %v2220 = vsel %vm265, %v2134, -inf
        %v2221 = vsel %vm265, %v2135, -inf
        %v2222 = vsel %vm265, %v2136, -inf
        %v2223 = vmax.f32 %v2220, %v2221
        %v2224 = vmax.f32 %v2223, %v2222
        %v2225 = vrot.slane %v2224, 4
        %v2226 = vmax.f32 %v2224, %v2225
        %v2227 = vrot.slane %v2226, 2
        %v2228 = vmax.f32 %v2226, %v2227
        %v2229 = vrot.slane %v2228, 1
        %v2230 = vmax.f32 %v2228, %v2229
        %vm2231 = vcmp.eq.f32.partialorder %v2134, %v2230
        %vm2232 = vcmp.eq.f32.partialorder %v2135, %v2230
        %vm2233 = vcmp.eq.f32.partialorder %v2136, %v2230
        %v2234 = vsel %vm2231, %v337, 24.0
        %v2235 = vsel %vm2232, %v338, 24.0
        %v2236 = vsel %vm2233, %v339, 24.0
        %v2237 = vsel %vm265, %v2234, inf
        %v2238 = vsel %vm265, %v2235, inf
        %v2239 = vsel %vm265, %v2236, inf
        %v2240 = vmin.f32 %v2237, %v2238
        %v2241 = vmin.f32 %v2240, %v2239
        %v2242 = vrot.slane %v2241, 4
        %v2243 = vmin.f32 %v2241, %v2242
        %v2244 = vrot.slane %v2243, 2
        %v2245 = vmin.f32 %v2243, %v2244
        %v2246 = vrot.slane %v2245, 1
        %v2247 = vmin.f32 %v2245, %v2246
        %vm2248 = vcmp.eq.f32.partialorder %v337, %v2247
        %vm2249 = vcmp.eq.f32.partialorder %v338, %v2247
        %vm2250 = vcmp.eq.f32.partialorder %v339, %v2247
        %v2251 = vsel %vm2248, -inf, %v2134
        %v2252 = vsel %vm2249, -inf, %v2135
        %v2253 = vsel %vm2250, -inf, %v2136
        %v2254 = vsel %vm2248, 1, 0
        %v2255 = vsel %vm2249, 1, 0
        %v2256 = vsel %vm2250, 1, 0
        %v2257 = vcvt.s32.f32 %v2254
        %v2258 = vcvt.s32.f32 %v2255
        %v2259 = vcvt.s32.f32 %v2256
        %2260 = vmatprep.subr.mxu0 0.0
        %2261 = vmatpush1.msra.mxu0 %v2257
        %2262 = vmatprep.subr.mxu0 0.0
        %2263 = vmatpush1.msra.mxu0 %v2258
        %2264 = vmatprep.subr.mxu0 0.0
        %2265 = vmatpush1.msra.mxu0 %v2259
        %2266 = vmatprep.subr.mxu0 0.0
        %2267 = vmatpush1.msra.mxu0 0.0
        %2268 = vmatprep.subr.mxu0 0.0
        %2269 = vmatpush1.msra.mxu0 0.0
        %2270 = vmatprep.subr.mxu0 0.0
        %2271 = vmatpush1.msra.mxu0 0.0
        %2272 = vmatprep.subr.mxu0 0.0
        %2273 = vmatpush1.msra.mxu0 0.0
        %2274 = vmatprep.subr.mxu0 0.0
        %2275 = vmatpush1.msra.mxu0 0.0
        %2276 = vmatprep.subr.mxu0 0.0
        %2277 = vmatpush1.msra.mxu0 0.0
        %2278 = vmatprep.subr.mxu0 0.0
        %2279 = vmatpush1.msra.mxu0 0.0
        %2280 = vmatprep.subr.mxu0 0.0
        %2281 = vmatpush1.msra.mxu0 0.0
        %2282 = vmatprep.subr.mxu0 0.0
        %2283 = vmatpush1.msra.mxu0 0.0
        %2284 = vmatprep.subr.mxu0 0.0
        %2285 = vmatpush1.msra.mxu0 0.0
        %2286 = vmatprep.subr.mxu0 0.0
        %2287 = vmatpush1.msra.mxu0 0.0
        %2288 = vmatprep.subr.mxu0 0.0
        %2289 = vmatpush1.msra.mxu0 0.0
        %2290 = vmatprep.subr.mxu0 0.0
        %2291 = vmatpush1.msra.mxu0 0.0
        %2292 = vmatprep.subr.mxu0 0.0
        %2293 = vmatpush1.msra.mxu0 0.0
        %2294 = vmatprep.subr.mxu0 0.0
        %2295 = vmatpush1.msra.mxu0 0.0
        %2296 = vmatprep.subr.mxu0 0.0
        %2297 = vmatpush1.msra.mxu0 0.0
        %2298 = vmatprep.subr.mxu0 0.0
        %2299 = vmatpush1.msra.mxu0 0.0
        %2300 = vmatprep.subr.mxu0 0.0
        %2301 = vmatpush1.msra.mxu0 0.0
        %2302 = vmatprep.subr.mxu0 0.0
        %2303 = vmatpush1.msra.mxu0 0.0
        %2304 = vmatprep.subr.mxu0 0.0
        %2305 = vmatpush1.msra.mxu0 0.0
        %2306 = vmatprep.subr.mxu0 0.0
        %2307 = vmatpush1.msra.mxu0 0.0
        %2308 = vmatprep.subr.mxu0 0.0
        %2309 = vmatpush1.msra.mxu0 0.0
        %2310 = vmatprep.subr.mxu0 0.0
        %2311 = vmatpush1.msra.mxu0 0.0
        %2312 = vmatprep.subr.mxu0 0.0
        %2313 = vmatpush1.msra.mxu0 0.0
        %2314 = vmatprep.subr.mxu0 0.0
        %2315 = vmatpush1.msra.mxu0 0.0
        %2316 = vmatprep.subr.mxu0 0.0
        %2317 = vmatpush1.msra.mxu0 0.0
        %2318 = vmatprep.subr.mxu0 0.0
        %2319 = vmatpush1.msra.mxu0 0.0
        %2320 = vmatprep.subr.mxu0 0.0
        %2321 = vmatpush1.msra.mxu0 0.0
        %2322 = vmatprep.subr.mxu0 0.0
        %2323 = vmatpush1.msra.mxu0 0.0
        %2324 = vmatprep.mubr.f32.mxu0 0.0
        %2325 = vmatmul.mubr.f32.gmra.mrb[0].mxu0 %v381
        %v2326 = vpop.f32.mrb[0].mxu0
        %v2327 = vadd.f32 0.0, %v2326
        %v2328 = vpop.f32.mrb[0].mxu0
        %2329 = vdwg.mxu0
        %v2330 = vsub.f32 %v2327, %v248
        %v2331 = vand.u32 2147483647, %v2330
        %vm2332 = vcmp.le.f32.partialorder %v2331, 0.25
        %v2333 = vsel %vm2332, %v2327, %v248
        %2334 = vst.msk [vmem:[#allocation2 + $0x10] sm:$0x1] %vm457, %v2333
        %2335 = vst.msk [vmem:[%s459 + $0xf] sm:$0x2] %vm460, %v2333
        %2336 = vst.msk [vmem:[%s462 + $0xe] sm:$0x4] %vm463, %v2333
        %v2337 = vsel %vm265, %v2251, -inf
        %v2338 = vsel %vm265, %v2252, -inf
        %v2339 = vsel %vm265, %v2253, -inf
        %v2340 = vmax.f32 %v2337, %v2338
        %v2341 = vmax.f32 %v2340, %v2339
        %v2342 = vrot.slane %v2341, 4
        %v2343 = vmax.f32 %v2341, %v2342
        %v2344 = vrot.slane %v2343, 2
        %v2345 = vmax.f32 %v2343, %v2344
        %v2346 = vrot.slane %v2345, 1
        %v2347 = vmax.f32 %v2345, %v2346
        %vm2348 = vcmp.eq.f32.partialorder %v2251, %v2347
        %vm2349 = vcmp.eq.f32.partialorder %v2252, %v2347
        %vm2350 = vcmp.eq.f32.partialorder %v2253, %v2347
        %v2351 = vsel %vm2348, %v337, 24.0
        %v2352 = vsel %vm2349, %v338, 24.0
        %v2353 = vsel %vm2350, %v339, 24.0
        %v2354 = vsel %vm265, %v2351, inf
        %v2355 = vsel %vm265, %v2352, inf
        %v2356 = vsel %vm265, %v2353, inf
        %v2357 = vmin.f32 %v2354, %v2355
        %v2358 = vmin.f32 %v2357, %v2356
        %v2359 = vrot.slane %v2358, 4
        %v2360 = vmin.f32 %v2358, %v2359
        %v2361 = vrot.slane %v2360, 2
        %v2362 = vmin.f32 %v2360, %v2361
        %v2363 = vrot.slane %v2362, 1
        %v2364 = vmin.f32 %v2362, %v2363
        %vm2365 = vcmp.eq.f32.partialorder %v337, %v2364
        %vm2366 = vcmp.eq.f32.partialorder %v338, %v2364
        %vm2367 = vcmp.eq.f32.partialorder %v339, %v2364
        %v2368 = vsel %vm2365, -inf, %v2251
        %v2369 = vsel %vm2366, -inf, %v2252
        %v2370 = vsel %vm2367, -inf, %v2253
        %v2371 = vsel %vm2365, 1, 0
        %v2372 = vsel %vm2366, 1, 0
        %v2373 = vsel %vm2367, 1, 0
        %v2374 = vcvt.s32.f32 %v2371
        %v2375 = vcvt.s32.f32 %v2372
        %v2376 = vcvt.s32.f32 %v2373
        %2377 = vmatprep.subr.mxu0 0.0
        %2378 = vmatpush1.msra.mxu0 %v2374
        %2379 = vmatprep.subr.mxu0 0.0
        %2380 = vmatpush1.msra.mxu0 %v2375
        %2381 = vmatprep.subr.mxu0 0.0
        %2382 = vmatpush1.msra.mxu0 %v2376
        %2383 = vmatprep.subr.mxu0 0.0
        %2384 = vmatpush1.msra.mxu0 0.0
        %2385 = vmatprep.subr.mxu0 0.0
        %2386 = vmatpush1.msra.mxu0 0.0
        %2387 = vmatprep.subr.mxu0 0.0
        %2388 = vmatpush1.msra.mxu0 0.0
        %2389 = vmatprep.subr.mxu0 0.0
        %2390 = vmatpush1.msra.mxu0 0.0
        %2391 = vmatprep.subr.mxu0 0.0
        %2392 = vmatpush1.msra.mxu0 0.0
        %2393 = vmatprep.subr.mxu0 0.0
        %2394 = vmatpush1.msra.mxu0 0.0
        %2395 = vmatprep.subr.mxu0 0.0
        %2396 = vmatpush1.msra.mxu0 0.0
        %2397 = vmatprep.subr.mxu0 0.0
        %2398 = vmatpush1.msra.mxu0 0.0
        %2399 = vmatprep.subr.mxu0 0.0
        %2400 = vmatpush1.msra.mxu0 0.0
        %2401 = vmatprep.subr.mxu0 0.0
        %2402 = vmatpush1.msra.mxu0 0.0
        %2403 = vmatprep.subr.mxu0 0.0
        %2404 = vmatpush1.msra.mxu0 0.0
        %2405 = vmatprep.subr.mxu0 0.0
        %2406 = vmatpush1.msra.mxu0 0.0
        %2407 = vmatprep.subr.mxu0 0.0
        %2408 = vmatpush1.msra.mxu0 0.0
        %2409 = vmatprep.subr.mxu0 0.0
        %2410 = vmatpush1.msra.mxu0 0.0
        %2411 = vmatprep.subr.mxu0 0.0
        %2412 = vmatpush1.msra.mxu0 0.0
        %2413 = vmatprep.subr.mxu0 0.0
        %2414 = vmatpush1.msra.mxu0 0.0
        %2415 = vmatprep.subr.mxu0 0.0
        %2416 = vmatpush1.msra.mxu0 0.0
        %2417 = vmatprep.subr.mxu0 0.0
        %2418 = vmatpush1.msra.mxu0 0.0
        %2419 = vmatprep.subr.mxu0 0.0
        %2420 = vmatpush1.msra.mxu0 0.0
        %2421 = vmatprep.subr.mxu0 0.0
        %2422 = vmatpush1.msra.mxu0 0.0
        %2423 = vmatprep.subr.mxu0 0.0
        %2424 = vmatpush1.msra.mxu0 0.0
        %2425 = vmatprep.subr.mxu0 0.0
        %2426 = vmatpush1.msra.mxu0 0.0
        %2427 = vmatprep.subr.mxu0 0.0
        %2428 = vmatpush1.msra.mxu0 0.0
        %2429 = vmatprep.subr.mxu0 0.0
        %2430 = vmatpush1.msra.mxu0 0.0
        %2431 = vmatprep.subr.mxu0 0.0
        %2432 = vmatpush1.msra.mxu0 0.0
        %2433 = vmatprep.subr.mxu0 0.0
        %2434 = vmatpush1.msra.mxu0 0.0
        %2435 = vmatprep.subr.mxu0 0.0
        %2436 = vmatpush1.msra.mxu0 0.0
        %2437 = vmatprep.subr.mxu0 0.0
        %2438 = vmatpush1.msra.mxu0 0.0
        %2439 = vmatprep.subr.mxu0 0.0
        %2440 = vmatpush1.msra.mxu0 0.0
        %2441 = vmatprep.mubr.f32.mxu0 0.0
        %2442 = vmatmul.mubr.f32.gmra.mrb[0].mxu0 %v381
        %v2443 = vpop.f32.mrb[0].mxu0
        %v2444 = vadd.f32 0.0, %v2443
        %v2445 = vpop.f32.mrb[0].mxu0
        %2446 = vdwg.mxu0
        %v2447 = vsub.f32 %v2444, %v248
        %v2448 = vand.u32 2147483647, %v2447
        %vm2449 = vcmp.le.f32.partialorder %v2448, 0.25
        %v2450 = vsel %vm2449, %v2444, %v248
        %2451 = vst.msk [vmem:[#allocation2 + $0x11] sm:$0x1] %vm457, %v2450
        %2452 = vst.msk [vmem:[%s459 + $0x10] sm:$0x2] %vm460, %v2450
        %2453 = vst.msk [vmem:[%s462 + $0xf] sm:$0x4] %vm463, %v2450
        %v2454 = vsel %vm265, %v2368, -inf
        %v2455 = vsel %vm265, %v2369, -inf
        %v2456 = vsel %vm265, %v2370, -inf
        %v2457 = vmax.f32 %v2454, %v2455
        %v2458 = vmax.f32 %v2457, %v2456
        %v2459 = vrot.slane %v2458, 4
        %v2460 = vmax.f32 %v2458, %v2459
        %v2461 = vrot.slane %v2460, 2
        %v2462 = vmax.f32 %v2460, %v2461
        %v2463 = vrot.slane %v2462, 1
        %v2464 = vmax.f32 %v2462, %v2463
        %vm2465 = vcmp.eq.f32.partialorder %v2368, %v2464
        %vm2466 = vcmp.eq.f32.partialorder %v2369, %v2464
        %vm2467 = vcmp.eq.f32.partialorder %v2370, %v2464
        %v2468 = vsel %vm2465, %v337, 24.0
        %v2469 = vsel %vm2466, %v338, 24.0
        %v2470 = vsel %vm2467, %v339, 24.0
        %v2471 = vsel %vm265, %v2468, inf
        %v2472 = vsel %vm265, %v2469, inf
        %v2473 = vsel %vm265, %v2470, inf
        %v2474 = vmin.f32 %v2471, %v2472
        %v2475 = vmin.f32 %v2474, %v2473
        %v2476 = vrot.slane %v2475, 4
        %v2477 = vmin.f32 %v2475, %v2476
        %v2478 = vrot.slane %v2477, 2
        %v2479 = vmin.f32 %v2477, %v2478
        %v2480 = vrot.slane %v2479, 1
        %v2481 = vmin.f32 %v2479, %v2480
        %vm2482 = vcmp.eq.f32.partialorder %v337, %v2481
        %vm2483 = vcmp.eq.f32.partialorder %v338, %v2481
        %vm2484 = vcmp.eq.f32.partialorder %v339, %v2481
        %v2485 = vsel %vm2482, -inf, %v2368
        %v2486 = vsel %vm2483, -inf, %v2369
        %v2487 = vsel %vm2484, -inf, %v2370
        %v2488 = vsel %vm2482, 1, 0
        %v2489 = vsel %vm2483, 1, 0
        %v2490 = vsel %vm2484, 1, 0
        %v2491 = vcvt.s32.f32 %v2488
        %v2492 = vcvt.s32.f32 %v2489
        %v2493 = vcvt.s32.f32 %v2490
        %2494 = vmatprep.subr.mxu0 0.0
        %2495 = vmatpush1.msra.mxu0 %v2491
        %2496 = vmatprep.subr.mxu0 0.0
        %2497 = vmatpush1.msra.mxu0 %v2492
        %2498 = vmatprep.subr.mxu0 0.0
        %2499 = vmatpush1.msra.mxu0 %v2493
        %2500 = vmatprep.subr.mxu0 0.0
        %2501 = vmatpush1.msra.mxu0 0.0
        %2502 = vmatprep.subr.mxu0 0.0
        %2503 = vmatpush1.msra.mxu0 0.0
        %2504 = vmatprep.subr.mxu0 0.0
        %2505 = vmatpush1.msra.mxu0 0.0
        %2506 = vmatprep.subr.mxu0 0.0
        %2507 = vmatpush1.msra.mxu0 0.0
        %2508 = vmatprep.subr.mxu0 0.0
        %2509 = vmatpush1.msra.mxu0 0.0
        %2510 = vmatprep.subr.mxu0 0.0
        %2511 = vmatpush1.msra.mxu0 0.0
        %2512 = vmatprep.subr.mxu0 0.0
        %2513 = vmatpush1.msra.mxu0 0.0
        %2514 = vmatprep.subr.mxu0 0.0
        %2515 = vmatpush1.msra.mxu0 0.0
        %2516 = vmatprep.subr.mxu0 0.0
        %2517 = vmatpush1.msra.mxu0 0.0
        %2518 = vmatprep.subr.mxu0 0.0
        %2519 = vmatpush1.msra.mxu0 0.0
        %2520 = vmatprep.subr.mxu0 0.0
        %2521 = vmatpush1.msra.mxu0 0.0
        %2522 = vmatprep.subr.mxu0 0.0
        %2523 = vmatpush1.msra.mxu0 0.0
        %2524 = vmatprep.subr.mxu0 0.0
        %2525 = vmatpush1.msra.mxu0 0.0
        %2526 = vmatprep.subr.mxu0 0.0
        %2527 = vmatpush1.msra.mxu0 0.0
        %2528 = vmatprep.subr.mxu0 0.0
        %2529 = vmatpush1.msra.mxu0 0.0
        %2530 = vmatprep.subr.mxu0 0.0
        %2531 = vmatpush1.msra.mxu0 0.0
        %2532 = vmatprep.subr.mxu0 0.0
        %2533 = vmatpush1.msra.mxu0 0.0
        %2534 = vmatprep.subr.mxu0 0.0
        %2535 = vmatpush1.msra.mxu0 0.0
        %2536 = vmatprep.subr.mxu0 0.0
        %2537 = vmatpush1.msra.mxu0 0.0
        %2538 = vmatprep.subr.mxu0 0.0
        %2539 = vmatpush1.msra.mxu0 0.0
        %2540 = vmatprep.subr.mxu0 0.0
        %2541 = vmatpush1.msra.mxu0 0.0
        %2542 = vmatprep.subr.mxu0 0.0
        %2543 = vmatpush1.msra.mxu0 0.0
        %2544 = vmatprep.subr.mxu0 0.0
        %2545 = vmatpush1.msra.mxu0 0.0
        %2546 = vmatprep.subr.mxu0 0.0
        %2547 = vmatpush1.msra.mxu0 0.0
        %2548 = vmatprep.subr.mxu0 0.0
        %2549 = vmatpush1.msra.mxu0 0.0
        %2550 = vmatprep.subr.mxu0 0.0
        %2551 = vmatpush1.msra.mxu0 0.0
        %2552 = vmatprep.subr.mxu0 0.0
        %2553 = vmatpush1.msra.mxu0 0.0
        %2554 = vmatprep.subr.mxu0 0.0
        %2555 = vmatpush1.msra.mxu0 0.0
        %2556 = vmatprep.subr.mxu0 0.0
        %2557 = vmatpush1.msra.mxu0 0.0
        %2558 = vmatprep.mubr.f32.mxu0 0.0
        %2559 = vmatmul.mubr.f32.gmra.mrb[0].mxu0 %v381
        %v2560 = vpop.f32.mrb[0].mxu0
        %v2561 = vadd.f32 0.0, %v2560
        %v2562 = vpop.f32.mrb[0].mxu0
        %2563 = vdwg.mxu0
        %v2564 = vsub.f32 %v2561, %v248
        %v2565 = vand.u32 2147483647, %v2564
        %vm2566 = vcmp.le.f32.partialorder %v2565, 0.25
        %v2567 = vsel %vm2566, %v2561, %v248
        %2568 = vst.msk [vmem:[#allocation2 + $0x12] sm:$0x1] %vm457, %v2567
        %2569 = vst.msk [vmem:[%s459 + $0x11] sm:$0x2] %vm460, %v2567
        %2570 = vst.msk [vmem:[%s462 + $0x10] sm:$0x4] %vm463, %v2567
        %v2571 = vsel %vm265, %v2485, -inf
        %v2572 = vsel %vm265, %v2486, -inf
        %v2573 = vsel %vm265, %v2487, -inf
        %v2574 = vmax.f32 %v2571, %v2572
        %v2575 = vmax.f32 %v2574, %v2573
        %v2576 = vrot.slane %v2575, 4
        %v2577 = vmax.f32 %v2575, %v2576
        %v2578 = vrot.slane %v2577, 2
        %v2579 = vmax.f32 %v2577, %v2578
        %v2580 = vrot.slane %v2579, 1
        %v2581 = vmax.f32 %v2579, %v2580
        %vm2582 = vcmp.eq.f32.partialorder %v2485, %v2581
        %vm2583 = vcmp.eq.f32.partialorder %v2486, %v2581
        %vm2584 = vcmp.eq.f32.partialorder %v2487, %v2581
        %v2585 = vsel %vm2582, %v337, 24.0
        %v2586 = vsel %vm2583, %v338, 24.0
        %v2587 = vsel %vm2584, %v339, 24.0
        %v2588 = vsel %vm265, %v2585, inf
        %v2589 = vsel %vm265, %v2586, inf
        %v2590 = vsel %vm265, %v2587, inf
        %v2591 = vmin.f32 %v2588, %v2589
        %v2592 = vmin.f32 %v2591, %v2590
        %v2593 = vrot.slane %v2592, 4
        %v2594 = vmin.f32 %v2592, %v2593
        %v2595 = vrot.slane %v2594, 2
        %v2596 = vmin.f32 %v2594, %v2595
        %v2597 = vrot.slane %v2596, 1
        %v2598 = vmin.f32 %v2596, %v2597
        %vm2599 = vcmp.eq.f32.partialorder %v337, %v2598
        %vm2600 = vcmp.eq.f32.partialorder %v338, %v2598
        %vm2601 = vcmp.eq.f32.partialorder %v339, %v2598
        %v2602 = vsel %vm2599, 1, 0
        %v2603 = vsel %vm2600, 1, 0
        %v2604 = vsel %vm2601, 1, 0
        %v2605 = vcvt.s32.f32 %v2602
        %v2606 = vcvt.s32.f32 %v2603
        %v2607 = vcvt.s32.f32 %v2604
        %2608 = vmatprep.subr.mxu0 0.0
        %2609 = vmatpush1.msra.mxu0 %v2605
        %2610 = vmatprep.subr.mxu0 0.0
        %2611 = vmatpush1.msra.mxu0 %v2606
        %2612 = vmatprep.subr.mxu0 0.0
        %2613 = vmatpush1.msra.mxu0 %v2607
        %2614 = vmatprep.subr.mxu0 0.0
        %2615 = vmatpush1.msra.mxu0 0.0
        %2616 = vmatprep.subr.mxu0 0.0
        %2617 = vmatpush1.msra.mxu0 0.0
        %2618 = vmatprep.subr.mxu0 0.0
        %2619 = vmatpush1.msra.mxu0 0.0
        %2620 = vmatprep.subr.mxu0 0.0
        %2621 = vmatpush1.msra.mxu0 0.0
        %2622 = vmatprep.subr.mxu0 0.0
        %2623 = vmatpush1.msra.mxu0 0.0
        %2624 = vmatprep.subr.mxu0 0.0
        %2625 = vmatpush1.msra.mxu0 0.0
        %2626 = vmatprep.subr.mxu0 0.0
        %2627 = vmatpush1.msra.mxu0 0.0
        %2628 = vmatprep.subr.mxu0 0.0
        %2629 = vmatpush1.msra.mxu0 0.0
        %2630 = vmatprep.subr.mxu0 0.0
        %2631 = vmatpush1.msra.mxu0 0.0
        %2632 = vmatprep.subr.mxu0 0.0
        %2633 = vmatpush1.msra.mxu0 0.0
        %2634 = vmatprep.subr.mxu0 0.0
        %2635 = vmatpush1.msra.mxu0 0.0
        %2636 = vmatprep.subr.mxu0 0.0
        %2637 = vmatpush1.msra.mxu0 0.0
        %2638 = vmatprep.subr.mxu0 0.0
        %2639 = vmatpush1.msra.mxu0 0.0
        %2640 = vmatprep.subr.mxu0 0.0
        %2641 = vmatpush1.msra.mxu0 0.0
        %2642 = vmatprep.subr.mxu0 0.0
        %2643 = vmatpush1.msra.mxu0 0.0
        %2644 = vmatprep.subr.mxu0 0.0
        %2645 = vmatpush1.msra.mxu0 0.0
        %2646 = vmatprep.subr.mxu0 0.0
        %2647 = vmatpush1.msra.mxu0 0.0
        %2648 = vmatprep.subr.mxu0 0.0
        %2649 = vmatpush1.msra.mxu0 0.0
        %2650 = vmatprep.subr.mxu0 0.0
        %2651 = vmatpush1.msra.mxu0 0.0
        %2652 = vmatprep.subr.mxu0 0.0
        %2653 = vmatpush1.msra.mxu0 0.0
        %2654 = vmatprep.subr.mxu0 0.0
        %2655 = vmatpush1.msra.mxu0 0.0
        %2656 = vmatprep.subr.mxu0 0.0
        %2657 = vmatpush1.msra.mxu0 0.0
        %2658 = vmatprep.subr.mxu0 0.0
        %2659 = vmatpush1.msra.mxu0 0.0
        %2660 = vmatprep.subr.mxu0 0.0
        %2661 = vmatpush1.msra.mxu0 0.0
        %2662 = vmatprep.subr.mxu0 0.0
        %2663 = vmatpush1.msra.mxu0 0.0
        %2664 = vmatprep.subr.mxu0 0.0
        %2665 = vmatpush1.msra.mxu0 0.0
        %2666 = vmatprep.subr.mxu0 0.0
        %2667 = vmatpush1.msra.mxu0 0.0
        %2668 = vmatprep.subr.mxu0 0.0
        %2669 = vmatpush1.msra.mxu0 0.0
        %2670 = vmatprep.subr.mxu0 0.0
        %2671 = vmatpush1.msra.mxu0 0.0
        %2672 = vmatprep.mubr.f32.mxu0 0.0
        %2673 = vmatmul.mubr.f32.gmra.mrb[0].mxu0 %v381
        %v2674 = vpop.f32.mrb[0].mxu0
        %v2675 = vadd.f32 0.0, %v2674
        %v2676 = vpop.f32.mrb[0].mxu0
        %2677 = vdwg.mxu0
        %v2678 = vsub.f32 %v2675, %v248
        %v2679 = vand.u32 2147483647, %v2678
        %vm2680 = vcmp.le.f32.partialorder %v2679, 0.25
        %v2681 = vsel %vm2680, %v2675, %v248
        %2682 = vst.msk [vmem:[#allocation2 + $0x13] sm:$0x1] %vm457, %v2681
        %2683 = vst.msk [vmem:[%s459 + $0x12] sm:$0x2] %vm460, %v2681
        %2684 = vst.msk [vmem:[%s462 + $0x11] sm:$0x4] %vm463, %v2681
        %v2685 = vld [vmem:[%s1] sm:$0xff]
        %v2686 = vld [vmem:[%s1 + $0x8] sm:$0xff]
        %v2687 = vld [vmem:[%s1 + $0x10] sm:$0xff]
        %v2688 = vld [vmem:[%s2] sm:$0x1]
        %v2689 = vld [vmem:[#allocation2] sm:$0xff]
        %v2690 = vld [vmem:[#allocation2 + $0x8] sm:$0xff]
        %v2691 = vld [vmem:[#allocation2 + $0x10] sm:$0xf]
        %v2693 = vlaneseq
        %v2694 = vshrl.u32 %v2693, 7
        %v2695 = vsub.s32 0, %v2694
        %v2696 = vrot.slane %v2688, %v2695
        %v2699 = vsel %vm265, %v2689, 0
        %v2702 = vsel %vm265, %v2690, 0
        %v2705 = vsel %vm265, %v2691, 0
        %2707 = vmatprep.subr.mxu0 0.0
        %2708 = vmatpush1.msra.mxu0 %v2685
        %2709 = vmatprep.subr.mxu0 0.0
        %2710 = vmatpush1.msra.mxu0 %v2686
        %2711 = vmatprep.subr.mxu0 0.0
        %2712 = vmatpush1.msra.mxu0 %v2687
        %2713 = vmatprep.subr.mxu0 0.0
        %2714 = vmatpush1.msra.mxu0 0.0
        %2715 = vmatprep.subr.mxu0 0.0
        %2716 = vmatpush1.msra.mxu0 0.0
        %2717 = vmatprep.subr.mxu0 0.0
        %2718 = vmatpush1.msra.mxu0 0.0
        %2719 = vmatprep.subr.mxu0 0.0
        %2720 = vmatpush1.msra.mxu0 0.0
        %2721 = vmatprep.subr.mxu0 0.0
        %2722 = vmatpush1.msra.mxu0 0.0
        %2723 = vmatprep.subr.mxu0 0.0
        %2724 = vmatpush1.msra.mxu0 0.0
        %2725 = vmatprep.subr.mxu0 0.0
        %2726 = vmatpush1.msra.mxu0 0.0
        %2727 = vmatprep.subr.mxu0 0.0
        %2728 = vmatpush1.msra.mxu0 0.0
        %2729 = vmatprep.subr.mxu0 0.0
        %2730 = vmatpush1.msra.mxu0 0.0
        %2731 = vmatprep.subr.mxu0 0.0
        %2732 = vmatpush1.msra.mxu0 0.0
        %2733 = vmatprep.subr.mxu0 0.0
        %2734 = vmatpush1.msra.mxu0 0.0
        %2735 = vmatprep.subr.mxu0 0.0
        %2736 = vmatpush1.msra.mxu0 0.0
        %2737 = vmatprep.subr.mxu0 0.0
        %2738 = vmatpush1.msra.mxu0 0.0
        %2739 = vmatprep.subr.mxu0 0.0
        %2740 = vmatpush1.msra.mxu0 0.0
        %2741 = vmatprep.subr.mxu0 0.0
        %2742 = vmatpush1.msra.mxu0 0.0
        %2743 = vmatprep.subr.mxu0 0.0
        %2744 = vmatpush1.msra.mxu0 0.0
        %2745 = vmatprep.subr.mxu0 0.0
        %2746 = vmatpush1.msra.mxu0 0.0
        %2747 = vmatprep.subr.mxu0 0.0
        %2748 = vmatpush1.msra.mxu0 0.0
        %2749 = vmatprep.subr.mxu0 0.0
        %2750 = vmatpush1.msra.mxu0 0.0
        %2751 = vmatprep.subr.mxu0 0.0
        %2752 = vmatpush1.msra.mxu0 0.0
        %2753 = vmatprep.subr.mxu0 0.0
        %2754 = vmatpush1.msra.mxu0 0.0
        %2755 = vmatprep.subr.mxu0 0.0
        %2756 = vmatpush1.msra.mxu0 0.0
        %2757 = vmatprep.subr.mxu0 0.0
        %2758 = vmatpush1.msra.mxu0 0.0
        %2759 = vmatprep.subr.mxu0 0.0
        %2760 = vmatpush1.msra.mxu0 0.0
        %2761 = vmatprep.subr.mxu0 0.0
        %2762 = vmatpush1.msra.mxu0 0.0
        %2763 = vmatprep.subr.mxu0 0.0
        %2764 = vmatpush1.msra.mxu0 0.0
        %2765 = vmatprep.subr.mxu0 0.0
        %2766 = vmatpush1.msra.mxu0 0.0
        %2767 = vmatprep.subr.mxu0 0.0
        %2768 = vmatpush1.msra.mxu0 0.0
        %2769 = vmatprep.subr.mxu0 0.0
        %2770 = vmatpush1.msra.mxu0 0.0
        %2771 = vmatprep.mubr.f32.mxu0 0.0
        %2772 = vmatmul.mubr.f32.gmra.mrb[0].mxu0 %v2699
        %v2773 = vpop.f32.mrb[0].mxu0
        %v2774 = vadd.f32 %v2696, %v2773
        %v2775 = vpop.f32.mrb[0].mxu0
        %2776 = vmatprep.mubr.f32.mxu0 0.0
        %2777 = vmatmul.mubr.f32.gmra.mrb[0].mxu0 %v2702
        %v2778 = vpop.f32.mrb[0].mxu0
        %v2779 = vadd.f32 %v2696, %v2778
        %v2780 = vpop.f32.mrb[0].mxu0
        %2781 = vmatprep.mubr.f32.mxu0 0.0
        %2782 = vmatmul.mubr.f32.gmra.mrb[0].mxu0 %v2705
        %v2783 = vpop.f32.mrb[0].mxu0
        %v2784 = vadd.f32 %v2696, %v2783
        %v2785 = vpop.f32.mrb[0].mxu0
        %2786 = vdwg.mxu0
        %v2787 = vmax.f32 %v2774, 0.0
        %v2788 = vmax.f32 %v2779, 0.0
        %v2789 = vmax.f32 %v2784, 0.0
        %v2790 = vld [vmem:[%s459] sm:$0xff]
        %v2791 = vld [vmem:[%s459 + $0x8] sm:$0xff]
        %v2792 = vld [vmem:[%s459 + $0x10] sm:$0xf]
        %v2794 = vsel %vm265, %v2790, 0
        %v2797 = vsel %vm265, %v2791, 0
        %v2800 = vsel %vm265, %v2792, 0
        %2802 = vmatprep.subr.mxu0 0.0
        %2803 = vmatpush1.msra.mxu0 %v2685
        %2804 = vmatprep.subr.mxu0 0.0
        %2805 = vmatpush1.msra.mxu0 %v2686
        %2806 = vmatprep.subr.mxu0 0.0
        %2807 = vmatpush1.msra.mxu0 %v2687
        %2808 = vmatprep.subr.mxu0 0.0
        %2809 = vmatpush1.msra.mxu0 0.0
        %2810 = vmatprep.subr.mxu0 0.0
        %2811 = vmatpush1.msra.mxu0 0.0
        %2812 = vmatprep.subr.mxu0 0.0
        %2813 = vmatpush1.msra.mxu0 0.0
        %2814 = vmatprep.subr.mxu0 0.0
        %2815 = vmatpush1.msra.mxu0 0.0
        %2816 = vmatprep.subr.mxu0 0.0
        %2817 = vmatpush1.msra.mxu0 0.0
        %2818 = vmatprep.subr.mxu0 0.0
        %2819 = vmatpush1.msra.mxu0 0.0
        %2820 = vmatprep.subr.mxu0 0.0
        %2821 = vmatpush1.msra.mxu0 0.0
        %2822 = vmatprep.subr.mxu0 0.0
        %2823 = vmatpush1.msra.mxu0 0.0
        %2824 = vmatprep.subr.mxu0 0.0
        %2825 = vmatpush1.msra.mxu0 0.0
        %2826 = vmatprep.subr.mxu0 0.0
        %2827 = vmatpush1.msra.mxu0 0.0
        %2828 = vmatprep.subr.mxu0 0.0
        %2829 = vmatpush1.msra.mxu0 0.0
        %2830 = vmatprep.subr.mxu0 0.0
        %2831 = vmatpush1.msra.mxu0 0.0
        %2832 = vmatprep.subr.mxu0 0.0
        %2833 = vmatpush1.msra.mxu0 0.0
        %2834 = vmatprep.subr.mxu0 0.0
        %2835 = vmatpush1.msra.mxu0 0.0
        %2836 = vmatprep.subr.mxu0 0.0
        %2837 = vmatpush1.msra.mxu0 0.0
        %2838 = vmatprep.subr.mxu0 0.0
        %2839 = vmatpush1.msra.mxu0 0.0
        %2840 = vmatprep.subr.mxu0 0.0
        %2841 = vmatpush1.msra.mxu0 0.0
        %2842 = vmatprep.subr.mxu0 0.0
        %2843 = vmatpush1.msra.mxu0 0.0
        %2844 = vmatprep.subr.mxu0 0.0
        %2845 = vmatpush1.msra.mxu0 0.0
        %2846 = vmatprep.subr.mxu0 0.0
        %2847 = vmatpush1.msra.mxu0 0.0
        %2848 = vmatprep.subr.mxu0 0.0
        %2849 = vmatpush1.msra.mxu0 0.0
        %2850 = vmatprep.subr.mxu0 0.0
        %2851 = vmatpush1.msra.mxu0 0.0
        %2852 = vmatprep.subr.mxu0 0.0
        %2853 = vmatpush1.msra.mxu0 0.0
        %2854 = vmatprep.subr.mxu0 0.0
        %2855 = vmatpush1.msra.mxu0 0.0
        %2856 = vmatprep.subr.mxu0 0.0
        %2857 = vmatpush1.msra.mxu0 0.0
        %2858 = vmatprep.subr.mxu0 0.0
        %2859 = vmatpush1.msra.mxu0 0.0
        %2860 = vmatprep.subr.mxu0 0.0
        %2861 = vmatpush1.msra.mxu0 0.0
        %2862 = vmatprep.subr.mxu0 0.0
        %2863 = vmatpush1.msra.mxu0 0.0
        %2864 = vmatprep.subr.mxu0 0.0
        %2865 = vmatpush1.msra.mxu0 0.0
        %2866 = vmatprep.mubr.f32.mxu0 0.0
        %2867 = vmatmul.mubr.f32.gmra.mrb[0].mxu0 %v2794
        %v2868 = vpop.f32.mrb[0].mxu0
        %v2869 = vadd.f32 %v2696, %v2868
        %v2870 = vpop.f32.mrb[0].mxu0
        %2871 = vmatprep.mubr.f32.mxu0 0.0
        %2872 = vmatmul.mubr.f32.gmra.mrb[0].mxu0 %v2797
        %v2873 = vpop.f32.mrb[0].mxu0
        %v2874 = vadd.f32 %v2696, %v2873
        %v2875 = vpop.f32.mrb[0].mxu0
        %2876 = vmatprep.mubr.f32.mxu0 0.0
        %2877 = vmatmul.mubr.f32.gmra.mrb[0].mxu0 %v2800
        %v2878 = vpop.f32.mrb[0].mxu0
        %v2879 = vadd.f32 %v2696, %v2878
        %v2880 = vpop.f32.mrb[0].mxu0
        %2881 = vdwg.mxu0
        %v2882 = vmax.f32 %v2869, 0.0
        %v2883 = vmax.f32 %v2874, 0.0
        %v2884 = vmax.f32 %v2879, 0.0
        %v2885 = vmax.f32 %v2787, %v2882
        %v2886 = vmax.f32 %v2788, %v2883
        %v2887 = vmax.f32 %v2789, %v2884
        %v2888 = vld [vmem:[%s462] sm:$0xff]
        %v2889 = vld [vmem:[%s462 + $0x8] sm:$0xff]
        %v2890 = vld [vmem:[%s462 + $0x10] sm:$0xf]
        %v2892 = vsel %vm265, %v2888, 0
        %v2895 = vsel %vm265, %v2889, 0
        %v2898 = vsel %vm265, %v2890, 0
        %2900 = vmatprep.subr.mxu0 0.0
        %2901 = vmatpush1.msra.mxu0 %v2685
        %2902 = vmatprep.subr.mxu0 0.0
        %2903 = vmatpush1.msra.mxu0 %v2686
        %2904 = vmatprep.subr.mxu0 0.0
        %2905 = vmatpush1.msra.mxu0 %v2687
        %2906 = vmatprep.subr.mxu0 0.0
        %2907 = vmatpush1.msra.mxu0 0.0
        %2908 = vmatprep.subr.mxu0 0.0
        %2909 = vmatpush1.msra.mxu0 0.0
        %2910 = vmatprep.subr.mxu0 0.0
        %2911 = vmatpush1.msra.mxu0 0.0
        %2912 = vmatprep.subr.mxu0 0.0
        %2913 = vmatpush1.msra.mxu0 0.0
        %2914 = vmatprep.subr.mxu0 0.0
        %2915 = vmatpush1.msra.mxu0 0.0
        %2916 = vmatprep.subr.mxu0 0.0
        %2917 = vmatpush1.msra.mxu0 0.0
        %2918 = vmatprep.subr.mxu0 0.0
        %2919 = vmatpush1.msra.mxu0 0.0
        %2920 = vmatprep.subr.mxu0 0.0
        %2921 = vmatpush1.msra.mxu0 0.0
        %2922 = vmatprep.subr.mxu0 0.0
        %2923 = vmatpush1.msra.mxu0 0.0
        %2924 = vmatprep.subr.mxu0 0.0
        %2925 = vmatpush1.msra.mxu0 0.0
        %2926 = vmatprep.subr.mxu0 0.0
        %2927 = vmatpush1.msra.mxu0 0.0
        %2928 = vmatprep.subr.mxu0 0.0
        %2929 = vmatpush1.msra.mxu0 0.0
        %2930 = vmatprep.subr.mxu0 0.0
        %2931 = vmatpush1.msra.mxu0 0.0
        %2932 = vmatprep.subr.mxu0 0.0
        %2933 = vmatpush1.msra.mxu0 0.0
        %2934 = vmatprep.subr.mxu0 0.0
        %2935 = vmatpush1.msra.mxu0 0.0
        %2936 = vmatprep.subr.mxu0 0.0
        %2937 = vmatpush1.msra.mxu0 0.0
        %2938 = vmatprep.subr.mxu0 0.0
        %2939 = vmatpush1.msra.mxu0 0.0
        %2940 = vmatprep.subr.mxu0 0.0
        %2941 = vmatpush1.msra.mxu0 0.0
        %2942 = vmatprep.subr.mxu0 0.0
        %2943 = vmatpush1.msra.mxu0 0.0
        %2944 = vmatprep.subr.mxu0 0.0
        %2945 = vmatpush1.msra.mxu0 0.0
        %2946 = vmatprep.subr.mxu0 0.0
        %2947 = vmatpush1.msra.mxu0 0.0
        %2948 = vmatprep.subr.mxu0 0.0
        %2949 = vmatpush1.msra.mxu0 0.0
        %2950 = vmatprep.subr.mxu0 0.0
        %2951 = vmatpush1.msra.mxu0 0.0
        %2952 = vmatprep.subr.mxu0 0.0
        %2953 = vmatpush1.msra.mxu0 0.0
        %2954 = vmatprep.subr.mxu0 0.0
        %2955 = vmatpush1.msra.mxu0 0.0
        %2956 = vmatprep.subr.mxu0 0.0
        %2957 = vmatpush1.msra.mxu0 0.0
        %2958 = vmatprep.subr.mxu0 0.0
        %2959 = vmatpush1.msra.mxu0 0.0
        %2960 = vmatprep.subr.mxu0 0.0
        %2961 = vmatpush1.msra.mxu0 0.0
        %2962 = vmatprep.subr.mxu0 0.0
        %2963 = vmatpush1.msra.mxu0 0.0
        %2964 = vmatprep.mubr.f32.mxu0 0.0
        %2965 = vmatmul.mubr.f32.gmra.mrb[0].mxu0 %v2892
        %v2966 = vpop.f32.mrb[0].mxu0
        %v2967 = vadd.f32 %v2696, %v2966
        %v2968 = vpop.f32.mrb[0].mxu0
        %2969 = vmatprep.mubr.f32.mxu0 0.0
        %2970 = vmatmul.mubr.f32.gmra.mrb[0].mxu0 %v2895
        %v2971 = vpop.f32.mrb[0].mxu0
        %v2972 = vadd.f32 %v2696, %v2971
        %v2973 = vpop.f32.mrb[0].mxu0
        %2974 = vmatprep.mubr.f32.mxu0 0.0
        %2975 = vmatmul.mubr.f32.gmra.mrb[0].mxu0 %v2898
        %v2976 = vpop.f32.mrb[0].mxu0
        %v2977 = vadd.f32 %v2696, %v2976
        %v2978 = vpop.f32.mrb[0].mxu0
        %2979 = vdwg.mxu0
        %v2980 = vmax.f32 %v2967, 0.0
        %v2981 = vmax.f32 %v2972, 0.0
        %v2982 = vmax.f32 %v2977, 0.0
        %v2983 = vmax.f32 %v2885, %v2980
        %v2984 = vmax.f32 %v2886, %v2981
        %v2985 = vmax.f32 %v2887, %v2982
        %v2986 = vld [vmem:[#allocation3] sm:$0xff]
        %v2987 = vld [vmem:[#allocation3 + $0x8] sm:$0xff]
        %v2988 = vld [vmem:[#allocation3 + $0x10] sm:$0xff]
        %v2989 = vld [vmem:[#allocation3 + $0x18] sm:$0xff]
        %v2990 = vld [vmem:[#allocation3 + $0x20] sm:$0xff]
        %v2991 = vld [vmem:[#allocation3 + $0x28] sm:$0xff]
        %v2992 = vld [vmem:[#allocation3 + $0x30] sm:$0xff]
        %v2993 = vld [vmem:[#allocation3 + $0x38] sm:$0xff]
        %v2994 = vld [vmem:[#allocation3 + $0x40] sm:$0xff]
        %v2995 = vld [vmem:[#allocation3 + $0x48] sm:$0xff]
        %v2996 = vld [vmem:[#allocation3 + $0x50] sm:$0xff]
        %v2997 = vld [vmem:[#allocation3 + $0x58] sm:$0xff]
        %v2998 = vld [vmem:[#allocation3 + $0x60] sm:$0xff]
        %v2999 = vld [vmem:[#allocation3 + $0x68] sm:$0xff]
        %v3000 = vld [vmem:[#allocation3 + $0x70] sm:$0xff]
        %v3001 = vld [vmem:[#allocation3 + $0x78] sm:$0xff]
        %v3002 = vld [vmem:[#allocation3 + $0x80] sm:$0xff]
        %v3003 = vld [vmem:[#allocation3 + $0x88] sm:$0xff]
        %v3004 = vld [vmem:[#allocation3 + $0x90] sm:$0xff]
        %v3005 = vld [vmem:[#allocation3 + $0x98] sm:$0xff]
        %v3006 = vld [vmem:[#allocation3 + $0xa0] sm:$0xff]
        %v3007 = vld [vmem:[#allocation3 + $0xa8] sm:$0xff]
        %v3008 = vld [vmem:[#allocation3 + $0xb0] sm:$0xff]
        %v3009 = vld [vmem:[#allocation3 + $0xb8] sm:$0xff]
        %v3010 = vld [vmem:[#allocation3 + $0xc0] sm:$0xff]
        %v3011 = vld [vmem:[#allocation3 + $0xc8] sm:$0xff]
        %v3012 = vld [vmem:[#allocation3 + $0xd0] sm:$0xff]
        %v3013 = vld [vmem:[#allocation3 + $0xd8] sm:$0xff]
        %v3014 = vld [vmem:[#allocation3 + $0xe0] sm:$0xff]
        %v3015 = vld [vmem:[#allocation3 + $0xe8] sm:$0xff]
        %v3016 = vld [vmem:[#allocation3 + $0xf0] sm:$0xff]
        %v3017 = vld [vmem:[#allocation3 + $0xf8] sm:$0xff]
        %v3018 = vld [vmem:[#allocation3 + $0x100] sm:$0xff]
        %v3019 = vld [vmem:[#allocation3 + $0x108] sm:$0xff]
        %v3020 = vld [vmem:[#allocation3 + $0x110] sm:$0xff]
        %v3021 = vld [vmem:[#allocation3 + $0x118] sm:$0xff]
        %v3022 = vld [vmem:[#allocation3 + $0x120] sm:$0xff]
        %v3023 = vld [vmem:[#allocation3 + $0x128] sm:$0xff]
        %v3024 = vld [vmem:[#allocation3 + $0x130] sm:$0xff]
        %v3025 = vld [vmem:[#allocation3 + $0x138] sm:$0xff]
        %v3026 = vld [vmem:[#allocation3 + $0x140] sm:$0xff]
        %v3027 = vld [vmem:[#allocation3 + $0x148] sm:$0xff]
        %v3028 = vld [vmem:[#allocation3 + $0x150] sm:$0xff]
        %v3029 = vld [vmem:[#allocation3 + $0x158] sm:$0xff]
        %v3030 = vld [vmem:[#allocation3 + $0x160] sm:$0xff]
        %v3031 = vld [vmem:[#allocation3 + $0x168] sm:$0xff]
        %v3032 = vld [vmem:[#allocation3 + $0x170] sm:$0xff]
        %v3033 = vld [vmem:[#allocation3 + $0x178] sm:$0xff]
        %v3034 = vld [vmem:[#allocation3 + $0x180] sm:$0xff]
        %v3035 = vld [vmem:[#allocation3 + $0x188] sm:$0xff]
        %v3036 = vld [vmem:[#allocation3 + $0x190] sm:$0xff]
        %v3037 = vld [vmem:[#allocation3 + $0x198] sm:$0xff]
        %v3038 = vld [vmem:[#allocation3 + $0x1a0] sm:$0xff]
        %v3039 = vld [vmem:[#allocation3 + $0x1a8] sm:$0xff]
        %v3040 = vld [vmem:[#allocation3 + $0x1b0] sm:$0xff]
        %v3041 = vld [vmem:[#allocation3 + $0x1b8] sm:$0xff]
        %v3042 = vld [vmem:[#allocation3 + $0x1c0] sm:$0xff]
        %v3043 = vld [vmem:[#allocation3 + $0x1c8] sm:$0xff]
        %v3044 = vld [vmem:[#allocation3 + $0x1d0] sm:$0xff]
        %v3045 = vld [vmem:[#allocation3 + $0x1d8] sm:$0xff]
        %v3046 = vld [vmem:[#allocation3 + $0x1e0] sm:$0xff]
        %v3047 = vld [vmem:[#allocation3 + $0x1e8] sm:$0xff]
        %v3048 = vld [vmem:[#allocation3 + $0x1f0] sm:$0xff]
        %v3049 = vld [vmem:[#allocation3 + $0x1f8] sm:$0xff]
        %vm3050 = vcmask 523264
        %v3052 = vsel %vm3050, %v2983, 0
        %v3055 = vsel %vm3050, %v2984, 0
        %v3058 = vsel %vm3050, %v2985, 0
        %3060 = vmatprep.subr.mxu0 %v2987
        %3061 = vmatpush1.msra.mxu0 %v2986
        %3062 = vmatprep.subr.mxu0 %v2995
        %3063 = vmatpush1.msra.mxu0 %v2994
        %3064 = vmatprep.subr.mxu0 %v3003
        %3065 = vmatpush1.msra.mxu0 %v3002
        %3066 = vmatprep.subr.mxu0 %v3011
        %3067 = vmatpush1.msra.mxu0 %v3010
        %3068 = vmatprep.subr.mxu0 %v3019
        %3069 = vmatpush1.msra.mxu0 %v3018
        %3070 = vmatprep.subr.mxu0 %v3027
        %3071 = vmatpush1.msra.mxu0 %v3026
        %3072 = vmatprep.subr.mxu0 %v3035
        %3073 = vmatpush1.msra.mxu0 %v3034
        %3074 = vmatprep.subr.mxu0 %v3043
        %3075 = vmatpush1.msra.mxu0 %v3042
        %3076 = vmatprep.subr.mxu0 0.0
        %3077 = vmatpush1.msra.mxu0 0.0
        %3078 = vmatprep.subr.mxu0 0.0
        %3079 = vmatpush1.msra.mxu0 0.0
        %3080 = vmatprep.subr.mxu0 0.0
        %3081 = vmatpush1.msra.mxu0 0.0
        %3082 = vmatprep.subr.mxu0 0.0
        %3083 = vmatpush1.msra.mxu0 0.0
        %3084 = vmatprep.subr.mxu0 0.0
        %3085 = vmatpush1.msra.mxu0 0.0
        %3086 = vmatprep.subr.mxu0 0.0
        %3087 = vmatpush1.msra.mxu0 0.0
        %3088 = vmatprep.subr.mxu0 0.0
        %3089 = vmatpush1.msra.mxu0 0.0
        %3090 = vmatprep.subr.mxu0 0.0
        %3091 = vmatpush1.msra.mxu0 0.0
        %3092 = vmatprep.subr.mxu0 0.0
        %3093 = vmatpush1.msra.mxu0 0.0
        %3094 = vmatprep.subr.mxu0 0.0
        %3095 = vmatpush1.msra.mxu0 0.0
        %3096 = vmatprep.subr.mxu0 0.0
        %3097 = vmatpush1.msra.mxu0 0.0
        %3098 = vmatprep.subr.mxu0 0.0
        %3099 = vmatpush1.msra.mxu0 0.0
        %3100 = vmatprep.subr.mxu0 0.0
        %3101 = vmatpush1.msra.mxu0 0.0
        %3102 = vmatprep.subr.mxu0 0.0
        %3103 = vmatpush1.msra.mxu0 0.0
        %3104 = vmatprep.subr.mxu0 0.0
        %3105 = vmatpush1.msra.mxu0 0.0
        %3106 = vmatprep.subr.mxu0 0.0
        %3107 = vmatpush1.msra.mxu0 0.0
        %3108 = vmatprep.subr.mxu0 0.0
        %3109 = vmatpush1.msra.mxu0 0.0
        %3110 = vmatprep.subr.mxu0 0.0
        %3111 = vmatpush1.msra.mxu0 0.0
        %3112 = vmatprep.subr.mxu0 0.0
        %3113 = vmatpush1.msra.mxu0 0.0
        %3114 = vmatprep.subr.mxu0 0.0
        %3115 = vmatpush1.msra.mxu0 0.0
        %3116 = vmatprep.subr.mxu0 0.0
        %3117 = vmatpush1.msra.mxu0 0.0
        %3118 = vmatprep.subr.mxu0 0.0
        %3119 = vmatpush1.msra.mxu0 0.0
        %3120 = vmatprep.subr.mxu0 0.0
        %3121 = vmatpush1.msra.mxu0 0.0
        %3122 = vmatprep.subr.mxu0 0.0
        %3123 = vmatpush1.msra.mxu0 0.0
        %3124 = vmatprep.mubr.f32.mxu0 0.0
        %3125 = vmatmul.mubr.f32.gmra.mrb[0].mxu0 %v3052
        %v3126 = vpop.f32.mrb[0].mxu0
        %v3127 = vadd.f32 0.0, %v3126
        %v3128 = vpop.f32.mrb[0].mxu0
        %v3129 = vadd.f32 0.0, %v3128
        %3130 = vmatprep.mubr.f32.mxu0 0.0
        %3131 = vmatmul.mubr.f32.gmra.mrb[0].mxu0 %v3055
        %v3132 = vpop.f32.mrb[0].mxu0
        %v3133 = vadd.f32 0.0, %v3132
        %v3134 = vpop.f32.mrb[0].mxu0
        %v3135 = vadd.f32 0.0, %v3134
        %3136 = vmatprep.mubr.f32.mxu0 0.0
        %3137 = vmatmul.mubr.f32.gmra.mrb[0].mxu0 %v3058
        %v3138 = vpop.f32.mrb[0].mxu0
        %v3139 = vadd.f32 0.0, %v3138
        %v3140 = vpop.f32.mrb[0].mxu0
        %v3141 = vadd.f32 0.0, %v3140
        %3142 = vdwg.mxu0
        %3143 = vmatprep.subr.mxu0 %v2989
        %3144 = vmatpush1.msra.mxu0 %v2988
        %3145 = vmatprep.subr.mxu0 %v2997
        %3146 = vmatpush1.msra.mxu0 %v2996
        %3147 = vmatprep.subr.mxu0 %v3005
        %3148 = vmatpush1.msra.mxu0 %v3004
        %3149 = vmatprep.subr.mxu0 %v3013
        %3150 = vmatpush1.msra.mxu0 %v3012
        %3151 = vmatprep.subr.mxu0 %v3021
        %3152 = vmatpush1.msra.mxu0 %v3020
        %3153 = vmatprep.subr.mxu0 %v3029
        %3154 = vmatpush1.msra.mxu0 %v3028
        %3155 = vmatprep.subr.mxu0 %v3037
        %3156 = vmatpush1.msra.mxu0 %v3036
        %3157 = vmatprep.subr.mxu0 %v3045
        %3158 = vmatpush1.msra.mxu0 %v3044
        %3159 = vmatprep.subr.mxu0 0.0
        %3160 = vmatpush1.msra.mxu0 0.0
        %3161 = vmatprep.subr.mxu0 0.0
        %3162 = vmatpush1.msra.mxu0 0.0
        %3163 = vmatprep.subr.mxu0 0.0
        %3164 = vmatpush1.msra.mxu0 0.0
        %3165 = vmatprep.subr.mxu0 0.0
        %3166 = vmatpush1.msra.mxu0 0.0
        %3167 = vmatprep.subr.mxu0 0.0
        %3168 = vmatpush1.msra.mxu0 0.0
        %3169 = vmatprep.subr.mxu0 0.0
        %3170 = vmatpush1.msra.mxu0 0.0
        %3171 = vmatprep.subr.mxu0 0.0
        %3172 = vmatpush1.msra.mxu0 0.0
        %3173 = vmatprep.subr.mxu0 0.0
        %3174 = vmatpush1.msra.mxu0 0.0
        %3175 = vmatprep.subr.mxu0 0.0
        %3176 = vmatpush1.msra.mxu0 0.0
        %3177 = vmatprep.subr.mxu0 0.0
        %3178 = vmatpush1.msra.mxu0 0.0
        %3179 = vmatprep.subr.mxu0 0.0
        %3180 = vmatpush1.msra.mxu0 0.0
        %3181 = vmatprep.subr.mxu0 0.0
        %3182 = vmatpush1.msra.mxu0 0.0
        %3183 = vmatprep.subr.mxu0 0.0
        %3184 = vmatpush1.msra.mxu0 0.0
        %3185 = vmatprep.subr.mxu0 0.0
        %3186 = vmatpush1.msra.mxu0 0.0
        %3187 = vmatprep.subr.mxu0 0.0
        %3188 = vmatpush1.msra.mxu0 0.0
        %3189 = vmatprep.subr.mxu0 0.0
        %3190 = vmatpush1.msra.mxu0 0.0
        %3191 = vmatprep.subr.mxu0 0.0
        %3192 = vmatpush1.msra.mxu0 0.0
        %3193 = vmatprep.subr.mxu0 0.0
        %3194 = vmatpush1.msra.mxu0 0.0
        %3195 = vmatprep.subr.mxu0 0.0
        %3196 = vmatpush1.msra.mxu0 0.0
        %3197 = vmatprep.subr.mxu0 0.0
        %3198 = vmatpush1.msra.mxu0 0.0
        %3199 = vmatprep.subr.mxu0 0.0
        %3200 = vmatpush1.msra.mxu0 0.0
        %3201 = vmatprep.subr.mxu0 0.0
        %3202 = vmatpush1.msra.mxu0 0.0
        %3203 = vmatprep.subr.mxu0 0.0
        %3204 = vmatpush1.msra.mxu0 0.0
        %3205 = vmatprep.subr.mxu0 0.0
        %3206 = vmatpush1.msra.mxu0 0.0
        %3207 = vmatprep.mubr.f32.mxu0 0.0
        %3208 = vmatmul.mubr.f32.gmra.mrb[0].mxu0 %v3052
        %v3209 = vpop.f32.mrb[0].mxu0
        %v3210 = vadd.f32 0.0, %v3209
        %v3211 = vpop.f32.mrb[0].mxu0
        %v3212 = vadd.f32 0.0, %v3211
        %3213 = vmatprep.mubr.f32.mxu0 0.0
        %3214 = vmatmul.mubr.f32.gmra.mrb[0].mxu0 %v3055
        %v3215 = vpop.f32.mrb[0].mxu0
        %v3216 = vadd.f32 0.0, %v3215
        %v3217 = vpop.f32.mrb[0].mxu0
        %v3218 = vadd.f32 0.0, %v3217
        %3219 = vmatprep.mubr.f32.mxu0 0.0
        %3220 = vmatmul.mubr.f32.gmra.mrb[0].mxu0 %v3058
        %v3221 = vpop.f32.mrb[0].mxu0
        %v3222 = vadd.f32 0.0, %v3221
        %v3223 = vpop.f32.mrb[0].mxu0
        %v3224 = vadd.f32 0.0, %v3223
        %3225 = vdwg.mxu0
        %3226 = vmatprep.subr.mxu0 %v2991
        %3227 = vmatpush1.msra.mxu0 %v2990
        %3228 = vmatprep.subr.mxu0 %v2999
        %3229 = vmatpush1.msra.mxu0 %v2998
        %3230 = vmatprep.subr.mxu0 %v3007
        %3231 = vmatpush1.msra.mxu0 %v3006
        %3232 = vmatprep.subr.mxu0 %v3015
        %3233 = vmatpush1.msra.mxu0 %v3014
        %3234 = vmatprep.subr.mxu0 %v3023
        %3235 = vmatpush1.msra.mxu0 %v3022
        %3236 = vmatprep.subr.mxu0 %v3031
        %3237 = vmatpush1.msra.mxu0 %v3030
        %3238 = vmatprep.subr.mxu0 %v3039
        %3239 = vmatpush1.msra.mxu0 %v3038
        %3240 = vmatprep.subr.mxu0 %v3047
        %3241 = vmatpush1.msra.mxu0 %v3046
        %3242 = vmatprep.subr.mxu0 0.0
        %3243 = vmatpush1.msra.mxu0 0.0
        %3244 = vmatprep.subr.mxu0 0.0
        %3245 = vmatpush1.msra.mxu0 0.0
        %3246 = vmatprep.subr.mxu0 0.0
        %3247 = vmatpush1.msra.mxu0 0.0
        %3248 = vmatprep.subr.mxu0 0.0
        %3249 = vmatpush1.msra.mxu0 0.0
        %3250 = vmatprep.subr.mxu0 0.0
        %3251 = vmatpush1.msra.mxu0 0.0
        %3252 = vmatprep.subr.mxu0 0.0
        %3253 = vmatpush1.msra.mxu0 0.0
        %3254 = vmatprep.subr.mxu0 0.0
        %3255 = vmatpush1.msra.mxu0 0.0
        %3256 = vmatprep.subr.mxu0 0.0
        %3257 = vmatpush1.msra.mxu0 0.0
        %3258 = vmatprep.subr.mxu0 0.0
        %3259 = vmatpush1.msra.mxu0 0.0
        %3260 = vmatprep.subr.mxu0 0.0
        %3261 = vmatpush1.msra.mxu0 0.0
        %3262 = vmatprep.subr.mxu0 0.0
        %3263 = vmatpush1.msra.mxu0 0.0
        %3264 = vmatprep.subr.mxu0 0.0
        %3265 = vmatpush1.msra.mxu0 0.0
        %3266 = vmatprep.subr.mxu0 0.0
        %3267 = vmatpush1.msra.mxu0 0.0
        %3268 = vmatprep.subr.mxu0 0.0
        %3269 = vmatpush1.msra.mxu0 0.0
        %3270 = vmatprep.subr.mxu0 0.0
        %3271 = vmatpush1.msra.mxu0 0.0
        %3272 = vmatprep.subr.mxu0 0.0
        %3273 = vmatpush1.msra.mxu0 0.0
        %3274 = vmatprep.subr.mxu0 0.0
        %3275 = vmatpush1.msra.mxu0 0.0
        %3276 = vmatprep.subr.mxu0 0.0
        %3277 = vmatpush1.msra.mxu0 0.0
        %3278 = vmatprep.subr.mxu0 0.0
        %3279 = vmatpush1.msra.mxu0 0.0
        %3280 = vmatprep.subr.mxu0 0.0
        %3281 = vmatpush1.msra.mxu0 0.0
        %3282 = vmatprep.subr.mxu0 0.0
        %3283 = vmatpush1.msra.mxu0 0.0
        %3284 = vmatprep.subr.mxu0 0.0
        %3285 = vmatpush1.msra.mxu0 0.0
        %3286 = vmatprep.subr.mxu0 0.0
        %3287 = vmatpush1.msra.mxu0 0.0
        %3288 = vmatprep.subr.mxu0 0.0
        %3289 = vmatpush1.msra.mxu0 0.0
        %3290 = vmatprep.mubr.f32.mxu0 0.0
        %3291 = vmatmul.mubr.f32.gmra.mrb[0].mxu0 %v3052
        %v3292 = vpop.f32.mrb[0].mxu0
        %v3293 = vadd.f32 0.0, %v3292
        %v3294 = vpop.f32.mrb[0].mxu0
        %v3295 = vadd.f32 0.0, %v3294
        %3296 = vmatprep.mubr.f32.mxu0 0.0
        %3297 = vmatmul.mubr.f32.gmra.mrb[0].mxu0 %v3055
        %v3298 = vpop.f32.mrb[0].mxu0
        %v3299 = vadd.f32 0.0, %v3298
        %v3300 = vpop.f32.mrb[0].mxu0
        %v3301 = vadd.f32 0.0, %v3300
        %3302 = vmatprep.mubr.f32.mxu0 0.0
        %3303 = vmatmul.mubr.f32.gmra.mrb[0].mxu0 %v3058
        %v3304 = vpop.f32.mrb[0].mxu0
        %v3305 = vadd.f32 0.0, %v3304
        %v3306 = vpop.f32.mrb[0].mxu0
        %v3307 = vadd.f32 0.0, %v3306
        %3308 = vdwg.mxu0
        %3309 = vmatprep.subr.mxu0 %v2993
        %3310 = vmatpush1.msra.mxu0 %v2992
        %3311 = vmatprep.subr.mxu0 %v3001
        %3312 = vmatpush1.msra.mxu0 %v3000
        %3313 = vmatprep.subr.mxu0 %v3009
        %3314 = vmatpush1.msra.mxu0 %v3008
        %3315 = vmatprep.subr.mxu0 %v3017
        %3316 = vmatpush1.msra.mxu0 %v3016
        %3317 = vmatprep.subr.mxu0 %v3025
        %3318 = vmatpush1.msra.mxu0 %v3024
        %3319 = vmatprep.subr.mxu0 %v3033
        %3320 = vmatpush1.msra.mxu0 %v3032
        %3321 = vmatprep.subr.mxu0 %v3041
        %3322 = vmatpush1.msra.mxu0 %v3040
        %3323 = vmatprep.subr.mxu0 %v3049
        %3324 = vmatpush1.msra.mxu0 %v3048
        %3325 = vmatprep.subr.mxu0 0.0
        %3326 = vmatpush1.msra.mxu0 0.0
        %3327 = vmatprep.subr.mxu0 0.0
        %3328 = vmatpush1.msra.mxu0 0.0
        %3329 = vmatprep.subr.mxu0 0.0
        %3330 = vmatpush1.msra.mxu0 0.0
        %3331 = vmatprep.subr.mxu0 0.0
        %3332 = vmatpush1.msra.mxu0 0.0
        %3333 = vmatprep.subr.mxu0 0.0
        %3334 = vmatpush1.msra.mxu0 0.0
        %3335 = vmatprep.subr.mxu0 0.0
        %3336 = vmatpush1.msra.mxu0 0.0
        %3337 = vmatprep.subr.mxu0 0.0
        %3338 = vmatpush1.msra.mxu0 0.0
        %3339 = vmatprep.subr.mxu0 0.0
        %3340 = vmatpush1.msra.mxu0 0.0
        %3341 = vmatprep.subr.mxu0 0.0
        %3342 = vmatpush1.msra.mxu0 0.0
        %3343 = vmatprep.subr.mxu0 0.0
        %3344 = vmatpush1.msra.mxu0 0.0
        %3345 = vmatprep.subr.mxu0 0.0
        %3346 = vmatpush1.msra.mxu0 0.0
        %3347 = vmatprep.subr.mxu0 0.0
        %3348 = vmatpush1.msra.mxu0 0.0
        %3349 = vmatprep.subr.mxu0 0.0
        %3350 = vmatpush1.msra.mxu0 0.0
        %3351 = vmatprep.subr.mxu0 0.0
        %3352 = vmatpush1.msra.mxu0 0.0
        %3353 = vmatprep.subr.mxu0 0.0
        %3354 = vmatpush1.msra.mxu0 0.0
        %3355 = vmatprep.subr.mxu0 0.0
        %3356 = vmatpush1.msra.mxu0 0.0
        %3357 = vmatprep.subr.mxu0 0.0
        %3358 = vmatpush1.msra.mxu0 0.0
        %3359 = vmatprep.subr.mxu0 0.0
        %3360 = vmatpush1.msra.mxu0 0.0
        %3361 = vmatprep.subr.mxu0 0.0
        %3362 = vmatpush1.msra.mxu0 0.0
        %3363 = vmatprep.subr.mxu0 0.0
        %3364 = vmatpush1.msra.mxu0 0.0
        %3365 = vmatprep.subr.mxu0 0.0
        %3366 = vmatpush1.msra.mxu0 0.0
        %3367 = vmatprep.subr.mxu0 0.0
        %3368 = vmatpush1.msra.mxu0 0.0
        %3369 = vmatprep.subr.mxu0 0.0
        %3370 = vmatpush1.msra.mxu0 0.0
        %3371 = vmatprep.subr.mxu0 0.0
        %3372 = vmatpush1.msra.mxu0 0.0
        %3373 = vmatprep.mubr.f32.mxu0 0.0
        %3374 = vmatmul.mubr.f32.gmra.mrb[0].mxu0 %v3052
        %v3375 = vpop.f32.mrb[0].mxu0
        %v3376 = vadd.f32 0.0, %v3375
        %v3377 = vpop.f32.mrb[0].mxu0
        %v3378 = vadd.f32 0.0, %v3377
        %3379 = vmatprep.mubr.f32.mxu0 0.0
        %3380 = vmatmul.mubr.f32.gmra.mrb[0].mxu0 %v3055
        %v3381 = vpop.f32.mrb[0].mxu0
        %v3382 = vadd.f32 0.0, %v3381
        %v3383 = vpop.f32.mrb[0].mxu0
        %v3384 = vadd.f32 0.0, %v3383
        %3385 = vmatprep.mubr.f32.mxu0 0.0
        %3386 = vmatmul.mubr.f32.gmra.mrb[0].mxu0 %v3058
        %v3387 = vpop.f32.mrb[0].mxu0
        %v3388 = vadd.f32 0.0, %v3387
        %v3389 = vpop.f32.mrb[0].mxu0
        %v3390 = vadd.f32 0.0, %v3389
        %3391 = vdwg.mxu0
        %v3392 = vmax.f32 %v3127, %v3133
        %vm3393 = vcmask 1043456
        %v3394 = vsel %vm3393, %v3139, -inf
        %v3395 = vmax.f32 %v3392, %v3394
        %v3396 = vrot.slane %v3395, 4
        %v3397 = vmax.f32 %v3395, %v3396
        %v3398 = vrot.slane %v3397, 2
        %v3399 = vmax.f32 %v3397, %v3398
        %v3400 = vrot.slane %v3399, 1
        %v3401 = vmax.f32 %v3399, %v3400
        %v3402 = vmax.f32 %v3129, %v3135
        %v3403 = vsel %vm3393, %v3141, -inf
        %v3404 = vmax.f32 %v3402, %v3403
        %v3405 = vrot.slane %v3404, 4
        %v3406 = vmax.f32 %v3404, %v3405
        %v3407 = vrot.slane %v3406, 2
        %v3408 = vmax.f32 %v3406, %v3407
        %v3409 = vrot.slane %v3408, 1
        %v3410 = vmax.f32 %v3408, %v3409
        %v3411 = vmax.f32 %v3210, %v3216
        %v3412 = vsel %vm3393, %v3222, -inf
        %v3413 = vmax.f32 %v3411, %v3412
        %v3414 = vrot.slane %v3413, 4
        %v3415 = vmax.f32 %v3413, %v3414
        %v3416 = vrot.slane %v3415, 2
        %v3417 = vmax.f32 %v3415, %v3416
        %v3418 = vrot.slane %v3417, 1
        %v3419 = vmax.f32 %v3417, %v3418
        %v3420 = vmax.f32 %v3212, %v3218
        %v3421 = vsel %vm3393, %v3224, -inf
        %v3422 = vmax.f32 %v3420, %v3421
        %v3423 = vrot.slane %v3422, 4
        %v3424 = vmax.f32 %v3422, %v3423
        %v3425 = vrot.slane %v3424, 2
        %v3426 = vmax.f32 %v3424, %v3425
        %v3427 = vrot.slane %v3426, 1
        %v3428 = vmax.f32 %v3426, %v3427
        %v3429 = vmax.f32 %v3293, %v3299
        %v3430 = vsel %vm3393, %v3305, -inf
        %v3431 = vmax.f32 %v3429, %v3430
        %v3432 = vrot.slane %v3431, 4
        %v3433 = vmax.f32 %v3431, %v3432
        %v3434 = vrot.slane %v3433, 2
        %v3435 = vmax.f32 %v3433, %v3434
        %v3436 = vrot.slane %v3435, 1
        %v3437 = vmax.f32 %v3435, %v3436
        %v3438 = vmax.f32 %v3295, %v3301
        %v3439 = vsel %vm3393, %v3307, -inf
        %v3440 = vmax.f32 %v3438, %v3439
        %v3441 = vrot.slane %v3440, 4
        %v3442 = vmax.f32 %v3440, %v3441
        %v3443 = vrot.slane %v3442, 2
        %v3444 = vmax.f32 %v3442, %v3443
        %v3445 = vrot.slane %v3444, 1
        %v3446 = vmax.f32 %v3444, %v3445
        %v3447 = vmax.f32 %v3376, %v3382
        %v3448 = vsel %vm3393, %v3388, -inf
        %v3449 = vmax.f32 %v3447, %v3448
        %v3450 = vrot.slane %v3449, 4
        %v3451 = vmax.f32 %v3449, %v3450
        %v3452 = vrot.slane %v3451, 2
        %v3453 = vmax.f32 %v3451, %v3452
        %v3454 = vrot.slane %v3453, 1
        %v3455 = vmax.f32 %v3453, %v3454
        %v3456 = vmax.f32 %v3378, %v3384
        %v3457 = vsel %vm3393, %v3390, -inf
        %v3458 = vmax.f32 %v3456, %v3457
        %v3459 = vrot.slane %v3458, 4
        %v3460 = vmax.f32 %v3458, %v3459
        %v3461 = vrot.slane %v3460, 2
        %v3462 = vmax.f32 %v3460, %v3461
        %v3463 = vrot.slane %v3462, 1
        %v3464 = vmax.f32 %v3462, %v3463
        %v3465 = vld [vmem:[#allocation5] sm:$0xff]
        %v3467 = vlaneseq
        %v3468 = vshrl.u32 %v3467, 7
        %v3469 = vsub.s32 0, %v3468
        %v3470 = vrot.slane %v3465, %v3469
        %v3471 = vlaneseq
        %v3472 = vshrl.u32 %v3471, 7
        %v3473 = vsub.s32 1, %v3472
        %v3474 = vrot.slane %v3465, %v3473
        %v3475 = vlaneseq
        %v3476 = vshrl.u32 %v3475, 7
        %v3477 = vsub.s32 2, %v3476
        %v3478 = vrot.slane %v3465, %v3477
        %v3479 = vlaneseq
        %v3480 = vshrl.u32 %v3479, 7
        %v3481 = vsub.s32 3, %v3480
        %v3482 = vrot.slane %v3465, %v3481
        %v3483 = vlaneseq
        %v3484 = vshrl.u32 %v3483, 7
        %v3485 = vsub.s32 4, %v3484
        %v3486 = vrot.slane %v3465, %v3485
        %v3487 = vlaneseq
        %v3488 = vshrl.u32 %v3487, 7
        %v3489 = vsub.s32 5, %v3488
        %v3490 = vrot.slane %v3465, %v3489
        %v3491 = vlaneseq
        %v3492 = vshrl.u32 %v3491, 7
        %v3493 = vsub.s32 6, %v3492
        %v3494 = vrot.slane %v3465, %v3493
        %v3495 = vlaneseq
        %v3496 = vshrl.u32 %v3495, 7
        %v3497 = vsub.s32 7, %v3496
        %v3498 = vrot.slane %v3465, %v3497
        %v3507 = vadd.f32 %v3401, %v3470
        %v3508 = vadd.f32 %v3410, %v3474
        %v3509 = vadd.f32 %v3419, %v3478
        %v3510 = vadd.f32 %v3428, %v3482
        %v3511 = vadd.f32 %v3437, %v3486
        %v3512 = vadd.f32 %v3446, %v3490
        %v3513 = vadd.f32 %v3455, %v3494
        %v3514 = vadd.f32 %v3464, %v3498
        %v3523 = vcombine.low %v3507, %v3508
        %v3524 = vcombine.low %v3509, %v3510
        %v3525 = vcombine.low %v3511, %v3512
        %v3526 = vcombine.low %v3513, %v3514
        %v3528 = vunpack.c.l.s4 1966171168
        %v3529 = vunpack.c.0.s8 %v3528
        %v3530 = vlaneseq
        %v3531 = vshrl.u32 %v3530, 7
        %v3532 = vsub.s32 %v3529, %v3531
        %v3533 = vrot.slane %v3523, %v3532
        %v3535 = vunpack.c.l.s4 1966171168
        %v3536 = vunpack.c.0.s8 %v3535
        %v3537 = vlaneseq
        %v3538 = vshrl.u32 %v3537, 7
        %v3539 = vsub.s32 %v3536, %v3538
        %v3540 = vrot.slane %v3524, %v3539
        %v3542 = vunpack.c.l.s4 1966171168
        %v3543 = vunpack.c.0.s8 %v3542
        %v3544 = vlaneseq
        %v3545 = vshrl.u32 %v3544, 7
        %v3546 = vsub.s32 %v3543, %v3545
        %v3547 = vrot.slane %v3525, %v3546
        %v3549 = vunpack.c.l.s4 1966171168
        %v3550 = vunpack.c.0.s8 %v3549
        %v3551 = vlaneseq
        %v3552 = vshrl.u32 %v3551, 7
        %v3553 = vsub.s32 %v3550, %v3552
        %v3554 = vrot.slane %v3526, %v3553
        %v3555 = vcombine.low %v3533, %v3540
        %v3556 = vcombine.low %v3547, %v3554
        %v3558 = vunpack.c.l.s4 1966171168
        %v3559 = vunpack.c.0.s8 %v3558
        %v3560 = vlaneseq
        %v3561 = vshrl.u32 %v3560, 7
        %v3562 = vsub.s32 %v3559, %v3561
        %v3563 = vrot.slane %v3555, %v3562
        %v3565 = vunpack.c.l.s4 1966171168
        %v3566 = vunpack.c.0.s8 %v3565
        %v3567 = vlaneseq
        %v3568 = vshrl.u32 %v3567, 7
        %v3569 = vsub.s32 %v3566, %v3568
        %v3570 = vrot.slane %v3556, %v3569
        %v3571 = vcombine.low %v3563, %v3570
        %3573 = vst [vmem:[%s247] sm:$0xff] %v3571
        %p3574 = scmp.lt.s32.totalorder %s18, 1
        %s3575 = scalar_select %p3574, %s18, 1
        %s3576 = smul.addr %s3575, 8
        %s3577 = scalar_lea.vmem %s5, %s3576
        // Predicated region
        $region49: #{dgcnn_forward.1} parent=39 // pred_check
          %p3578 = pneg %p146
        $region50: #{dgcnn_forward.1} parent=39 // pred_check_branch
          %3580 = sbr.rel (%p3578) target = $region52
        $region51: #{dgcnn_forward.1} parent=39 // pred_region
          _
        $region52: #{dgcnn_forward.1} parent=39 // pred_fallthru
          _
      $region40: #{dgcnn_forward.1} parent=5 // pred_fallthru
        _
      %p3581 = scmp.le.s32.totalorder 2, %s13
      // Predicated region
      $region53: #{dgcnn_forward.1} parent=5 // pred_check
        %p3582 = pneg %p3581
      $region54: #{dgcnn_forward.1} parent=5 // pred_check_branch
        %3584 = sbr.rel (%p3582) target = $region56
      $region55: #{dgcnn_forward.1} parent=5 // pred_region
        %s3585 = ssub.s32 %s13, 2
        // Predicated region
        $region57: #{dgcnn_forward.1} parent=55 // pred_check
          %p3586 = pneg %p152
        $region58: #{dgcnn_forward.1} parent=55 // pred_check_branch
          %3588 = sbr.rel (%p3586) target = $region60
        $region59: #{dgcnn_forward.1} parent=55 // pred_region
          %p3589 = scmp.lt.s32.totalorder %s19, 1
          %s3590 = scalar_select %p3589, %s19, 1
          %s3591 = smul.addr %s3590, 8
          %s3592 = scalar_lea.vmem %s5, %s3591
        $region60: #{dgcnn_forward.1} parent=55 // pred_fallthru
          _
      $region56: #{dgcnn_forward.1} parent=5 // pred_fallthru
        _
    $region6: #{dgcnn_forward.1} parent=1 // loop_footer
      %s17 = sadd.s32 1, %s13
    $region7: #{dgcnn_forward.1} parent=1 // loop_footer_branch
      %12 = sbr.rel target = $region3
    $region8: #{dgcnn_forward.1} parent=1 // loop_exit
      _
    %3593 = vsyncpa [#allocation4], 1
    %s3594 = scalar_lea.sflag [#allocation4], 1
    %3595 = vsyncpa %s3594, 1
    %3596 = vsyncpa [#allocation6], 1

</llo_original>
